<compile_context>
chip_gen: v5e
topology: v5e:2x2
jax: 0.10.0
libtpu: 0.0.40
codegen_flags: <defaults>
</compile_context>

<pallas_src>
import jax
import jax.numpy as jnp
from jax import lax
from jax.experimental import pallas as pl
from jax.experimental.pallas import tpu as pltpu

# ---- small synthetic config (module defaults hidden=1/emb=1; TPU-friendly sizes) ----
EMB = 64          # emb_size
HIDDEN = 64       # hidden_size  -> bidirectional width 2H = 128 (lane dense)
NUM_LAYERS = 2    # num_layers
# gate order along the 3H axis is PyTorch's (r, z, n); kernel uses the
# gate-interleaved combined layout [rf rb | zf zb | nf nb] along 6H.


def gru_encoder_kernel(x_ref, vmc_ref,
                       wih0_ref, wihL_ref, whh_ref, bg_ref, bn_ref,
                       out_ref, hid_ref,
                       gx_ref, buf_ref):
    """Whole bidirectional multi-layer GRU forward, fused fwd+bwd recurrence."""
    L, B, _ = vmc_ref.shape
    H = HIDDEN
    H2 = 2 * H
    G = 6 * H

    # lane selector: within each 2H gate group, lanes [0:H] belong to the fwd
    # direction (time t), lanes [H:2H] to the bwd direction (time L-1-t).
    col = lax.broadcasted_iota(jnp.int32, (B, G), 1)
    fwd_sel = (col % H2) < H

    for layer in range(NUM_LAYERS):                 # static unroll over layers
        last = layer == NUM_LAYERS - 1

        # ---- time-parallel input projection: ONE (L*B, in) @ (in, 6H) matmul ----
        if layer == 0:
            xin = x_ref[...]                        # (L*B, E), row = t*B + b
            w_in = wih0_ref[...]                    # (E, 6H)
        else:
            xin = buf_ref[...]                      # (L*B, 2H) lane-dense
            w_in = wihL_ref[layer - 1]              # (2H, 6H)
        gx_ref[...] = (jnp.dot(xin, w_in, preferred_element_type=jnp.float32)
                       + bg_ref[layer])             # b_ih (+ folded r/z b_hh)

        whh = whh_ref[layer]                        # (2H, 6H) block-diagonal
        bn = bn_ref[layer]                          # (1, 2H) n-gate b_hh [nf|nb]
        dst = out_ref if last else buf_ref          # lane-dense (L*B, 2H)

        # ---- fused fwd+bwd recurrence, statically unrolled over time ----
        h = jnp.zeros((B, H2), jnp.float32)         # [h_fwd | h_bwd]
        for t in range(L):
            tb = L - 1 - t
            gx_t = gx_ref[t * B:(t + 1) * B, :]     # gates of input at time t
            gx_b = gx_ref[tb * B:(tb + 1) * B, :]   # gates of input at time tb
            gx = jnp.where(fwd_sel, gx_t, gx_b)     # fwd lanes<-t, bwd lanes<-tb

            gh = jnp.dot(h, whh, preferred_element_type=jnp.float32)  # (B, 6H)
            r = jax.nn.sigmoid(gx[:, :H2] + gh[:, :H2])
            z = jax.nn.sigmoid(gx[:, H2:2 * H2] + gh[:, H2:2 * H2])
            n = jnp.tanh(gx[:, 2 * H2:] + r * (gh[:, 2 * H2:] + bn))
            hn = (1.0 - z) * n + z * h

            m = vmc_ref[t]                          # (B, 2H): fwd valid[t], bwd valid[tb]
            hn_m = m * hn                           # packed semantics: zeros at padding
            dst[t * B:(t + 1) * B, :H] = hn_m[:, :H]     # fwd output at time t
            dst[tb * B:(tb + 1) * B, H:] = hn_m[:, H:]   # bwd output at time tb
            h = h + m * (hn - h)                    # carry hidden of last valid step

        if last:
            hid_ref[...] = h                        # [fwd last hidden | bwd hidden@t=0]


# ------------------------------ pallas wrapper ------------------------------

def recurrent_encoder_forward(embed_src, src_length, mask, packed):
    """Pallas forward of RecurrentEncoder. Returns (output, hidden_concat, None)."""
    del mask  # only shape-checked in the torch module; packing uses src_length
    B, L, E = embed_src.shape
    H = HIDDEN
    # TODO(synk): emb_dropout / inter-layer dropout are identity (inference only).
    # TODO(synk): rnn_type='lstm' variant not implemented (GRU default only).

    # time-major, batch-flattened input slab: row t*B + b
    x2d = jnp.transpose(embed_src, (1, 0, 2)).reshape(L * B, E).astype(jnp.float32)

    valid = (jnp.arange(L, dtype=jnp.int32)[:, None]
             < src_length[None, :].astype(jnp.int32)).astype(jnp.float32)   # (L, B)
    # combined validity mask: fwd half = valid[t], bwd half = valid[L-1-t]
    vmc = jnp.concatenate(
        [jnp.broadcast_to(valid[:, :, None], (L, B, H)),
         jnp.broadcast_to(valid[::-1, :, None], (L, B, H))], axis=-1)        # (L, B, 2H)

    args = (x2d, vmc, packed["wih0"], packed["wihL"], packed["whh"],
            packed["bg"], packed["bn"])

    out_shape = (jax.ShapeDtypeStruct((L * B, 2 * H), jnp.float32),   # lane-dense outputs
                 jax.ShapeDtypeStruct((B, 2 * H), jnp.float32))       # [fwd|bwd] hidden

    def full(shape):
        zeros = (0,) * len(shape)
        return pl.BlockSpec(shape, lambda i, _z=zeros: _z)

    out2d, hid = pl.pallas_call(
        gru_encoder_kernel,
        out_shape=out_shape,
        grid=(1,),
        in_specs=[full(a.shape) for a in args],
        out_specs=tuple(full(s.shape) for s in out_shape),
        scratch_shapes=[
            pltpu.VMEM((L * B, 6 * H), jnp.float32),   # combined gate inputs (lane-dense)
            pltpu.VMEM((L * B, 2 * H), jnp.float32),   # inter-layer activation slab
        ],
        compiler_params=pltpu.CompilerParams(dimension_semantics=("arbitrary",)),
    )(*args)

    output = out2d.reshape(L, B, 2 * H).transpose(1, 0, 2)   # (B, L, 2H), tiny reshuffle
    return output, hid, None


# ------------------------------ params (packed once) -------------------------

def init_params(key):
    """Natural-layout weights (per-direction, gates r|z|n along 3H)."""
    H, E = HIDDEN, EMB
    ks = jax.random.split(key, 5)

    def w(k, shape, scale=0.1):
        return jax.random.normal(k, shape, jnp.float32) * scale

    n_deep = max(NUM_LAYERS - 1, 1)
    return dict(
        wih0=w(ks[0], (2, E, 3 * H)),                 # layer 0, (dir, in, 3H)
        wihL=w(ks[1], (n_deep, 2, 2 * H, 3 * H)),     # layers >= 1
        whh=w(ks[2], (NUM_LAYERS, 2, H, 3 * H)),
        bih=w(ks[3], (NUM_LAYERS, 2, 1, 3 * H)),
        bhh=w(ks[4], (NUM_LAYERS, 2, 1, 3 * H)),
    )


def pack_params(params):
    """Pack weights once into the fused-kernel layout [rf rb | zf zb | nf nb]."""
    H = HIDDEN

    def gate_interleave(a, b):
        # a, b: (in, 3H) columns [r|z|n] -> (in, 6H) columns [rf rb zf zb nf nb]
        return jnp.concatenate([a[:, :H], b[:, :H],
                                a[:, H:2 * H], b[:, H:2 * H],
                                a[:, 2 * H:], b[:, 2 * H:]], axis=1)

    wih0 = gate_interleave(params["wih0"][0], params["wih0"][1])             # (E, 6H)

    n_deep = params["wihL"].shape[0]
    wihL = jnp.stack([gate_interleave(params["wihL"][l, 0], params["wihL"][l, 1])
                      for l in range(n_deep)])                               # (n_deep, 2H, 6H)

    whh_l, bg_l, bn_l = [], [], []
    for l in range(NUM_LAYERS):
        wf, wb = params["whh"][l, 0], params["whh"][l, 1]                    # (H, 3H)
        top = gate_interleave(wf, jnp.zeros_like(wb))                        # h_fwd rows
        bot = gate_interleave(jnp.zeros_like(wf), wb)                        # h_bwd rows
        whh_l.append(jnp.concatenate([top, bot], axis=0))                    # (2H, 6H)

        bif, bib = params["bih"][l, 0], params["bih"][l, 1]                  # (1, 3H)
        bhf, bhb = params["bhh"][l, 0], params["bhh"][l, 1]
        bhf_rz = bhf.at[:, 2 * H:].set(0.0)                                  # fold only r,z
        bhb_rz = bhb.at[:, 2 * H:].set(0.0)
        bg_l.append(gate_interleave(bif + bhf_rz, bib + bhb_rz))             # (1, 6H)
        bn_l.append(jnp.concatenate([bhf[:, 2 * H:], bhb[:, 2 * H:]], axis=1))  # (1, 2H)

    return dict(wih0=wih0, wihL=wihL, whh=jnp.stack(whh_l),
                bg=jnp.stack(bg_l), bn=jnp.stack(bn_l))


# ------------------------------ pure-JAX reference ---------------------------

def ref_forward(embed_src, src_length, params):
    B, L, E = embed_src.shape
    H = HIDDEN
    valid = (jnp.arange(L)[None, :] < src_length[:, None]).astype(jnp.float32)  # (B, L)

    def cell(gx, gh, h):
        r = jax.nn.sigmoid(gx[:, :H] + gh[:, :H])
        z = jax.nn.sigmoid(gx[:, H:2 * H] + gh[:, H:2 * H])
        n = jnp.tanh(gx[:, 2 * H:] + r * gh[:, 2 * H:])
        return (1.0 - z) * n + z * h

    inp = embed_src.astype(jnp.float32)
    hf = hb = None
    for layer in range(NUM_LAYERS):
        if layer == 0:
            wf, wb = params["wih0"][0], params["wih0"][1]
        else:
            wf, wb = params["wihL"][layer - 1, 0], params["wihL"][layer - 1, 1]
        whh_f, whh_b = params["whh"][layer, 0], params["whh"][layer, 1]
        bih_f, bih_b = params["bih"][layer, 0], params["bih"][layer, 1]
        bhh_f, bhh_b = params["bhh"][layer, 0], params["bhh"][layer, 1]

        h = jnp.zeros((B, H), jnp.float32)
        outs_f = []
        for t in range(L):
            gx = inp[:, t] @ wf + bih_f
            gh = h @ whh_f + bhh_f
            hn = cell(gx, gh, h)
            m = valid[:, t:t + 1]
            outs_f.append(m * hn)
            h = m * hn + (1.0 - m) * h
        hf = h

        h = jnp.zeros((B, H), jnp.float32)
        outs_b = [None] * L
        for t in range(L - 1, -1, -1):
            gx = inp[:, t] @ wb + bih_b
            gh = h @ whh_b + bhh_b
            hn = cell(gx, gh, h)
            m = valid[:, t:t + 1]
            outs_b[t] = m * hn
            h = m * hn + (1.0 - m) * h
        hb = h

        inp = jnp.concatenate([jnp.stack(outs_f, 1), jnp.stack(outs_b, 1)], axis=-1)

    return inp, jnp.concatenate([hf, hb], axis=-1)


# ------------------------------ main -----------------------------------------

if __name__ == "__main__":
    key = jax.random.PRNGKey(0)
    k_x, k_p = jax.random.split(key)

    B, L = 8, 8
    embed_src = jax.random.normal(k_x, (B, L, EMB), jnp.float32)
    # pack_padded_sequence expects lengths sorted in decreasing order
    src_length = jnp.array([8, 7, 6, 5, 4, 3, 2, 1], dtype=jnp.int32)
    # mask: zeros where padding, shape (batch, src_len, embed) per module docstring
    mask = jnp.broadcast_to(
        (jnp.arange(L)[None, :] < src_length[:, None])[:, :, None], (B, L, EMB))

    params = init_params(k_p)
    packed = pack_params(params)        # pack once, kernel layout

    output, hidden_concat, last_state = recurrent_encoder_forward(
        embed_src, src_length, mask, packed)
    output = jax.block_until_ready(output)
    hidden_concat = jax.block_until_ready(hidden_concat)

    ref_out, ref_hid = ref_forward(embed_src, src_length, params)

    assert output.shape == (B, L, 2 * HIDDEN), output.shape
    assert hidden_concat.shape == (B, 2 * HIDDEN), hidden_concat.shape
    assert last_state is None
    err_o = float(jnp.max(jnp.abs(output - ref_out)))
    err_h = float(jnp.max(jnp.abs(hidden_concat - ref_hid)))
    assert jnp.allclose(output, ref_out, atol=2e-4, rtol=2e-4), err_o
    assert jnp.allclose(hidden_concat, ref_hid, atol=2e-4, rtol=2e-4), err_h

    print("KERNEL_OK")
</pallas_src>

<mosaic_0001>
module attributes {stable_mosaic.version = 11 : i64} {
  func.func @gru_encoder_kernel(%arg0: i32, %arg1: memref<64x64xf32, #tpu.memory_space<vmem>>, %arg2: memref<8x8x128xf32, #tpu.memory_space<vmem>>, %arg3: memref<64x384xf32, #tpu.memory_space<vmem>>, %arg4: memref<1x128x384xf32, #tpu.memory_space<vmem>>, %arg5: memref<2x128x384xf32, #tpu.memory_space<vmem>>, %arg6: memref<2x1x384xf32, #tpu.memory_space<vmem>>, %arg7: memref<2x1x128xf32, #tpu.memory_space<vmem>>, %arg8: memref<64x128xf32, #tpu.memory_space<vmem>>, %arg9: memref<8x128xf32, #tpu.memory_space<vmem>>, %arg10: memref<64x384xf32, #tpu.memory_space<vmem>>, %arg11: memref<64x128xf32, #tpu.memory_space<vmem>>) attributes {dimension_semantics = [#tpu.dimension_semantics<arbitrary>], iteration_bounds = array<i64: 1>, scalar_prefetch = 0 : i64, scratch_operands = 2 : i64, tpu.core_type = #tpu.core_type<tc>, window_params = [{pipeline_mode = #tpu.pipeline_mode<synchronous>, transform_indices = @transform_0, window_bounds = array<i64: 64, 64>}, {pipeline_mode = #tpu.pipeline_mode<synchronous>, transform_indices = @transform_1, window_bounds = array<i64: 8, 8, 128>}, {pipeline_mode = #tpu.pipeline_mode<synchronous>, transform_indices = @transform_2, window_bounds = array<i64: 64, 384>}, {pipeline_mode = #tpu.pipeline_mode<synchronous>, transform_indices = @transform_3, window_bounds = array<i64: 1, 128, 384>}, {pipeline_mode = #tpu.pipeline_mode<synchronous>, transform_indices = @transform_4, window_bounds = array<i64: 2, 128, 384>}, {pipeline_mode = #tpu.pipeline_mode<synchronous>, transform_indices = @transform_5, window_bounds = array<i64: 2, 1, 384>}, {pipeline_mode = #tpu.pipeline_mode<synchronous>, transform_indices = @transform_6, window_bounds = array<i64: 2, 1, 128>}, {pipeline_mode = #tpu.pipeline_mode<synchronous>, transform_indices = @transform_7, window_bounds = array<i64: 64, 128>}, {pipeline_mode = #tpu.pipeline_mode<synchronous>, transform_indices = @transform_8, window_bounds = array<i64: 8, 128>}]} {
    %0 = tpu.iota {dimensions = array<i32: 1>} : vector<8x384xi32>
    %c128_i32 = arith.constant 128 : i32
    %c0_i32 = arith.constant 0 : i32
    %1 = arith.cmpi eq, %c128_i32, %c0_i32 : i32
    %c1_i32 = arith.constant 1 : i32
    %2 = arith.select %1, %c1_i32, %c128_i32 : i32
    %3 = vector.broadcast %2 : i32 to vector<8x384xi32>
    %4 = arith.remsi %0, %3 : vector<8x384xi32>
    %c0_i32_0 = arith.constant 0 : i32
    %5 = vector.broadcast %c0_i32_0 : i32 to vector<8x384xi32>
    %6 = arith.cmpi ne, %4, %5 : vector<8x384xi32>
    %c0_i32_1 = arith.constant 0 : i32
    %7 = vector.broadcast %c0_i32_1 : i32 to vector<8x384xi32>
    %8 = arith.cmpi slt, %4, %7 : vector<8x384xi32>
    %c0_i32_2 = arith.constant 0 : i32
    %9 = arith.cmpi slt, %2, %c0_i32_2 : i32
    %10 = vector.broadcast %9 : i1 to vector<8x384xi1>
    %11 = vector.broadcast %10 : vector<8x384xi1> to vector<8x384xi1>
    %12 = arith.xori %8, %11 : vector<8x384xi1>
    %13 = arith.andi %12, %6 : vector<8x384xi1>
    %14 = vector.broadcast %2 : i32 to vector<8x384xi32>
    %15 = arith.addi %4, %14 : vector<8x384xi32>
    %16 = arith.select %13, %15, %4 : vector<8x384xi1>, vector<8x384xi32>
    %c64_i32 = arith.constant 64 : i32
    %17 = vector.broadcast %c64_i32 : i32 to vector<8x384xi32>
    %18 = arith.cmpi slt, %16, %17 : vector<8x384xi32>
    %c0 = arith.constant 0 : index
    %c0_3 = arith.constant 0 : index
    %19 = vector.load %arg1[%c0, %c0_3] : memref<64x64xf32, #tpu.memory_space<vmem>>, vector<64x64xf32>
    %c0_4 = arith.constant 0 : index
    %c0_5 = arith.constant 0 : index
    %20 = vector.load %arg3[%c0_4, %c0_5] : memref<64x384xf32, #tpu.memory_space<vmem>>, vector<64x384xf32>
    %cst = arith.constant dense<0.000000e+00> : vector<64x384xf32>
    %21 = tpu.matmul %19, %20, %cst {dimension_numbers = #tpu.dot_dimension_numbers<[1], [0], [0], [1], [0, 0, 1, 1], [], []>} : vector<64x64xf32>, vector<64x384xf32>, vector<64x384xf32> -> vector<64x384xf32>
    %c0_6 = arith.constant 0 : index
    %c0_7 = arith.constant 0 : index
    %c0_8 = arith.constant 0 : index
    %22 = vector.load %arg6[%c0_6, %c0_7, %c0_8] : memref<2x1x384xf32, #tpu.memory_space<vmem>>, vector<1x1x384xf32>
    %23 = vector.shape_cast %22 : vector<1x1x384xf32> to vector<1x384xf32>
    %24 = vector.broadcast %23 : vector<1x384xf32> to vector<64x384xf32>
    %25 = arith.addf %21, %24 : vector<64x384xf32>
    %c0_9 = arith.constant 0 : index
    %c0_10 = arith.constant 0 : index
    %26 = vector.load %arg10[%c0_9, %c0_10] : memref<64x384xf32, #tpu.memory_space<vmem>>, vector<64x384xf32>
    tpu.vector_store %arg10[%c0_9, %c0_10], %25 {strides = array<i32>} : memref<64x384xf32, #tpu.memory_space<vmem>>, vector<64x384xf32>,
    %c0_11 = arith.constant 0 : index
    %c0_12 = arith.constant 0 : index
    %c0_13 = arith.constant 0 : index
    %27 = vector.load %arg5[%c0_11, %c0_12, %c0_13] : memref<2x128x384xf32, #tpu.memory_space<vmem>>, vector<1x128x384xf32>
    %28 = vector.shape_cast %27 : vector<1x128x384xf32> to vector<128x384xf32>
    %c0_14 = arith.constant 0 : index
    %c0_15 = arith.constant 0 : index
    %c0_16 = arith.constant 0 : index
    %29 = vector.load %arg7[%c0_14, %c0_15, %c0_16] : memref<2x1x128xf32, #tpu.memory_space<vmem>>, vector<1x1x128xf32>
    %30 = vector.shape_cast %29 : vector<1x1x128xf32> to vector<1x128xf32>
    %cst_17 = arith.constant 0.000000e+00 : f32
    %31 = vector.broadcast %cst_17 : f32 to vector<8x128xf32>
    %c0_18 = arith.constant 0 : index
    %c0_19 = arith.constant 0 : index
    %32 = vector.load %arg10[%c0_18, %c0_19] : memref<64x384xf32, #tpu.memory_space<vmem>>, vector<8x384xf32>
    %c56 = arith.constant 56 : index
    %c0_20 = arith.constant 0 : index
    %33 = vector.load %arg10[%c56, %c0_20] : memref<64x384xf32, #tpu.memory_space<vmem>>, vector<8x384xf32>
    %34 = arith.select %18, %32, %33 : vector<8x384xi1>, vector<8x384xf32>
    %cst_21 = arith.constant dense<0.000000e+00> : vector<8x384xf32>
    %35 = tpu.matmul %31, %28, %cst_21 {dimension_numbers = #tpu.dot_dimension_numbers<[1], [0], [0], [1], [0, 0, 1, 1], [], []>} : vector<8x128xf32>, vector<128x384xf32>, vector<8x384xf32> -> vector<8x384xf32>
    %36 = vector.extract_strided_slice %34 {offsets = [0, 0], sizes = [8, 128], strides = [1, 1]} : vector<8x384xf32> to vector<8x128xf32>
    %37 = vector.extract_strided_slice %35 {offsets = [0, 0], sizes = [8, 128], strides = [1, 1]} : vector<8x384xf32> to vector<8x128xf32>
    %38 = arith.addf %36, %37 : vector<8x128xf32>
    %39 = arith.negf %38 : vector<8x128xf32>
    %40 = math.exp %39 : vector<8x128xf32>
    %cst_22 = arith.constant 1.000000e+00 : f32
    %41 = vector.broadcast %cst_22 : f32 to vector<8x128xf32>
    %42 = arith.addf %41, %40 : vector<8x128xf32>
    %43 = arith.divf %41, %42 : vector<8x128xf32>
    %44 = vector.extract_strided_slice %34 {offsets = [0, 128], sizes = [8, 128], strides = [1, 1]} : vector<8x384xf32> to vector<8x128xf32>
    %45 = vector.extract_strided_slice %35 {offsets = [0, 128], sizes = [8, 128], strides = [1, 1]} : vector<8x384xf32> to vector<8x128xf32>
    %46 = arith.addf %44, %45 : vector<8x128xf32>
    %47 = arith.negf %46 : vector<8x128xf32>
    %48 = math.exp %47 : vector<8x128xf32>
    %cst_23 = arith.constant 1.000000e+00 : f32
    %49 = vector.broadcast %cst_23 : f32 to vector<8x128xf32>
    %50 = arith.addf %49, %48 : vector<8x128xf32>
    %51 = arith.divf %49, %50 : vector<8x128xf32>
    %52 = vector.extract_strided_slice %34 {offsets = [0, 256], sizes = [8, 128], strides = [1, 1]} : vector<8x384xf32> to vector<8x128xf32>
    %53 = vector.extract_strided_slice %35 {offsets = [0, 256], sizes = [8, 128], strides = [1, 1]} : vector<8x384xf32> to vector<8x128xf32>
    %54 = vector.broadcast %30 : vector<1x128xf32> to vector<8x128xf32>
    %55 = arith.addf %53, %54 : vector<8x128xf32>
    %56 = arith.mulf %43, %55 : vector<8x128xf32>
    %57 = arith.addf %52, %56 : vector<8x128xf32>
    %58 = math.tanh %57 : vector<8x128xf32>
    %cst_24 = arith.constant 1.000000e+00 : f32
    %59 = vector.broadcast %cst_24 : f32 to vector<8x128xf32>
    %60 = arith.subf %59, %51 : vector<8x128xf32>
    %61 = arith.mulf %60, %58 : vector<8x128xf32>
    %62 = arith.mulf %51, %31 : vector<8x128xf32>
    %63 = arith.addf %61, %62 : vector<8x128xf32>
    %c0_25 = arith.constant 0 : index
    %c0_26 = arith.constant 0 : index
    %c0_27 = arith.constant 0 : index
    %64 = vector.load %arg2[%c0_25, %c0_26, %c0_27] : memref<8x8x128xf32, #tpu.memory_space<vmem>>, vector<1x8x128xf32>
    %65 = vector.shape_cast %64 : vector<1x8x128xf32> to vector<8x128xf32>
    %66 = arith.mulf %65, %63 : vector<8x128xf32>
    %67 = vector.extract_strided_slice %66 {offsets = [0, 0], sizes = [8, 64], strides = [1, 1]} : vector<8x128xf32> to vector<8x64xf32>
    %c0_28 = arith.constant 0 : index
    %c0_29 = arith.constant 0 : index
    %68 = vector.load %arg11[%c0_28, %c0_29] : memref<64x128xf32, #tpu.memory_space<vmem>>, vector<8x64xf32>
    tpu.vector_store %arg11[%c0_28, %c0_29], %67 {strides = array<i32>} : memref<64x128xf32, #tpu.memory_space<vmem>>, vector<8x64xf32>,
    %69 = vector.extract_strided_slice %66 {offsets = [0, 64], sizes = [8, 64], strides = [1, 1]} : vector<8x128xf32> to vector<8x64xf32>
    %c56_30 = arith.constant 56 : index
    %c64 = arith.constant 64 : index
    %70 = vector.load %arg11[%c56_30, %c64] : memref<64x128xf32, #tpu.memory_space<vmem>>, vector<8x64xf32>
    tpu.vector_store %arg11[%c56_30, %c64], %69 {strides = array<i32>} : memref<64x128xf32, #tpu.memory_space<vmem>>, vector<8x64xf32>,
    %71 = arith.subf %63, %31 : vector<8x128xf32>
    %72 = arith.mulf %65, %71 : vector<8x128xf32>
    %73 = arith.addf %31, %72 : vector<8x128xf32>
    %c8 = arith.constant 8 : index
    %c0_31 = arith.constant 0 : index
    %74 = vector.load %arg10[%c8, %c0_31] : memref<64x384xf32, #tpu.memory_space<vmem>>, vector<8x384xf32>
    %c48 = arith.constant 48 : index
    %c0_32 = arith.constant 0 : index
    %75 = vector.load %arg10[%c48, %c0_32] : memref<64x384xf32, #tpu.memory_space<vmem>>, vector<8x384xf32>
    %76 = arith.select %18, %74, %75 : vector<8x384xi1>, vector<8x384xf32>
    %cst_33 = arith.constant dense<0.000000e+00> : vector<8x384xf32>
    %77 = tpu.matmul %73, %28, %cst_33 {dimension_numbers = #tpu.dot_dimension_numbers<[1], [0], [0], [1], [0, 0, 1, 1], [], []>} : vector<8x128xf32>, vector<128x384xf32>, vector<8x384xf32> -> vector<8x384xf32>
    %78 = vector.extract_strided_slice %76 {offsets = [0, 0], sizes = [8, 128], strides = [1, 1]} : vector<8x384xf32> to vector<8x128xf32>
    %79 = vector.extract_strided_slice %77 {offsets = [0, 0], sizes = [8, 128], strides = [1, 1]} : vector<8x384xf32> to vector<8x128xf32>
    %80 = arith.addf %78, %79 : vector<8x128xf32>
    %81 = arith.negf %80 : vector<8x128xf32>
    %82 = math.exp %81 : vector<8x128xf32>
    %cst_34 = arith.constant 1.000000e+00 : f32
    %83 = vector.broadcast %cst_34 : f32 to vector<8x128xf32>
    %84 = arith.addf %83, %82 : vector<8x128xf32>
    %85 = arith.divf %83, %84 : vector<8x128xf32>
    %86 = vector.extract_strided_slice %76 {offsets = [0, 128], sizes = [8, 128], strides = [1, 1]} : vector<8x384xf32> to vector<8x128xf32>
    %87 = vector.extract_strided_slice %77 {offsets = [0, 128], sizes = [8, 128], strides = [1, 1]} : vector<8x384xf32> to vector<8x128xf32>
    %88 = arith.addf %86, %87 : vector<8x128xf32>
    %89 = arith.negf %88 : vector<8x128xf32>
    %90 = math.exp %89 : vector<8x128xf32>
    %cst_35 = arith.constant 1.000000e+00 : f32
    %91 = vector.broadcast %cst_35 : f32 to vector<8x128xf32>
    %92 = arith.addf %91, %90 : vector<8x128xf32>
    %93 = arith.divf %91, %92 : vector<8x128xf32>
    %94 = vector.extract_strided_slice %76 {offsets = [0, 256], sizes = [8, 128], strides = [1, 1]} : vector<8x384xf32> to vector<8x128xf32>
    %95 = vector.extract_strided_slice %77 {offsets = [0, 256], sizes = [8, 128], strides = [1, 1]} : vector<8x384xf32> to vector<8x128xf32>
    %96 = vector.broadcast %30 : vector<1x128xf32> to vector<8x128xf32>
    %97 = arith.addf %95, %96 : vector<8x128xf32>
    %98 = arith.mulf %85, %97 : vector<8x128xf32>
    %99 = arith.addf %94, %98 : vector<8x128xf32>
    %100 = math.tanh %99 : vector<8x128xf32>
    %cst_36 = arith.constant 1.000000e+00 : f32
    %101 = vector.broadcast %cst_36 : f32 to vector<8x128xf32>
    %102 = arith.subf %101, %93 : vector<8x128xf32>
    %103 = arith.mulf %102, %100 : vector<8x128xf32>
    %104 = arith.mulf %93, %73 : vector<8x128xf32>
    %105 = arith.addf %103, %104 : vector<8x128xf32>
    %c1 = arith.constant 1 : index
    %c0_37 = arith.constant 0 : index
    %c0_38 = arith.constant 0 : index
    %106 = vector.load %arg2[%c1, %c0_37, %c0_38] : memref<8x8x128xf32, #tpu.memory_space<vmem>>, vector<1x8x128xf32>
    %107 = vector.shape_cast %106 : vector<1x8x128xf32> to vector<8x128xf32>
    %108 = arith.mulf %107, %105 : vector<8x128xf32>
    %109 = vector.extract_strided_slice %108 {offsets = [0, 0], sizes = [8, 64], strides = [1, 1]} : vector<8x128xf32> to vector<8x64xf32>
    %c8_39 = arith.constant 8 : index
    %c0_40 = arith.constant 0 : index
    %110 = vector.load %arg11[%c8_39, %c0_40] : memref<64x128xf32, #tpu.memory_space<vmem>>, vector<8x64xf32>
    tpu.vector_store %arg11[%c8_39, %c0_40], %109 {strides = array<i32>} : memref<64x128xf32, #tpu.memory_space<vmem>>, vector<8x64xf32>,
    %111 = vector.extract_strided_slice %108 {offsets = [0, 64], sizes = [8, 64], strides = [1, 1]} : vector<8x128xf32> to vector<8x64xf32>
    %c48_41 = arith.constant 48 : index
    %c64_42 = arith.constant 64 : index
    %112 = vector.load %arg11[%c48_41, %c64_42] : memref<64x128xf32, #tpu.memory_space<vmem>>, vector<8x64xf32>
    tpu.vector_store %arg11[%c48_41, %c64_42], %111 {strides = array<i32>} : memref<64x128xf32, #tpu.memory_space<vmem>>, vector<8x64xf32>,
    %113 = arith.subf %105, %73 : vector<8x128xf32>
    %114 = arith.mulf %107, %113 : vector<8x128xf32>
    %115 = arith.addf %73, %114 : vector<8x128xf32>
    %c16 = arith.constant 16 : index
    %c0_43 = arith.constant 0 : index
    %116 = vector.load %arg10[%c16, %c0_43] : memref<64x384xf32, #tpu.memory_space<vmem>>, vector<8x384xf32>
    %c40 = arith.constant 40 : index
    %c0_44 = arith.constant 0 : index
    %117 = vector.load %arg10[%c40, %c0_44] : memref<64x384xf32, #tpu.memory_space<vmem>>, vector<8x384xf32>
    %118 = arith.select %18, %116, %117 : vector<8x384xi1>, vector<8x384xf32>
    %cst_45 = arith.constant dense<0.000000e+00> : vector<8x384xf32>
    %119 = tpu.matmul %115, %28, %cst_45 {dimension_numbers = #tpu.dot_dimension_numbers<[1], [0], [0], [1], [0, 0, 1, 1], [], []>} : vector<8x128xf32>, vector<128x384xf32>, vector<8x384xf32> -> vector<8x384xf32>
    %120 = vector.extract_strided_slice %118 {offsets = [0, 0], sizes = [8, 128], strides = [1, 1]} : vector<8x384xf32> to vector<8x128xf32>
    %121 = vector.extract_strided_slice %119 {offsets = [0, 0], sizes = [8, 128], strides = [1, 1]} : vector<8x384xf32> to vector<8x128xf32>
    %122 = arith.addf %120, %121 : vector<8x128xf32>
    %123 = arith.negf %122 : vector<8x128xf32>
    %124 = math.exp %123 : vector<8x128xf32>
    %cst_46 = arith.constant 1.000000e+00 : f32
    %125 = vector.broadcast %cst_46 : f32 to vector<8x128xf32>
    %126 = arith.addf %125, %124 : vector<8x128xf32>
    %127 = arith.divf %125, %126 : vector<8x128xf32>
    %128 = vector.extract_strided_slice %118 {offsets = [0, 128], sizes = [8, 128], strides = [1, 1]} : vector<8x384xf32> to vector<8x128xf32>
    %129 = vector.extract_strided_slice %119 {offsets = [0, 128], sizes = [8, 128], strides = [1, 1]} : vector<8x384xf32> to vector<8x128xf32>
    %130 = arith.addf %128, %129 : vector<8x128xf32>
    %131 = arith.negf %130 : vector<8x128xf32>
    %132 = math.exp %131 : vector<8x128xf32>
    %cst_47 = arith.constant 1.000000e+00 : f32
    %133 = vector.broadcast %cst_47 : f32 to vector<8x128xf32>
    %134 = arith.addf %133, %132 : vector<8x128xf32>
    %135 = arith.divf %133, %134 : vector<8x128xf32>
    %136 = vector.extract_strided_slice %118 {offsets = [0, 256], sizes = [8, 128], strides = [1, 1]} : vector<8x384xf32> to vector<8x128xf32>
    %137 = vector.extract_strided_slice %119 {offsets = [0, 256], sizes = [8, 128], strides = [1, 1]} : vector<8x384xf32> to vector<8x128xf32>
    %138 = vector.broadcast %30 : vector<1x128xf32> to vector<8x128xf32>
    %139 = arith.addf %137, %138 : vector<8x128xf32>
    %140 = arith.mulf %127, %139 : vector<8x128xf32>
    %141 = arith.addf %136, %140 : vector<8x128xf32>
    %142 = math.tanh %141 : vector<8x128xf32>
    %cst_48 = arith.constant 1.000000e+00 : f32
    %143 = vector.broadcast %cst_48 : f32 to vector<8x128xf32>
    %144 = arith.subf %143, %135 : vector<8x128xf32>
    %145 = arith.mulf %144, %142 : vector<8x128xf32>
    %146 = arith.mulf %135, %115 : vector<8x128xf32>
    %147 = arith.addf %145, %146 : vector<8x128xf32>
    %c2 = arith.constant 2 : index
    %c0_49 = arith.constant 0 : index
    %c0_50 = arith.constant 0 : index
    %148 = vector.load %arg2[%c2, %c0_49, %c0_50] : memref<8x8x128xf32, #tpu.memory_space<vmem>>, vector<1x8x128xf32>
    %149 = vector.shape_cast %148 : vector<1x8x128xf32> to vector<8x128xf32>
    %150 = arith.mulf %149, %147 : vector<8x128xf32>
    %151 = vector.extract_strided_slice %150 {offsets = [0, 0], sizes = [8, 64], strides = [1, 1]} : vector<8x128xf32> to vector<8x64xf32>
    %c16_51 = arith.constant 16 : index
    %c0_52 = arith.constant 0 : index
    %152 = vector.load %arg11[%c16_51, %c0_52] : memref<64x128xf32, #tpu.memory_space<vmem>>, vector<8x64xf32>
    tpu.vector_store %arg11[%c16_51, %c0_52], %151 {strides = array<i32>} : memref<64x128xf32, #tpu.memory_space<vmem>>, vector<8x64xf32>,
    %153 = vector.extract_strided_slice %150 {offsets = [0, 64], sizes = [8, 64], strides = [1, 1]} : vector<8x128xf32> to vector<8x64xf32>
    %c40_53 = arith.constant 40 : index
    %c64_54 = arith.constant 64 : index
    %154 = vector.load %arg11[%c40_53, %c64_54] : memref<64x128xf32, #tpu.memory_space<vmem>>, vector<8x64xf32>
    tpu.vector_store %arg11[%c40_53, %c64_54], %153 {strides = array<i32>} : memref<64x128xf32, #tpu.memory_space<vmem>>, vector<8x64xf32>,
    %155 = arith.subf %147, %115 : vector<8x128xf32>
    %156 = arith.mulf %149, %155 : vector<8x128xf32>
    %157 = arith.addf %115, %156 : vector<8x128xf32>
    %c24 = arith.constant 24 : index
    %c0_55 = arith.constant 0 : index
    %158 = vector.load %arg10[%c24, %c0_55] : memref<64x384xf32, #tpu.memory_space<vmem>>, vector<8x384xf32>
    %c32 = arith.constant 32 : index
    %c0_56 = arith.constant 0 : index
    %159 = vector.load %arg10[%c32, %c0_56] : memref<64x384xf32, #tpu.memory_space<vmem>>, vector<8x384xf32>
    %160 = arith.select %18, %158, %159 : vector<8x384xi1>, vector<8x384xf32>
    %cst_57 = arith.constant dense<0.000000e+00> : vector<8x384xf32>
    %161 = tpu.matmul %157, %28, %cst_57 {dimension_numbers = #tpu.dot_dimension_numbers<[1], [0], [0], [1], [0, 0, 1, 1], [], []>} : vector<8x128xf32>, vector<128x384xf32>, vector<8x384xf32> -> vector<8x384xf32>
    %162 = vector.extract_strided_slice %160 {offsets = [0, 0], sizes = [8, 128], strides = [1, 1]} : vector<8x384xf32> to vector<8x128xf32>
    %163 = vector.extract_strided_slice %161 {offsets = [0, 0], sizes = [8, 128], strides = [1, 1]} : vector<8x384xf32> to vector<8x128xf32>
    %164 = arith.addf %162, %163 : vector<8x128xf32>
    %165 = arith.negf %164 : vector<8x128xf32>
    %166 = math.exp %165 : vector<8x128xf32>
    %cst_58 = arith.constant 1.000000e+00 : f32
    %167 = vector.broadcast %cst_58 : f32 to vector<8x128xf32>
    %168 = arith.addf %167, %166 : vector<8x128xf32>
    %169 = arith.divf %167, %168 : vector<8x128xf32>
    %170 = vector.extract_strided_slice %160 {offsets = [0, 128], sizes = [8, 128], strides = [1, 1]} : vector<8x384xf32> to vector<8x128xf32>
    %171 = vector.extract_strided_slice %161 {offsets = [0, 128], sizes = [8, 128], strides = [1, 1]} : vector<8x384xf32> to vector<8x128xf32>
    %172 = arith.addf %170, %171 : vector<8x128xf32>
    %173 = arith.negf %172 : vector<8x128xf32>
    %174 = math.exp %173 : vector<8x128xf32>
    %cst_59 = arith.constant 1.000000e+00 : f32
    %175 = vector.broadcast %cst_59 : f32 to vector<8x128xf32>
    %176 = arith.addf %175, %174 : vector<8x128xf32>
    %177 = arith.divf %175, %176 : vector<8x128xf32>
    %178 = vector.extract_strided_slice %160 {offsets = [0, 256], sizes = [8, 128], strides = [1, 1]} : vector<8x384xf32> to vector<8x128xf32>
    %179 = vector.extract_strided_slice %161 {offsets = [0, 256], sizes = [8, 128], strides = [1, 1]} : vector<8x384xf32> to vector<8x128xf32>
    %180 = vector.broadcast %30 : vector<1x128xf32> to vector<8x128xf32>
    %181 = arith.addf %179, %180 : vector<8x128xf32>
    %182 = arith.mulf %169, %181 : vector<8x128xf32>
    %183 = arith.addf %178, %182 : vector<8x128xf32>
    %184 = math.tanh %183 : vector<8x128xf32>
    %cst_60 = arith.constant 1.000000e+00 : f32
    %185 = vector.broadcast %cst_60 : f32 to vector<8x128xf32>
    %186 = arith.subf %185, %177 : vector<8x128xf32>
    %187 = arith.mulf %186, %184 : vector<8x128xf32>
    %188 = arith.mulf %177, %157 : vector<8x128xf32>
    %189 = arith.addf %187, %188 : vector<8x128xf32>
    %c3 = arith.constant 3 : index
    %c0_61 = arith.constant 0 : index
    %c0_62 = arith.constant 0 : index
    %190 = vector.load %arg2[%c3, %c0_61, %c0_62] : memref<8x8x128xf32, #tpu.memory_space<vmem>>, vector<1x8x128xf32>
    %191 = vector.shape_cast %190 : vector<1x8x128xf32> to vector<8x128xf32>
    %192 = arith.mulf %191, %189 : vector<8x128xf32>
    %193 = vector.extract_strided_slice %192 {offsets = [0, 0], sizes = [8, 64], strides = [1, 1]} : vector<8x128xf32> to vector<8x64xf32>
    %c24_63 = arith.constant 24 : index
    %c0_64 = arith.constant 0 : index
    %194 = vector.load %arg11[%c24_63, %c0_64] : memref<64x128xf32, #tpu.memory_space<vmem>>, vector<8x64xf32>
    tpu.vector_store %arg11[%c24_63, %c0_64], %193 {strides = array<i32>} : memref<64x128xf32, #tpu.memory_space<vmem>>, vector<8x64xf32>,
    %195 = vector.extract_strided_slice %192 {offsets = [0, 64], sizes = [8, 64], strides = [1, 1]} : vector<8x128xf32> to vector<8x64xf32>
    %c32_65 = arith.constant 32 : index
    %c64_66 = arith.constant 64 : index
    %196 = vector.load %arg11[%c32_65, %c64_66] : memref<64x128xf32, #tpu.memory_space<vmem>>, vector<8x64xf32>
    tpu.vector_store %arg11[%c32_65, %c64_66], %195 {strides = array<i32>} : memref<64x128xf32, #tpu.memory_space<vmem>>, vector<8x64xf32>,
    %197 = arith.subf %189, %157 : vector<8x128xf32>
    %198 = arith.mulf %191, %197 : vector<8x128xf32>
    %199 = arith.addf %157, %198 : vector<8x128xf32>
    %c32_67 = arith.constant 32 : index
    %c0_68 = arith.constant 0 : index
    %200 = vector.load %arg10[%c32_67, %c0_68] : memref<64x384xf32, #tpu.memory_space<vmem>>, vector<8x384xf32>
    %c24_69 = arith.constant 24 : index
    %c0_70 = arith.constant 0 : index
    %201 = vector.load %arg10[%c24_69, %c0_70] : memref<64x384xf32, #tpu.memory_space<vmem>>, vector<8x384xf32>
    %202 = arith.select %18, %200, %201 : vector<8x384xi1>, vector<8x384xf32>
    %cst_71 = arith.constant dense<0.000000e+00> : vector<8x384xf32>
    %203 = tpu.matmul %199, %28, %cst_71 {dimension_numbers = #tpu.dot_dimension_numbers<[1], [0], [0], [1], [0, 0, 1, 1], [], []>} : vector<8x128xf32>, vector<128x384xf32>, vector<8x384xf32> -> vector<8x384xf32>
    %204 = vector.extract_strided_slice %202 {offsets = [0, 0], sizes = [8, 128], strides = [1, 1]} : vector<8x384xf32> to vector<8x128xf32>
    %205 = vector.extract_strided_slice %203 {offsets = [0, 0], sizes = [8, 128], strides = [1, 1]} : vector<8x384xf32> to vector<8x128xf32>
    %206 = arith.addf %204, %205 : vector<8x128xf32>
    %207 = arith.negf %206 : vector<8x128xf32>
    %208 = math.exp %207 : vector<8x128xf32>
    %cst_72 = arith.constant 1.000000e+00 : f32
    %209 = vector.broadcast %cst_72 : f32 to vector<8x128xf32>
    %210 = arith.addf %209, %208 : vector<8x128xf32>
    %211 = arith.divf %209, %210 : vector<8x128xf32>
    %212 = vector.extract_strided_slice %202 {offsets = [0, 128], sizes = [8, 128], strides = [1, 1]} : vector<8x384xf32> to vector<8x128xf32>
    %213 = vector.extract_strided_slice %203 {offsets = [0, 128], sizes = [8, 128], strides = [1, 1]} : vector<8x384xf32> to vector<8x128xf32>
    %214 = arith.addf %212, %213 : vector<8x128xf32>
    %215 = arith.negf %214 : vector<8x128xf32>
    %216 = math.exp %215 : vector<8x128xf32>
    %cst_73 = arith.constant 1.000000e+00 : f32
    %217 = vector.broadcast %cst_73 : f32 to vector<8x128xf32>
    %218 = arith.addf %217, %216 : vector<8x128xf32>
    %219 = arith.divf %217, %218 : vector<8x128xf32>
    %220 = vector.extract_strided_slice %202 {offsets = [0, 256], sizes = [8, 128], strides = [1, 1]} : vector<8x384xf32> to vector<8x128xf32>
    %221 = vector.extract_strided_slice %203 {offsets = [0, 256], sizes = [8, 128], strides = [1, 1]} : vector<8x384xf32> to vector<8x128xf32>
    %222 = vector.broadcast %30 : vector<1x128xf32> to vector<8x128xf32>
    %223 = arith.addf %221, %222 : vector<8x128xf32>
    %224 = arith.mulf %211, %223 : vector<8x128xf32>
    %225 = arith.addf %220, %224 : vector<8x128xf32>
    %226 = math.tanh %225 : vector<8x128xf32>
    %cst_74 = arith.constant 1.000000e+00 : f32
    %227 = vector.broadcast %cst_74 : f32 to vector<8x128xf32>
    %228 = arith.subf %227, %219 : vector<8x128xf32>
    %229 = arith.mulf %228, %226 : vector<8x128xf32>
    %230 = arith.mulf %219, %199 : vector<8x128xf32>
    %231 = arith.addf %229, %230 : vector<8x128xf32>
    %c4 = arith.constant 4 : index
    %c0_75 = arith.constant 0 : index
    %c0_76 = arith.constant 0 : index
    %232 = vector.load %arg2[%c4, %c0_75, %c0_76] : memref<8x8x128xf32, #tpu.memory_space<vmem>>, vector<1x8x128xf32>
    %233 = vector.shape_cast %232 : vector<1x8x128xf32> to vector<8x128xf32>
    %234 = arith.mulf %233, %231 : vector<8x128xf32>
    %235 = vector.extract_strided_slice %234 {offsets = [0, 0], sizes = [8, 64], strides = [1, 1]} : vector<8x128xf32> to vector<8x64xf32>
    %c32_77 = arith.constant 32 : index
    %c0_78 = arith.constant 0 : index
    %236 = vector.load %arg11[%c32_77, %c0_78] : memref<64x128xf32, #tpu.memory_space<vmem>>, vector<8x64xf32>
    tpu.vector_store %arg11[%c32_77, %c0_78], %235 {strides = array<i32>} : memref<64x128xf32, #tpu.memory_space<vmem>>, vector<8x64xf32>,
    %237 = vector.extract_strided_slice %234 {offsets = [0, 64], sizes = [8, 64], strides = [1, 1]} : vector<8x128xf32> to vector<8x64xf32>
    %c24_79 = arith.constant 24 : index
    %c64_80 = arith.constant 64 : index
    %238 = vector.load %arg11[%c24_79, %c64_80] : memref<64x128xf32, #tpu.memory_space<vmem>>, vector<8x64xf32>
    tpu.vector_store %arg11[%c24_79, %c64_80], %237 {strides = array<i32>} : memref<64x128xf32, #tpu.memory_space<vmem>>, vector<8x64xf32>,
    %239 = arith.subf %231, %199 : vector<8x128xf32>
    %240 = arith.mulf %233, %239 : vector<8x128xf32>
    %241 = arith.addf %199, %240 : vector<8x128xf32>
    %c40_81 = arith.constant 40 : index
    %c0_82 = arith.constant 0 : index
    %242 = vector.load %arg10[%c40_81, %c0_82] : memref<64x384xf32, #tpu.memory_space<vmem>>, vector<8x384xf32>
    %c16_83 = arith.constant 16 : index
    %c0_84 = arith.constant 0 : index
    %243 = vector.load %arg10[%c16_83, %c0_84] : memref<64x384xf32, #tpu.memory_space<vmem>>, vector<8x384xf32>
    %244 = arith.select %18, %242, %243 : vector<8x384xi1>, vector<8x384xf32>
    %cst_85 = arith.constant dense<0.000000e+00> : vector<8x384xf32>
    %245 = tpu.matmul %241, %28, %cst_85 {dimension_numbers = #tpu.dot_dimension_numbers<[1], [0], [0], [1], [0, 0, 1, 1], [], []>} : vector<8x128xf32>, vector<128x384xf32>, vector<8x384xf32> -> vector<8x384xf32>
    %246 = vector.extract_strided_slice %244 {offsets = [0, 0], sizes = [8, 128], strides = [1, 1]} : vector<8x384xf32> to vector<8x128xf32>
    %247 = vector.extract_strided_slice %245 {offsets = [0, 0], sizes = [8, 128], strides = [1, 1]} : vector<8x384xf32> to vector<8x128xf32>
    %248 = arith.addf %246, %247 : vector<8x128xf32>
    %249 = arith.negf %248 : vector<8x128xf32>
    %250 = math.exp %249 : vector<8x128xf32>
    %cst_86 = arith.constant 1.000000e+00 : f32
    %251 = vector.broadcast %cst_86 : f32 to vector<8x128xf32>
    %252 = arith.addf %251, %250 : vector<8x128xf32>
    %253 = arith.divf %251, %252 : vector<8x128xf32>
    %254 = vector.extract_strided_slice %244 {offsets = [0, 128], sizes = [8, 128], strides = [1, 1]} : vector<8x384xf32> to vector<8x128xf32>
    %255 = vector.extract_strided_slice %245 {offsets = [0, 128], sizes = [8, 128], strides = [1, 1]} : vector<8x384xf32> to vector<8x128xf32>
    %256 = arith.addf %254, %255 : vector<8x128xf32>
    %257 = arith.negf %256 : vector<8x128xf32>
    %258 = math.exp %257 : vector<8x128xf32>
    %cst_87 = arith.constant 1.000000e+00 : f32
    %259 = vector.broadcast %cst_87 : f32 to vector<8x128xf32>
    %260 = arith.addf %259, %258 : vector<8x128xf32>
    %261 = arith.divf %259, %260 : vector<8x128xf32>
    %262 = vector.extract_strided_slice %244 {offsets = [0, 256], sizes = [8, 128], strides = [1, 1]} : vector<8x384xf32> to vector<8x128xf32>
    %263 = vector.extract_strided_slice %245 {offsets = [0, 256], sizes = [8, 128], strides = [1, 1]} : vector<8x384xf32> to vector<8x128xf32>
    %264 = vector.broadcast %30 : vector<1x128xf32> to vector<8x128xf32>
    %265 = arith.addf %263, %264 : vector<8x128xf32>
    %266 = arith.mulf %253, %265 : vector<8x128xf32>
    %267 = arith.addf %262, %266 : vector<8x128xf32>
    %268 = math.tanh %267 : vector<8x128xf32>
    %cst_88 = arith.constant 1.000000e+00 : f32
    %269 = vector.broadcast %cst_88 : f32 to vector<8x128xf32>
    %270 = arith.subf %269, %261 : vector<8x128xf32>
    %271 = arith.mulf %270, %268 : vector<8x128xf32>
    %272 = arith.mulf %261, %241 : vector<8x128xf32>
    %273 = arith.addf %271, %272 : vector<8x128xf32>
    %c5 = arith.constant 5 : index
    %c0_89 = arith.constant 0 : index
    %c0_90 = arith.constant 0 : index
    %274 = vector.load %arg2[%c5, %c0_89, %c0_90] : memref<8x8x128xf32, #tpu.memory_space<vmem>>, vector<1x8x128xf32>
    %275 = vector.shape_cast %274 : vector<1x8x128xf32> to vector<8x128xf32>
    %276 = arith.mulf %275, %273 : vector<8x128xf32>
    %277 = vector.extract_strided_slice %276 {offsets = [0, 0], sizes = [8, 64], strides = [1, 1]} : vector<8x128xf32> to vector<8x64xf32>
    %c40_91 = arith.constant 40 : index
    %c0_92 = arith.constant 0 : index
    %278 = vector.load %arg11[%c40_91, %c0_92] : memref<64x128xf32, #tpu.memory_space<vmem>>, vector<8x64xf32>
    tpu.vector_store %arg11[%c40_91, %c0_92], %277 {strides = array<i32>} : memref<64x128xf32, #tpu.memory_space<vmem>>, vector<8x64xf32>,
    %279 = vector.extract_strided_slice %276 {offsets = [0, 64], sizes = [8, 64], strides = [1, 1]} : vector<8x128xf32> to vector<8x64xf32>
    %c16_93 = arith.constant 16 : index
    %c64_94 = arith.constant 64 : index
    %280 = vector.load %arg11[%c16_93, %c64_94] : memref<64x128xf32, #tpu.memory_space<vmem>>, vector<8x64xf32>
    tpu.vector_store %arg11[%c16_93, %c64_94], %279 {strides = array<i32>} : memref<64x128xf32, #tpu.memory_space<vmem>>, vector<8x64xf32>,
    %281 = arith.subf %273, %241 : vector<8x128xf32>
    %282 = arith.mulf %275, %281 : vector<8x128xf32>
    %283 = arith.addf %241, %282 : vector<8x128xf32>
    %c48_95 = arith.constant 48 : index
    %c0_96 = arith.constant 0 : index
    %284 = vector.load %arg10[%c48_95, %c0_96] : memref<64x384xf32, #tpu.memory_space<vmem>>, vector<8x384xf32>
    %c8_97 = arith.constant 8 : index
    %c0_98 = arith.constant 0 : index
    %285 = vector.load %arg10[%c8_97, %c0_98] : memref<64x384xf32, #tpu.memory_space<vmem>>, vector<8x384xf32>
    %286 = arith.select %18, %284, %285 : vector<8x384xi1>, vector<8x384xf32>
    %cst_99 = arith.constant dense<0.000000e+00> : vector<8x384xf32>
    %287 = tpu.matmul %283, %28, %cst_99 {dimension_numbers = #tpu.dot_dimension_numbers<[1], [0], [0], [1], [0, 0, 1, 1], [], []>} : vector<8x128xf32>, vector<128x384xf32>, vector<8x384xf32> -> vector<8x384xf32>
    %288 = vector.extract_strided_slice %286 {offsets = [0, 0], sizes = [8, 128], strides = [1, 1]} : vector<8x384xf32> to vector<8x128xf32>
    %289 = vector.extract_strided_slice %287 {offsets = [0, 0], sizes = [8, 128], strides = [1, 1]} : vector<8x384xf32> to vector<8x128xf32>
    %290 = arith.addf %288, %289 : vector<8x128xf32>
    %291 = arith.negf %290 : vector<8x128xf32>
    %292 = math.exp %291 : vector<8x128xf32>
    %cst_100 = arith.constant 1.000000e+00 : f32
    %293 = vector.broadcast %cst_100 : f32 to vector<8x128xf32>
    %294 = arith.addf %293, %292 : vector<8x128xf32>
    %295 = arith.divf %293, %294 : vector<8x128xf32>
    %296 = vector.extract_strided_slice %286 {offsets = [0, 128], sizes = [8, 128], strides = [1, 1]} : vector<8x384xf32> to vector<8x128xf32>
    %297 = vector.extract_strided_slice %287 {offsets = [0, 128], sizes = [8, 128], strides = [1, 1]} : vector<8x384xf32> to vector<8x128xf32>
    %298 = arith.addf %296, %297 : vector<8x128xf32>
    %299 = arith.negf %298 : vector<8x128xf32>
    %300 = math.exp %299 : vector<8x128xf32>
    %cst_101 = arith.constant 1.000000e+00 : f32
    %301 = vector.broadcast %cst_101 : f32 to vector<8x128xf32>
    %302 = arith.addf %301, %300 : vector<8x128xf32>
    %303 = arith.divf %301, %302 : vector<8x128xf32>
    %304 = vector.extract_strided_slice %286 {offsets = [0, 256], sizes = [8, 128], strides = [1, 1]} : vector<8x384xf32> to vector<8x128xf32>
    %305 = vector.extract_strided_slice %287 {offsets = [0, 256], sizes = [8, 128], strides = [1, 1]} : vector<8x384xf32> to vector<8x128xf32>
    %306 = vector.broadcast %30 : vector<1x128xf32> to vector<8x128xf32>
    %307 = arith.addf %305, %306 : vector<8x128xf32>
    %308 = arith.mulf %295, %307 : vector<8x128xf32>
    %309 = arith.addf %304, %308 : vector<8x128xf32>
    %310 = math.tanh %309 : vector<8x128xf32>
    %cst_102 = arith.constant 1.000000e+00 : f32
    %311 = vector.broadcast %cst_102 : f32 to vector<8x128xf32>
    %312 = arith.subf %311, %303 : vector<8x128xf32>
    %313 = arith.mulf %312, %310 : vector<8x128xf32>
    %314 = arith.mulf %303, %283 : vector<8x128xf32>
    %315 = arith.addf %313, %314 : vector<8x128xf32>
    %c6 = arith.constant 6 : index
    %c0_103 = arith.constant 0 : index
    %c0_104 = arith.constant 0 : index
    %316 = vector.load %arg2[%c6, %c0_103, %c0_104] : memref<8x8x128xf32, #tpu.memory_space<vmem>>, vector<1x8x128xf32>
    %317 = vector.shape_cast %316 : vector<1x8x128xf32> to vector<8x128xf32>
    %318 = arith.mulf %317, %315 : vector<8x128xf32>
    %319 = vector.extract_strided_slice %318 {offsets = [0, 0], sizes = [8, 64], strides = [1, 1]} : vector<8x128xf32> to vector<8x64xf32>
    %c48_105 = arith.constant 48 : index
    %c0_106 = arith.constant 0 : index
    %320 = vector.load %arg11[%c48_105, %c0_106] : memref<64x128xf32, #tpu.memory_space<vmem>>, vector<8x64xf32>
    tpu.vector_store %arg11[%c48_105, %c0_106], %319 {strides = array<i32>} : memref<64x128xf32, #tpu.memory_space<vmem>>, vector<8x64xf32>,
    %321 = vector.extract_strided_slice %318 {offsets = [0, 64], sizes = [8, 64], strides = [1, 1]} : vector<8x128xf32> to vector<8x64xf32>
    %c8_107 = arith.constant 8 : index
    %c64_108 = arith.constant 64 : index
    %322 = vector.load %arg11[%c8_107, %c64_108] : memref<64x128xf32, #tpu.memory_space<vmem>>, vector<8x64xf32>
    tpu.vector_store %arg11[%c8_107, %c64_108], %321 {strides = array<i32>} : memref<64x128xf32, #tpu.memory_space<vmem>>, vector<8x64xf32>,
    %323 = arith.subf %315, %283 : vector<8x128xf32>
    %324 = arith.mulf %317, %323 : vector<8x128xf32>
    %325 = arith.addf %283, %324 : vector<8x128xf32>
    %c56_109 = arith.constant 56 : index
    %c0_110 = arith.constant 0 : index
    %326 = vector.load %arg10[%c56_109, %c0_110] : memref<64x384xf32, #tpu.memory_space<vmem>>, vector<8x384xf32>
    %c0_111 = arith.constant 0 : index
    %c0_112 = arith.constant 0 : index
    %327 = vector.load %arg10[%c0_111, %c0_112] : memref<64x384xf32, #tpu.memory_space<vmem>>, vector<8x384xf32>
    %328 = arith.select %18, %326, %327 : vector<8x384xi1>, vector<8x384xf32>
    %cst_113 = arith.constant dense<0.000000e+00> : vector<8x384xf32>
    %329 = tpu.matmul %325, %28, %cst_113 {dimension_numbers = #tpu.dot_dimension_numbers<[1], [0], [0], [1], [0, 0, 1, 1], [], []>} : vector<8x128xf32>, vector<128x384xf32>, vector<8x384xf32> -> vector<8x384xf32>
    %330 = vector.extract_strided_slice %328 {offsets = [0, 0], sizes = [8, 128], strides = [1, 1]} : vector<8x384xf32> to vector<8x128xf32>
    %331 = vector.extract_strided_slice %329 {offsets = [0, 0], sizes = [8, 128], strides = [1, 1]} : vector<8x384xf32> to vector<8x128xf32>
    %332 = arith.addf %330, %331 : vector<8x128xf32>
    %333 = arith.negf %332 : vector<8x128xf32>
    %334 = math.exp %333 : vector<8x128xf32>
    %cst_114 = arith.constant 1.000000e+00 : f32
    %335 = vector.broadcast %cst_114 : f32 to vector<8x128xf32>
    %336 = arith.addf %335, %334 : vector<8x128xf32>
    %337 = arith.divf %335, %336 : vector<8x128xf32>
    %338 = vector.extract_strided_slice %328 {offsets = [0, 128], sizes = [8, 128], strides = [1, 1]} : vector<8x384xf32> to vector<8x128xf32>
    %339 = vector.extract_strided_slice %329 {offsets = [0, 128], sizes = [8, 128], strides = [1, 1]} : vector<8x384xf32> to vector<8x128xf32>
    %340 = arith.addf %338, %339 : vector<8x128xf32>
    %341 = arith.negf %340 : vector<8x128xf32>
    %342 = math.exp %341 : vector<8x128xf32>
    %cst_115 = arith.constant 1.000000e+00 : f32
    %343 = vector.broadcast %cst_115 : f32 to vector<8x128xf32>
    %344 = arith.addf %343, %342 : vector<8x128xf32>
    %345 = arith.divf %343, %344 : vector<8x128xf32>
    %346 = vector.extract_strided_slice %328 {offsets = [0, 256], sizes = [8, 128], strides = [1, 1]} : vector<8x384xf32> to vector<8x128xf32>
    %347 = vector.extract_strided_slice %329 {offsets = [0, 256], sizes = [8, 128], strides = [1, 1]} : vector<8x384xf32> to vector<8x128xf32>
    %348 = vector.broadcast %30 : vector<1x128xf32> to vector<8x128xf32>
    %349 = arith.addf %347, %348 : vector<8x128xf32>
    %350 = arith.mulf %337, %349 : vector<8x128xf32>
    %351 = arith.addf %346, %350 : vector<8x128xf32>
    %352 = math.tanh %351 : vector<8x128xf32>
    %cst_116 = arith.constant 1.000000e+00 : f32
    %353 = vector.broadcast %cst_116 : f32 to vector<8x128xf32>
    %354 = arith.subf %353, %345 : vector<8x128xf32>
    %355 = arith.mulf %354, %352 : vector<8x128xf32>
    %356 = arith.mulf %345, %325 : vector<8x128xf32>
    %357 = arith.addf %355, %356 : vector<8x128xf32>
    %c7 = arith.constant 7 : index
    %c0_117 = arith.constant 0 : index
    %c0_118 = arith.constant 0 : index
    %358 = vector.load %arg2[%c7, %c0_117, %c0_118] : memref<8x8x128xf32, #tpu.memory_space<vmem>>, vector<1x8x128xf32>
    %359 = vector.shape_cast %358 : vector<1x8x128xf32> to vector<8x128xf32>
    %360 = arith.mulf %359, %357 : vector<8x128xf32>
    %361 = vector.extract_strided_slice %360 {offsets = [0, 0], sizes = [8, 64], strides = [1, 1]} : vector<8x128xf32> to vector<8x64xf32>
    %c56_119 = arith.constant 56 : index
    %c0_120 = arith.constant 0 : index
    %362 = vector.load %arg11[%c56_119, %c0_120] : memref<64x128xf32, #tpu.memory_space<vmem>>, vector<8x64xf32>
    tpu.vector_store %arg11[%c56_119, %c0_120], %361 {strides = array<i32>} : memref<64x128xf32, #tpu.memory_space<vmem>>, vector<8x64xf32>,
    %363 = vector.extract_strided_slice %360 {offsets = [0, 64], sizes = [8, 64], strides = [1, 1]} : vector<8x128xf32> to vector<8x64xf32>
    %c0_121 = arith.constant 0 : index
    %c64_122 = arith.constant 64 : index
    %364 = vector.load %arg11[%c0_121, %c64_122] : memref<64x128xf32, #tpu.memory_space<vmem>>, vector<8x64xf32>
    tpu.vector_store %arg11[%c0_121, %c64_122], %363 {strides = array<i32>} : memref<64x128xf32, #tpu.memory_space<vmem>>, vector<8x64xf32>,
    %c0_123 = arith.constant 0 : index
    %c0_124 = arith.constant 0 : index
    %365 = vector.load %arg11[%c0_123, %c0_124] : memref<64x128xf32, #tpu.memory_space<vmem>>, vector<64x128xf32>
    %c0_125 = arith.constant 0 : index
    %c0_126 = arith.constant 0 : index
    %c0_127 = arith.constant 0 : index
    %366 = vector.load %arg4[%c0_125, %c0_126, %c0_127] : memref<1x128x384xf32, #tpu.memory_space<vmem>>, vector<1x128x384xf32>
    %367 = vector.shape_cast %366 : vector<1x128x384xf32> to vector<128x384xf32>
    %cst_128 = arith.constant dense<0.000000e+00> : vector<64x384xf32>
    %368 = tpu.matmul %365, %367, %cst_128 {dimension_numbers = #tpu.dot_dimension_numbers<[1], [0], [0], [1], [0, 0, 1, 1], [], []>} : vector<64x128xf32>, vector<128x384xf32>, vector<64x384xf32> -> vector<64x384xf32>
    %c1_129 = arith.constant 1 : index
    %c0_130 = arith.constant 0 : index
    %c0_131 = arith.constant 0 : index
    %369 = vector.load %arg6[%c1_129, %c0_130, %c0_131] : memref<2x1x384xf32, #tpu.memory_space<vmem>>, vector<1x1x384xf32>
    %370 = vector.shape_cast %369 : vector<1x1x384xf32> to vector<1x384xf32>
    %371 = vector.broadcast %370 : vector<1x384xf32> to vector<64x384xf32>
    %372 = arith.addf %368, %371 : vector<64x384xf32>
    %c0_132 = arith.constant 0 : index
    %c0_133 = arith.constant 0 : index
    %373 = vector.load %arg10[%c0_132, %c0_133] : memref<64x384xf32, #tpu.memory_space<vmem>>, vector<64x384xf32>
    tpu.vector_store %arg10[%c0_132, %c0_133], %372 {strides = array<i32>} : memref<64x384xf32, #tpu.memory_space<vmem>>, vector<64x384xf32>,
    %c1_134 = arith.constant 1 : index
    %c0_135 = arith.constant 0 : index
    %c0_136 = arith.constant 0 : index
    %374 = vector.load %arg5[%c1_134, %c0_135, %c0_136] : memref<2x128x384xf32, #tpu.memory_space<vmem>>, vector<1x128x384xf32>
    %375 = vector.shape_cast %374 : vector<1x128x384xf32> to vector<128x384xf32>
    %c1_137 = arith.constant 1 : index
    %c0_138 = arith.constant 0 : index
    %c0_139 = arith.constant 0 : index
    %376 = vector.load %arg7[%c1_137, %c0_138, %c0_139] : memref<2x1x128xf32, #tpu.memory_space<vmem>>, vector<1x1x128xf32>
    %377 = vector.shape_cast %376 : vector<1x1x128xf32> to vector<1x128xf32>
    %cst_140 = arith.constant 0.000000e+00 : f32
    %378 = vector.broadcast %cst_140 : f32 to vector<8x128xf32>
    %c0_141 = arith.constant 0 : index
    %c0_142 = arith.constant 0 : index
    %379 = vector.load %arg10[%c0_141, %c0_142] : memref<64x384xf32, #tpu.memory_space<vmem>>, vector<8x384xf32>
    %c56_143 = arith.constant 56 : index
    %c0_144 = arith.constant 0 : index
    %380 = vector.load %arg10[%c56_143, %c0_144] : memref<64x384xf32, #tpu.memory_space<vmem>>, vector<8x384xf32>
    %381 = arith.select %18, %379, %380 : vector<8x384xi1>, vector<8x384xf32>
    %cst_145 = arith.constant dense<0.000000e+00> : vector<8x384xf32>
    %382 = tpu.matmul %378, %375, %cst_145 {dimension_numbers = #tpu.dot_dimension_numbers<[1], [0], [0], [1], [0, 0, 1, 1], [], []>} : vector<8x128xf32>, vector<128x384xf32>, vector<8x384xf32> -> vector<8x384xf32>
    %383 = vector.extract_strided_slice %381 {offsets = [0, 0], sizes = [8, 128], strides = [1, 1]} : vector<8x384xf32> to vector<8x128xf32>
    %384 = vector.extract_strided_slice %382 {offsets = [0, 0], sizes = [8, 128], strides = [1, 1]} : vector<8x384xf32> to vector<8x128xf32>
    %385 = arith.addf %383, %384 : vector<8x128xf32>
    %386 = arith.negf %385 : vector<8x128xf32>
    %387 = math.exp %386 : vector<8x128xf32>
    %cst_146 = arith.constant 1.000000e+00 : f32
    %388 = vector.broadcast %cst_146 : f32 to vector<8x128xf32>
    %389 = arith.addf %388, %387 : vector<8x128xf32>
    %390 = arith.divf %388, %389 : vector<8x128xf32>
    %391 = vector.extract_strided_slice %381 {offsets = [0, 128], sizes = [8, 128], strides = [1, 1]} : vector<8x384xf32> to vector<8x128xf32>
    %392 = vector.extract_strided_slice %382 {offsets = [0, 128], sizes = [8, 128], strides = [1, 1]} : vector<8x384xf32> to vector<8x128xf32>
    %393 = arith.addf %391, %392 : vector<8x128xf32>
    %394 = arith.negf %393 : vector<8x128xf32>
    %395 = math.exp %394 : vector<8x128xf32>
    %cst_147 = arith.constant 1.000000e+00 : f32
    %396 = vector.broadcast %cst_147 : f32 to vector<8x128xf32>
    %397 = arith.addf %396, %395 : vector<8x128xf32>
    %398 = arith.divf %396, %397 : vector<8x128xf32>
    %399 = vector.extract_strided_slice %381 {offsets = [0, 256], sizes = [8, 128], strides = [1, 1]} : vector<8x384xf32> to vector<8x128xf32>
    %400 = vector.extract_strided_slice %382 {offsets = [0, 256], sizes = [8, 128], strides = [1, 1]} : vector<8x384xf32> to vector<8x128xf32>
    %401 = vector.broadcast %377 : vector<1x128xf32> to vector<8x128xf32>
    %402 = arith.addf %400, %401 : vector<8x128xf32>
    %403 = arith.mulf %390, %402 : vector<8x128xf32>
    %404 = arith.addf %399, %403 : vector<8x128xf32>
    %405 = math.tanh %404 : vector<8x128xf32>
    %cst_148 = arith.constant 1.000000e+00 : f32
    %406 = vector.broadcast %cst_148 : f32 to vector<8x128xf32>
    %407 = arith.subf %406, %398 : vector<8x128xf32>
    %408 = arith.mulf %407, %405 : vector<8x128xf32>
    %409 = arith.mulf %398, %378 : vector<8x128xf32>
    %410 = arith.addf %408, %409 : vector<8x128xf32>
    %c0_149 = arith.constant 0 : index
    %c0_150 = arith.constant 0 : index
    %c0_151 = arith.constant 0 : index
    %411 = vector.load %arg2[%c0_149, %c0_150, %c0_151] : memref<8x8x128xf32, #tpu.memory_space<vmem>>, vector<1x8x128xf32>
    %412 = vector.shape_cast %411 : vector<1x8x128xf32> to vector<8x128xf32>
    %413 = arith.mulf %412, %410 : vector<8x128xf32>
    %414 = vector.extract_strided_slice %413 {offsets = [0, 0], sizes = [8, 64], strides = [1, 1]} : vector<8x128xf32> to vector<8x64xf32>
    %c0_152 = arith.constant 0 : index
    %c0_153 = arith.constant 0 : index
    %415 = vector.load %arg8[%c0_152, %c0_153] : memref<64x128xf32, #tpu.memory_space<vmem>>, vector<8x64xf32>
    tpu.vector_store %arg8[%c0_152, %c0_153], %414 {strides = array<i32>} : memref<64x128xf32, #tpu.memory_space<vmem>>, vector<8x64xf32>,
    %416 = vector.extract_strided_slice %413 {offsets = [0, 64], sizes = [8, 64], strides = [1, 1]} : vector<8x128xf32> to vector<8x64xf32>
    %c56_154 = arith.constant 56 : index
    %c64_155 = arith.constant 64 : index
    %417 = vector.load %arg8[%c56_154, %c64_155] : memref<64x128xf32, #tpu.memory_space<vmem>>, vector<8x64xf32>
    tpu.vector_store %arg8[%c56_154, %c64_155], %416 {strides = array<i32>} : memref<64x128xf32, #tpu.memory_space<vmem>>, vector<8x64xf32>,
    %418 = arith.subf %410, %378 : vector<8x128xf32>
    %419 = arith.mulf %412, %418 : vector<8x128xf32>
    %420 = arith.addf %378, %419 : vector<8x128xf32>
    %c8_156 = arith.constant 8 : index
    %c0_157 = arith.constant 0 : index
    %421 = vector.load %arg10[%c8_156, %c0_157] : memref<64x384xf32, #tpu.memory_space<vmem>>, vector<8x384xf32>
    %c48_158 = arith.constant 48 : index
    %c0_159 = arith.constant 0 : index
    %422 = vector.load %arg10[%c48_158, %c0_159] : memref<64x384xf32, #tpu.memory_space<vmem>>, vector<8x384xf32>
    %423 = arith.select %18, %421, %422 : vector<8x384xi1>, vector<8x384xf32>
    %cst_160 = arith.constant dense<0.000000e+00> : vector<8x384xf32>
    %424 = tpu.matmul %420, %375, %cst_160 {dimension_numbers = #tpu.dot_dimension_numbers<[1], [0], [0], [1], [0, 0, 1, 1], [], []>} : vector<8x128xf32>, vector<128x384xf32>, vector<8x384xf32> -> vector<8x384xf32>
    %425 = vector.extract_strided_slice %423 {offsets = [0, 0], sizes = [8, 128], strides = [1, 1]} : vector<8x384xf32> to vector<8x128xf32>
    %426 = vector.extract_strided_slice %424 {offsets = [0, 0], sizes = [8, 128], strides = [1, 1]} : vector<8x384xf32> to vector<8x128xf32>
    %427 = arith.addf %425, %426 : vector<8x128xf32>
    %428 = arith.negf %427 : vector<8x128xf32>
    %429 = math.exp %428 : vector<8x128xf32>
    %cst_161 = arith.constant 1.000000e+00 : f32
    %430 = vector.broadcast %cst_161 : f32 to vector<8x128xf32>
    %431 = arith.addf %430, %429 : vector<8x128xf32>
    %432 = arith.divf %430, %431 : vector<8x128xf32>
    %433 = vector.extract_strided_slice %423 {offsets = [0, 128], sizes = [8, 128], strides = [1, 1]} : vector<8x384xf32> to vector<8x128xf32>
    %434 = vector.extract_strided_slice %424 {offsets = [0, 128], sizes = [8, 128], strides = [1, 1]} : vector<8x384xf32> to vector<8x128xf32>
    %435 = arith.addf %433, %434 : vector<8x128xf32>
    %436 = arith.negf %435 : vector<8x128xf32>
    %437 = math.exp %436 : vector<8x128xf32>
    %cst_162 = arith.constant 1.000000e+00 : f32
    %438 = vector.broadcast %cst_162 : f32 to vector<8x128xf32>
    %439 = arith.addf %438, %437 : vector<8x128xf32>
    %440 = arith.divf %438, %439 : vector<8x128xf32>
    %441 = vector.extract_strided_slice %423 {offsets = [0, 256], sizes = [8, 128], strides = [1, 1]} : vector<8x384xf32> to vector<8x128xf32>
    %442 = vector.extract_strided_slice %424 {offsets = [0, 256], sizes = [8, 128], strides = [1, 1]} : vector<8x384xf32> to vector<8x128xf32>
    %443 = vector.broadcast %377 : vector<1x128xf32> to vector<8x128xf32>
    %444 = arith.addf %442, %443 : vector<8x128xf32>
    %445 = arith.mulf %432, %444 : vector<8x128xf32>
    %446 = arith.addf %441, %445 : vector<8x128xf32>
    %447 = math.tanh %446 : vector<8x128xf32>
    %cst_163 = arith.constant 1.000000e+00 : f32
    %448 = vector.broadcast %cst_163 : f32 to vector<8x128xf32>
    %449 = arith.subf %448, %440 : vector<8x128xf32>
    %450 = arith.mulf %449, %447 : vector<8x128xf32>
    %451 = arith.mulf %440, %420 : vector<8x128xf32>
    %452 = arith.addf %450, %451 : vector<8x128xf32>
    %c1_164 = arith.constant 1 : index
    %c0_165 = arith.constant 0 : index
    %c0_166 = arith.constant 0 : index
    %453 = vector.load %arg2[%c1_164, %c0_165, %c0_166] : memref<8x8x128xf32, #tpu.memory_space<vmem>>, vector<1x8x128xf32>
    %454 = vector.shape_cast %453 : vector<1x8x128xf32> to vector<8x128xf32>
    %455 = arith.mulf %454, %452 : vector<8x128xf32>
    %456 = vector.extract_strided_slice %455 {offsets = [0, 0], sizes = [8, 64], strides = [1, 1]} : vector<8x128xf32> to vector<8x64xf32>
    %c8_167 = arith.constant 8 : index
    %c0_168 = arith.constant 0 : index
    %457 = vector.load %arg8[%c8_167, %c0_168] : memref<64x128xf32, #tpu.memory_space<vmem>>, vector<8x64xf32>
    tpu.vector_store %arg8[%c8_167, %c0_168], %456 {strides = array<i32>} : memref<64x128xf32, #tpu.memory_space<vmem>>, vector<8x64xf32>,
    %458 = vector.extract_strided_slice %455 {offsets = [0, 64], sizes = [8, 64], strides = [1, 1]} : vector<8x128xf32> to vector<8x64xf32>
    %c48_169 = arith.constant 48 : index
    %c64_170 = arith.constant 64 : index
    %459 = vector.load %arg8[%c48_169, %c64_170] : memref<64x128xf32, #tpu.memory_space<vmem>>, vector<8x64xf32>
    tpu.vector_store %arg8[%c48_169, %c64_170], %458 {strides = array<i32>} : memref<64x128xf32, #tpu.memory_space<vmem>>, vector<8x64xf32>,
    %460 = arith.subf %452, %420 : vector<8x128xf32>
    %461 = arith.mulf %454, %460 : vector<8x128xf32>
    %462 = arith.addf %420, %461 : vector<8x128xf32>
    %c16_171 = arith.constant 16 : index
    %c0_172 = arith.constant 0 : index
    %463 = vector.load %arg10[%c16_171, %c0_172] : memref<64x384xf32, #tpu.memory_space<vmem>>, vector<8x384xf32>
    %c40_173 = arith.constant 40 : index
    %c0_174 = arith.constant 0 : index
    %464 = vector.load %arg10[%c40_173, %c0_174] : memref<64x384xf32, #tpu.memory_space<vmem>>, vector<8x384xf32>
    %465 = arith.select %18, %463, %464 : vector<8x384xi1>, vector<8x384xf32>
    %cst_175 = arith.constant dense<0.000000e+00> : vector<8x384xf32>
    %466 = tpu.matmul %462, %375, %cst_175 {dimension_numbers = #tpu.dot_dimension_numbers<[1], [0], [0], [1], [0, 0, 1, 1], [], []>} : vector<8x128xf32>, vector<128x384xf32>, vector<8x384xf32> -> vector<8x384xf32>
    %467 = vector.extract_strided_slice %465 {offsets = [0, 0], sizes = [8, 128], strides = [1, 1]} : vector<8x384xf32> to vector<8x128xf32>
    %468 = vector.extract_strided_slice %466 {offsets = [0, 0], sizes = [8, 128], strides = [1, 1]} : vector<8x384xf32> to vector<8x128xf32>
    %469 = arith.addf %467, %468 : vector<8x128xf32>
    %470 = arith.negf %469 : vector<8x128xf32>
    %471 = math.exp %470 : vector<8x128xf32>
    %cst_176 = arith.constant 1.000000e+00 : f32
    %472 = vector.broadcast %cst_176 : f32 to vector<8x128xf32>
    %473 = arith.addf %472, %471 : vector<8x128xf32>
    %474 = arith.divf %472, %473 : vector<8x128xf32>
    %475 = vector.extract_strided_slice %465 {offsets = [0, 128], sizes = [8, 128], strides = [1, 1]} : vector<8x384xf32> to vector<8x128xf32>
    %476 = vector.extract_strided_slice %466 {offsets = [0, 128], sizes = [8, 128], strides = [1, 1]} : vector<8x384xf32> to vector<8x128xf32>
    %477 = arith.addf %475, %476 : vector<8x128xf32>
    %478 = arith.negf %477 : vector<8x128xf32>
    %479 = math.exp %478 : vector<8x128xf32>
    %cst_177 = arith.constant 1.000000e+00 : f32
    %480 = vector.broadcast %cst_177 : f32 to vector<8x128xf32>
    %481 = arith.addf %480, %479 : vector<8x128xf32>
    %482 = arith.divf %480, %481 : vector<8x128xf32>
    %483 = vector.extract_strided_slice %465 {offsets = [0, 256], sizes = [8, 128], strides = [1, 1]} : vector<8x384xf32> to vector<8x128xf32>
    %484 = vector.extract_strided_slice %466 {offsets = [0, 256], sizes = [8, 128], strides = [1, 1]} : vector<8x384xf32> to vector<8x128xf32>
    %485 = vector.broadcast %377 : vector<1x128xf32> to vector<8x128xf32>
    %486 = arith.addf %484, %485 : vector<8x128xf32>
    %487 = arith.mulf %474, %486 : vector<8x128xf32>
    %488 = arith.addf %483, %487 : vector<8x128xf32>
    %489 = math.tanh %488 : vector<8x128xf32>
    %cst_178 = arith.constant 1.000000e+00 : f32
    %490 = vector.broadcast %cst_178 : f32 to vector<8x128xf32>
    %491 = arith.subf %490, %482 : vector<8x128xf32>
    %492 = arith.mulf %491, %489 : vector<8x128xf32>
    %493 = arith.mulf %482, %462 : vector<8x128xf32>
    %494 = arith.addf %492, %493 : vector<8x128xf32>
    %c2_179 = arith.constant 2 : index
    %c0_180 = arith.constant 0 : index
    %c0_181 = arith.constant 0 : index
    %495 = vector.load %arg2[%c2_179, %c0_180, %c0_181] : memref<8x8x128xf32, #tpu.memory_space<vmem>>, vector<1x8x128xf32>
    %496 = vector.shape_cast %495 : vector<1x8x128xf32> to vector<8x128xf32>
    %497 = arith.mulf %496, %494 : vector<8x128xf32>
    %498 = vector.extract_strided_slice %497 {offsets = [0, 0], sizes = [8, 64], strides = [1, 1]} : vector<8x128xf32> to vector<8x64xf32>
    %c16_182 = arith.constant 16 : index
    %c0_183 = arith.constant 0 : index
    %499 = vector.load %arg8[%c16_182, %c0_183] : memref<64x128xf32, #tpu.memory_space<vmem>>, vector<8x64xf32>
    tpu.vector_store %arg8[%c16_182, %c0_183], %498 {strides = array<i32>} : memref<64x128xf32, #tpu.memory_space<vmem>>, vector<8x64xf32>,
    %500 = vector.extract_strided_slice %497 {offsets = [0, 64], sizes = [8, 64], strides = [1, 1]} : vector<8x128xf32> to vector<8x64xf32>
    %c40_184 = arith.constant 40 : index
    %c64_185 = arith.constant 64 : index
    %501 = vector.load %arg8[%c40_184, %c64_185] : memref<64x128xf32, #tpu.memory_space<vmem>>, vector<8x64xf32>
    tpu.vector_store %arg8[%c40_184, %c64_185], %500 {strides = array<i32>} : memref<64x128xf32, #tpu.memory_space<vmem>>, vector<8x64xf32>,
    %502 = arith.subf %494, %462 : vector<8x128xf32>
    %503 = arith.mulf %496, %502 : vector<8x128xf32>
    %504 = arith.addf %462, %503 : vector<8x128xf32>
    %c24_186 = arith.constant 24 : index
    %c0_187 = arith.constant 0 : index
    %505 = vector.load %arg10[%c24_186, %c0_187] : memref<64x384xf32, #tpu.memory_space<vmem>>, vector<8x384xf32>
    %c32_188 = arith.constant 32 : index
    %c0_189 = arith.constant 0 : index
    %506 = vector.load %arg10[%c32_188, %c0_189] : memref<64x384xf32, #tpu.memory_space<vmem>>, vector<8x384xf32>
    %507 = arith.select %18, %505, %506 : vector<8x384xi1>, vector<8x384xf32>
    %cst_190 = arith.constant dense<0.000000e+00> : vector<8x384xf32>
    %508 = tpu.matmul %504, %375, %cst_190 {dimension_numbers = #tpu.dot_dimension_numbers<[1], [0], [0], [1], [0, 0, 1, 1], [], []>} : vector<8x128xf32>, vector<128x384xf32>, vector<8x384xf32> -> vector<8x384xf32>
    %509 = vector.extract_strided_slice %507 {offsets = [0, 0], sizes = [8, 128], strides = [1, 1]} : vector<8x384xf32> to vector<8x128xf32>
    %510 = vector.extract_strided_slice %508 {offsets = [0, 0], sizes = [8, 128], strides = [1, 1]} : vector<8x384xf32> to vector<8x128xf32>
    %511 = arith.addf %509, %510 : vector<8x128xf32>
    %512 = arith.negf %511 : vector<8x128xf32>
    %513 = math.exp %512 : vector<8x128xf32>
    %cst_191 = arith.constant 1.000000e+00 : f32
    %514 = vector.broadcast %cst_191 : f32 to vector<8x128xf32>
    %515 = arith.addf %514, %513 : vector<8x128xf32>
    %516 = arith.divf %514, %515 : vector<8x128xf32>
    %517 = vector.extract_strided_slice %507 {offsets = [0, 128], sizes = [8, 128], strides = [1, 1]} : vector<8x384xf32> to vector<8x128xf32>
    %518 = vector.extract_strided_slice %508 {offsets = [0, 128], sizes = [8, 128], strides = [1, 1]} : vector<8x384xf32> to vector<8x128xf32>
    %519 = arith.addf %517, %518 : vector<8x128xf32>
    %520 = arith.negf %519 : vector<8x128xf32>
    %521 = math.exp %520 : vector<8x128xf32>
    %cst_192 = arith.constant 1.000000e+00 : f32
    %522 = vector.broadcast %cst_192 : f32 to vector<8x128xf32>
    %523 = arith.addf %522, %521 : vector<8x128xf32>
    %524 = arith.divf %522, %523 : vector<8x128xf32>
    %525 = vector.extract_strided_slice %507 {offsets = [0, 256], sizes = [8, 128], strides = [1, 1]} : vector<8x384xf32> to vector<8x128xf32>
    %526 = vector.extract_strided_slice %508 {offsets = [0, 256], sizes = [8, 128], strides = [1, 1]} : vector<8x384xf32> to vector<8x128xf32>
    %527 = vector.broadcast %377 : vector<1x128xf32> to vector<8x128xf32>
    %528 = arith.addf %526, %527 : vector<8x128xf32>
    %529 = arith.mulf %516, %528 : vector<8x128xf32>
    %530 = arith.addf %525, %529 : vector<8x128xf32>
    %531 = math.tanh %530 : vector<8x128xf32>
    %cst_193 = arith.constant 1.000000e+00 : f32
    %532 = vector.broadcast %cst_193 : f32 to vector<8x128xf32>
    %533 = arith.subf %532, %524 : vector<8x128xf32>
    %534 = arith.mulf %533, %531 : vector<8x128xf32>
    %535 = arith.mulf %524, %504 : vector<8x128xf32>
    %536 = arith.addf %534, %535 : vector<8x128xf32>
    %c3_194 = arith.constant 3 : index
    %c0_195 = arith.constant 0 : index
    %c0_196 = arith.constant 0 : index
    %537 = vector.load %arg2[%c3_194, %c0_195, %c0_196] : memref<8x8x128xf32, #tpu.memory_space<vmem>>, vector<1x8x128xf32>
    %538 = vector.shape_cast %537 : vector<1x8x128xf32> to vector<8x128xf32>
    %539 = arith.mulf %538, %536 : vector<8x128xf32>
    %540 = vector.extract_strided_slice %539 {offsets = [0, 0], sizes = [8, 64], strides = [1, 1]} : vector<8x128xf32> to vector<8x64xf32>
    %c24_197 = arith.constant 24 : index
    %c0_198 = arith.constant 0 : index
    %541 = vector.load %arg8[%c24_197, %c0_198] : memref<64x128xf32, #tpu.memory_space<vmem>>, vector<8x64xf32>
    tpu.vector_store %arg8[%c24_197, %c0_198], %540 {strides = array<i32>} : memref<64x128xf32, #tpu.memory_space<vmem>>, vector<8x64xf32>,
    %542 = vector.extract_strided_slice %539 {offsets = [0, 64], sizes = [8, 64], strides = [1, 1]} : vector<8x128xf32> to vector<8x64xf32>
    %c32_199 = arith.constant 32 : index
    %c64_200 = arith.constant 64 : index
    %543 = vector.load %arg8[%c32_199, %c64_200] : memref<64x128xf32, #tpu.memory_space<vmem>>, vector<8x64xf32>
    tpu.vector_store %arg8[%c32_199, %c64_200], %542 {strides = array<i32>} : memref<64x128xf32, #tpu.memory_space<vmem>>, vector<8x64xf32>,
    %544 = arith.subf %536, %504 : vector<8x128xf32>
    %545 = arith.mulf %538, %544 : vector<8x128xf32>
    %546 = arith.addf %504, %545 : vector<8x128xf32>
    %c32_201 = arith.constant 32 : index
    %c0_202 = arith.constant 0 : index
    %547 = vector.load %arg10[%c32_201, %c0_202] : memref<64x384xf32, #tpu.memory_space<vmem>>, vector<8x384xf32>
    %c24_203 = arith.constant 24 : index
    %c0_204 = arith.constant 0 : index
    %548 = vector.load %arg10[%c24_203, %c0_204] : memref<64x384xf32, #tpu.memory_space<vmem>>, vector<8x384xf32>
    %549 = arith.select %18, %547, %548 : vector<8x384xi1>, vector<8x384xf32>
    %cst_205 = arith.constant dense<0.000000e+00> : vector<8x384xf32>
    %550 = tpu.matmul %546, %375, %cst_205 {dimension_numbers = #tpu.dot_dimension_numbers<[1], [0], [0], [1], [0, 0, 1, 1], [], []>} : vector<8x128xf32>, vector<128x384xf32>, vector<8x384xf32> -> vector<8x384xf32>
    %551 = vector.extract_strided_slice %549 {offsets = [0, 0], sizes = [8, 128], strides = [1, 1]} : vector<8x384xf32> to vector<8x128xf32>
    %552 = vector.extract_strided_slice %550 {offsets = [0, 0], sizes = [8, 128], strides = [1, 1]} : vector<8x384xf32> to vector<8x128xf32>
    %553 = arith.addf %551, %552 : vector<8x128xf32>
    %554 = arith.negf %553 : vector<8x128xf32>
    %555 = math.exp %554 : vector<8x128xf32>
    %cst_206 = arith.constant 1.000000e+00 : f32
    %556 = vector.broadcast %cst_206 : f32 to vector<8x128xf32>
    %557 = arith.addf %556, %555 : vector<8x128xf32>
    %558 = arith.divf %556, %557 : vector<8x128xf32>
    %559 = vector.extract_strided_slice %549 {offsets = [0, 128], sizes = [8, 128], strides = [1, 1]} : vector<8x384xf32> to vector<8x128xf32>
    %560 = vector.extract_strided_slice %550 {offsets = [0, 128], sizes = [8, 128], strides = [1, 1]} : vector<8x384xf32> to vector<8x128xf32>
    %561 = arith.addf %559, %560 : vector<8x128xf32>
    %562 = arith.negf %561 : vector<8x128xf32>
    %563 = math.exp %562 : vector<8x128xf32>
    %cst_207 = arith.constant 1.000000e+00 : f32
    %564 = vector.broadcast %cst_207 : f32 to vector<8x128xf32>
    %565 = arith.addf %564, %563 : vector<8x128xf32>
    %566 = arith.divf %564, %565 : vector<8x128xf32>
    %567 = vector.extract_strided_slice %549 {offsets = [0, 256], sizes = [8, 128], strides = [1, 1]} : vector<8x384xf32> to vector<8x128xf32>
    %568 = vector.extract_strided_slice %550 {offsets = [0, 256], sizes = [8, 128], strides = [1, 1]} : vector<8x384xf32> to vector<8x128xf32>
    %569 = vector.broadcast %377 : vector<1x128xf32> to vector<8x128xf32>
    %570 = arith.addf %568, %569 : vector<8x128xf32>
    %571 = arith.mulf %558, %570 : vector<8x128xf32>
    %572 = arith.addf %567, %571 : vector<8x128xf32>
    %573 = math.tanh %572 : vector<8x128xf32>
    %cst_208 = arith.constant 1.000000e+00 : f32
    %574 = vector.broadcast %cst_208 : f32 to vector<8x128xf32>
    %575 = arith.subf %574, %566 : vector<8x128xf32>
    %576 = arith.mulf %575, %573 : vector<8x128xf32>
    %577 = arith.mulf %566, %546 : vector<8x128xf32>
    %578 = arith.addf %576, %577 : vector<8x128xf32>
    %c4_209 = arith.constant 4 : index
    %c0_210 = arith.constant 0 : index
    %c0_211 = arith.constant 0 : index
    %579 = vector.load %arg2[%c4_209, %c0_210, %c0_211] : memref<8x8x128xf32, #tpu.memory_space<vmem>>, vector<1x8x128xf32>
    %580 = vector.shape_cast %579 : vector<1x8x128xf32> to vector<8x128xf32>
    %581 = arith.mulf %580, %578 : vector<8x128xf32>
    %582 = vector.extract_strided_slice %581 {offsets = [0, 0], sizes = [8, 64], strides = [1, 1]} : vector<8x128xf32> to vector<8x64xf32>
    %c32_212 = arith.constant 32 : index
    %c0_213 = arith.constant 0 : index
    %583 = vector.load %arg8[%c32_212, %c0_213] : memref<64x128xf32, #tpu.memory_space<vmem>>, vector<8x64xf32>
    tpu.vector_store %arg8[%c32_212, %c0_213], %582 {strides = array<i32>} : memref<64x128xf32, #tpu.memory_space<vmem>>, vector<8x64xf32>,
    %584 = vector.extract_strided_slice %581 {offsets = [0, 64], sizes = [8, 64], strides = [1, 1]} : vector<8x128xf32> to vector<8x64xf32>
    %c24_214 = arith.constant 24 : index
    %c64_215 = arith.constant 64 : index
    %585 = vector.load %arg8[%c24_214, %c64_215] : memref<64x128xf32, #tpu.memory_space<vmem>>, vector<8x64xf32>
    tpu.vector_store %arg8[%c24_214, %c64_215], %584 {strides = array<i32>} : memref<64x128xf32, #tpu.memory_space<vmem>>, vector<8x64xf32>,
    %586 = arith.subf %578, %546 : vector<8x128xf32>
    %587 = arith.mulf %580, %586 : vector<8x128xf32>
    %588 = arith.addf %546, %587 : vector<8x128xf32>
    %c40_216 = arith.constant 40 : index
    %c0_217 = arith.constant 0 : index
    %589 = vector.load %arg10[%c40_216, %c0_217] : memref<64x384xf32, #tpu.memory_space<vmem>>, vector<8x384xf32>
    %c16_218 = arith.constant 16 : index
    %c0_219 = arith.constant 0 : index
    %590 = vector.load %arg10[%c16_218, %c0_219] : memref<64x384xf32, #tpu.memory_space<vmem>>, vector<8x384xf32>
    %591 = arith.select %18, %589, %590 : vector<8x384xi1>, vector<8x384xf32>
    %cst_220 = arith.constant dense<0.000000e+00> : vector<8x384xf32>
    %592 = tpu.matmul %588, %375, %cst_220 {dimension_numbers = #tpu.dot_dimension_numbers<[1], [0], [0], [1], [0, 0, 1, 1], [], []>} : vector<8x128xf32>, vector<128x384xf32>, vector<8x384xf32> -> vector<8x384xf32>
    %593 = vector.extract_strided_slice %591 {offsets = [0, 0], sizes = [8, 128], strides = [1, 1]} : vector<8x384xf32> to vector<8x128xf32>
    %594 = vector.extract_strided_slice %592 {offsets = [0, 0], sizes = [8, 128], strides = [1, 1]} : vector<8x384xf32> to vector<8x128xf32>
    %595 = arith.addf %593, %594 : vector<8x128xf32>
    %596 = arith.negf %595 : vector<8x128xf32>
    %597 = math.exp %596 : vector<8x128xf32>
    %cst_221 = arith.constant 1.000000e+00 : f32
    %598 = vector.broadcast %cst_221 : f32 to vector<8x128xf32>
    %599 = arith.addf %598, %597 : vector<8x128xf32>
    %600 = arith.divf %598, %599 : vector<8x128xf32>
    %601 = vector.extract_strided_slice %591 {offsets = [0, 128], sizes = [8, 128], strides = [1, 1]} : vector<8x384xf32> to vector<8x128xf32>
    %602 = vector.extract_strided_slice %592 {offsets = [0, 128], sizes = [8, 128], strides = [1, 1]} : vector<8x384xf32> to vector<8x128xf32>
    %603 = arith.addf %601, %602 : vector<8x128xf32>
    %604 = arith.negf %603 : vector<8x128xf32>
    %605 = math.exp %604 : vector<8x128xf32>
    %cst_222 = arith.constant 1.000000e+00 : f32
    %606 = vector.broadcast %cst_222 : f32 to vector<8x128xf32>
    %607 = arith.addf %606, %605 : vector<8x128xf32>
    %608 = arith.divf %606, %607 : vector<8x128xf32>
    %609 = vector.extract_strided_slice %591 {offsets = [0, 256], sizes = [8, 128], strides = [1, 1]} : vector<8x384xf32> to vector<8x128xf32>
    %610 = vector.extract_strided_slice %592 {offsets = [0, 256], sizes = [8, 128], strides = [1, 1]} : vector<8x384xf32> to vector<8x128xf32>
    %611 = vector.broadcast %377 : vector<1x128xf32> to vector<8x128xf32>
    %612 = arith.addf %610, %611 : vector<8x128xf32>
    %613 = arith.mulf %600, %612 : vector<8x128xf32>
    %614 = arith.addf %609, %613 : vector<8x128xf32>
    %615 = math.tanh %614 : vector<8x128xf32>
    %cst_223 = arith.constant 1.000000e+00 : f32
    %616 = vector.broadcast %cst_223 : f32 to vector<8x128xf32>
    %617 = arith.subf %616, %608 : vector<8x128xf32>
    %618 = arith.mulf %617, %615 : vector<8x128xf32>
    %619 = arith.mulf %608, %588 : vector<8x128xf32>
    %620 = arith.addf %618, %619 : vector<8x128xf32>
    %c5_224 = arith.constant 5 : index
    %c0_225 = arith.constant 0 : index
    %c0_226 = arith.constant 0 : index
    %621 = vector.load %arg2[%c5_224, %c0_225, %c0_226] : memref<8x8x128xf32, #tpu.memory_space<vmem>>, vector<1x8x128xf32>
    %622 = vector.shape_cast %621 : vector<1x8x128xf32> to vector<8x128xf32>
    %623 = arith.mulf %622, %620 : vector<8x128xf32>
    %624 = vector.extract_strided_slice %623 {offsets = [0, 0], sizes = [8, 64], strides = [1, 1]} : vector<8x128xf32> to vector<8x64xf32>
    %c40_227 = arith.constant 40 : index
    %c0_228 = arith.constant 0 : index
    %625 = vector.load %arg8[%c40_227, %c0_228] : memref<64x128xf32, #tpu.memory_space<vmem>>, vector<8x64xf32>
    tpu.vector_store %arg8[%c40_227, %c0_228], %624 {strides = array<i32>} : memref<64x128xf32, #tpu.memory_space<vmem>>, vector<8x64xf32>,
    %626 = vector.extract_strided_slice %623 {offsets = [0, 64], sizes = [8, 64], strides = [1, 1]} : vector<8x128xf32> to vector<8x64xf32>
    %c16_229 = arith.constant 16 : index
    %c64_230 = arith.constant 64 : index
    %627 = vector.load %arg8[%c16_229, %c64_230] : memref<64x128xf32, #tpu.memory_space<vmem>>, vector<8x64xf32>
    tpu.vector_store %arg8[%c16_229, %c64_230], %626 {strides = array<i32>} : memref<64x128xf32, #tpu.memory_space<vmem>>, vector<8x64xf32>,
    %628 = arith.subf %620, %588 : vector<8x128xf32>
    %629 = arith.mulf %622, %628 : vector<8x128xf32>
    %630 = arith.addf %588, %629 : vector<8x128xf32>
    %c48_231 = arith.constant 48 : index
    %c0_232 = arith.constant 0 : index
    %631 = vector.load %arg10[%c48_231, %c0_232] : memref<64x384xf32, #tpu.memory_space<vmem>>, vector<8x384xf32>
    %c8_233 = arith.constant 8 : index
    %c0_234 = arith.constant 0 : index
    %632 = vector.load %arg10[%c8_233, %c0_234] : memref<64x384xf32, #tpu.memory_space<vmem>>, vector<8x384xf32>
    %633 = arith.select %18, %631, %632 : vector<8x384xi1>, vector<8x384xf32>
    %cst_235 = arith.constant dense<0.000000e+00> : vector<8x384xf32>
    %634 = tpu.matmul %630, %375, %cst_235 {dimension_numbers = #tpu.dot_dimension_numbers<[1], [0], [0], [1], [0, 0, 1, 1], [], []>} : vector<8x128xf32>, vector<128x384xf32>, vector<8x384xf32> -> vector<8x384xf32>
    %635 = vector.extract_strided_slice %633 {offsets = [0, 0], sizes = [8, 128], strides = [1, 1]} : vector<8x384xf32> to vector<8x128xf32>
    %636 = vector.extract_strided_slice %634 {offsets = [0, 0], sizes = [8, 128], strides = [1, 1]} : vector<8x384xf32> to vector<8x128xf32>
    %637 = arith.addf %635, %636 : vector<8x128xf32>
    %638 = arith.negf %637 : vector<8x128xf32>
    %639 = math.exp %638 : vector<8x128xf32>
    %cst_236 = arith.constant 1.000000e+00 : f32
    %640 = vector.broadcast %cst_236 : f32 to vector<8x128xf32>
    %641 = arith.addf %640, %639 : vector<8x128xf32>
    %642 = arith.divf %640, %641 : vector<8x128xf32>
    %643 = vector.extract_strided_slice %633 {offsets = [0, 128], sizes = [8, 128], strides = [1, 1]} : vector<8x384xf32> to vector<8x128xf32>
    %644 = vector.extract_strided_slice %634 {offsets = [0, 128], sizes = [8, 128], strides = [1, 1]} : vector<8x384xf32> to vector<8x128xf32>
    %645 = arith.addf %643, %644 : vector<8x128xf32>
    %646 = arith.negf %645 : vector<8x128xf32>
    %647 = math.exp %646 : vector<8x128xf32>
    %cst_237 = arith.constant 1.000000e+00 : f32
    %648 = vector.broadcast %cst_237 : f32 to vector<8x128xf32>
    %649 = arith.addf %648, %647 : vector<8x128xf32>
    %650 = arith.divf %648, %649 : vector<8x128xf32>
    %651 = vector.extract_strided_slice %633 {offsets = [0, 256], sizes = [8, 128], strides = [1, 1]} : vector<8x384xf32> to vector<8x128xf32>
    %652 = vector.extract_strided_slice %634 {offsets = [0, 256], sizes = [8, 128], strides = [1, 1]} : vector<8x384xf32> to vector<8x128xf32>
    %653 = vector.broadcast %377 : vector<1x128xf32> to vector<8x128xf32>
    %654 = arith.addf %652, %653 : vector<8x128xf32>
    %655 = arith.mulf %642, %654 : vector<8x128xf32>
    %656 = arith.addf %651, %655 : vector<8x128xf32>
    %657 = math.tanh %656 : vector<8x128xf32>
    %cst_238 = arith.constant 1.000000e+00 : f32
    %658 = vector.broadcast %cst_238 : f32 to vector<8x128xf32>
    %659 = arith.subf %658, %650 : vector<8x128xf32>
    %660 = arith.mulf %659, %657 : vector<8x128xf32>
    %661 = arith.mulf %650, %630 : vector<8x128xf32>
    %662 = arith.addf %660, %661 : vector<8x128xf32>
    %c6_239 = arith.constant 6 : index
    %c0_240 = arith.constant 0 : index
    %c0_241 = arith.constant 0 : index
    %663 = vector.load %arg2[%c6_239, %c0_240, %c0_241] : memref<8x8x128xf32, #tpu.memory_space<vmem>>, vector<1x8x128xf32>
    %664 = vector.shape_cast %663 : vector<1x8x128xf32> to vector<8x128xf32>
    %665 = arith.mulf %664, %662 : vector<8x128xf32>
    %666 = vector.extract_strided_slice %665 {offsets = [0, 0], sizes = [8, 64], strides = [1, 1]} : vector<8x128xf32> to vector<8x64xf32>
    %c48_242 = arith.constant 48 : index
    %c0_243 = arith.constant 0 : index
    %667 = vector.load %arg8[%c48_242, %c0_243] : memref<64x128xf32, #tpu.memory_space<vmem>>, vector<8x64xf32>
    tpu.vector_store %arg8[%c48_242, %c0_243], %666 {strides = array<i32>} : memref<64x128xf32, #tpu.memory_space<vmem>>, vector<8x64xf32>,
    %668 = vector.extract_strided_slice %665 {offsets = [0, 64], sizes = [8, 64], strides = [1, 1]} : vector<8x128xf32> to vector<8x64xf32>
    %c8_244 = arith.constant 8 : index
    %c64_245 = arith.constant 64 : index
    %669 = vector.load %arg8[%c8_244, %c64_245] : memref<64x128xf32, #tpu.memory_space<vmem>>, vector<8x64xf32>
    tpu.vector_store %arg8[%c8_244, %c64_245], %668 {strides = array<i32>} : memref<64x128xf32, #tpu.memory_space<vmem>>, vector<8x64xf32>,
    %670 = arith.subf %662, %630 : vector<8x128xf32>
    %671 = arith.mulf %664, %670 : vector<8x128xf32>
    %672 = arith.addf %630, %671 : vector<8x128xf32>
    %c56_246 = arith.constant 56 : index
    %c0_247 = arith.constant 0 : index
    %673 = vector.load %arg10[%c56_246, %c0_247] : memref<64x384xf32, #tpu.memory_space<vmem>>, vector<8x384xf32>
    %c0_248 = arith.constant 0 : index
    %c0_249 = arith.constant 0 : index
    %674 = vector.load %arg10[%c0_248, %c0_249] : memref<64x384xf32, #tpu.memory_space<vmem>>, vector<8x384xf32>
    %675 = arith.select %18, %673, %674 : vector<8x384xi1>, vector<8x384xf32>
    %cst_250 = arith.constant dense<0.000000e+00> : vector<8x384xf32>
    %676 = tpu.matmul %672, %375, %cst_250 {dimension_numbers = #tpu.dot_dimension_numbers<[1], [0], [0], [1], [0, 0, 1, 1], [], []>} : vector<8x128xf32>, vector<128x384xf32>, vector<8x384xf32> -> vector<8x384xf32>
    %677 = vector.extract_strided_slice %675 {offsets = [0, 0], sizes = [8, 128], strides = [1, 1]} : vector<8x384xf32> to vector<8x128xf32>
    %678 = vector.extract_strided_slice %676 {offsets = [0, 0], sizes = [8, 128], strides = [1, 1]} : vector<8x384xf32> to vector<8x128xf32>
    %679 = arith.addf %677, %678 : vector<8x128xf32>
    %680 = arith.negf %679 : vector<8x128xf32>
    %681 = math.exp %680 : vector<8x128xf32>
    %cst_251 = arith.constant 1.000000e+00 : f32
    %682 = vector.broadcast %cst_251 : f32 to vector<8x128xf32>
    %683 = arith.addf %682, %681 : vector<8x128xf32>
    %684 = arith.divf %682, %683 : vector<8x128xf32>
    %685 = vector.extract_strided_slice %675 {offsets = [0, 128], sizes = [8, 128], strides = [1, 1]} : vector<8x384xf32> to vector<8x128xf32>
    %686 = vector.extract_strided_slice %676 {offsets = [0, 128], sizes = [8, 128], strides = [1, 1]} : vector<8x384xf32> to vector<8x128xf32>
    %687 = arith.addf %685, %686 : vector<8x128xf32>
    %688 = arith.negf %687 : vector<8x128xf32>
    %689 = math.exp %688 : vector<8x128xf32>
    %cst_252 = arith.constant 1.000000e+00 : f32
    %690 = vector.broadcast %cst_252 : f32 to vector<8x128xf32>
    %691 = arith.addf %690, %689 : vector<8x128xf32>
    %692 = arith.divf %690, %691 : vector<8x128xf32>
    %693 = vector.extract_strided_slice %675 {offsets = [0, 256], sizes = [8, 128], strides = [1, 1]} : vector<8x384xf32> to vector<8x128xf32>
    %694 = vector.extract_strided_slice %676 {offsets = [0, 256], sizes = [8, 128], strides = [1, 1]} : vector<8x384xf32> to vector<8x128xf32>
    %695 = vector.broadcast %377 : vector<1x128xf32> to vector<8x128xf32>
    %696 = arith.addf %694, %695 : vector<8x128xf32>
    %697 = arith.mulf %684, %696 : vector<8x128xf32>
    %698 = arith.addf %693, %697 : vector<8x128xf32>
    %699 = math.tanh %698 : vector<8x128xf32>
    %cst_253 = arith.constant 1.000000e+00 : f32
    %700 = vector.broadcast %cst_253 : f32 to vector<8x128xf32>
    %701 = arith.subf %700, %692 : vector<8x128xf32>
    %702 = arith.mulf %701, %699 : vector<8x128xf32>
    %703 = arith.mulf %692, %672 : vector<8x128xf32>
    %704 = arith.addf %702, %703 : vector<8x128xf32>
    %c7_254 = arith.constant 7 : index
    %c0_255 = arith.constant 0 : index
    %c0_256 = arith.constant 0 : index
    %705 = vector.load %arg2[%c7_254, %c0_255, %c0_256] : memref<8x8x128xf32, #tpu.memory_space<vmem>>, vector<1x8x128xf32>
    %706 = vector.shape_cast %705 : vector<1x8x128xf32> to vector<8x128xf32>
    %707 = arith.mulf %706, %704 : vector<8x128xf32>
    %708 = vector.extract_strided_slice %707 {offsets = [0, 0], sizes = [8, 64], strides = [1, 1]} : vector<8x128xf32> to vector<8x64xf32>
    %c56_257 = arith.constant 56 : index
    %c0_258 = arith.constant 0 : index
    %709 = vector.load %arg8[%c56_257, %c0_258] : memref<64x128xf32, #tpu.memory_space<vmem>>, vector<8x64xf32>
    tpu.vector_store %arg8[%c56_257, %c0_258], %708 {strides = array<i32>} : memref<64x128xf32, #tpu.memory_space<vmem>>, vector<8x64xf32>,
    %710 = vector.extract_strided_slice %707 {offsets = [0, 64], sizes = [8, 64], strides = [1, 1]} : vector<8x128xf32> to vector<8x64xf32>
    %c0_259 = arith.constant 0 : index
    %c64_260 = arith.constant 64 : index
    %711 = vector.load %arg8[%c0_259, %c64_260] : memref<64x128xf32, #tpu.memory_space<vmem>>, vector<8x64xf32>
    tpu.vector_store %arg8[%c0_259, %c64_260], %710 {strides = array<i32>} : memref<64x128xf32, #tpu.memory_space<vmem>>, vector<8x64xf32>,
    %712 = arith.subf %704, %672 : vector<8x128xf32>
    %713 = arith.mulf %706, %712 : vector<8x128xf32>
    %714 = arith.addf %672, %713 : vector<8x128xf32>
    %c0_261 = arith.constant 0 : index
    %c0_262 = arith.constant 0 : index
    %715 = vector.load %arg9[%c0_261, %c0_262] : memref<8x128xf32, #tpu.memory_space<vmem>>, vector<8x128xf32>
    tpu.vector_store %arg9[%c0_261, %c0_262], %714 {strides = array<i32>} : memref<8x128xf32, #tpu.memory_space<vmem>>, vector<8x128xf32>,
    return
  }
  func.func @transform_0(%arg0: i32) -> (i32, i32) {
    %c0_i32 = arith.constant 0 : i32
    %c0_i32_0 = arith.constant 0 : i32
    %c0_i32_1 = arith.constant 0 : i32
    return %c0_i32, %c0_i32_0 : i32, i32
  }
  func.func @transform_1(%arg0: i32) -> (i32, i32, i32) {
    %c0_i32 = arith.constant 0 : i32
    %c0_i32_0 = arith.constant 0 : i32
    %c0_i32_1 = arith.constant 0 : i32
    %c0_i32_2 = arith.constant 0 : i32
    return %c0_i32, %c0_i32_0, %c0_i32_1 : i32, i32, i32
  }
  func.func @transform_2(%arg0: i32) -> (i32, i32) {
    %c0_i32 = arith.constant 0 : i32
    %c0_i32_0 = arith.constant 0 : i32
    %c0_i32_1 = arith.constant 0 : i32
    return %c0_i32, %c0_i32_0 : i32, i32
  }
  func.func @transform_3(%arg0: i32) -> (i32, i32, i32) {
    %c0_i32 = arith.constant 0 : i32
    %c0_i32_0 = arith.constant 0 : i32
    %c0_i32_1 = arith.constant 0 : i32
    %c0_i32_2 = arith.constant 0 : i32
    return %c0_i32, %c0_i32_0, %c0_i32_1 : i32, i32, i32
  }
  func.func @transform_4(%arg0: i32) -> (i32, i32, i32) {
    %c0_i32 = arith.constant 0 : i32
    %c0_i32_0 = arith.constant 0 : i32
    %c0_i32_1 = arith.constant 0 : i32
    %c0_i32_2 = arith.constant 0 : i32
    return %c0_i32, %c0_i32_0, %c0_i32_1 : i32, i32, i32
  }
  func.func @transform_5(%arg0: i32) -> (i32, i32, i32) {
    %c0_i32 = arith.constant 0 : i32
    %c0_i32_0 = arith.constant 0 : i32
    %c0_i32_1 = arith.constant 0 : i32
    %c0_i32_2 = arith.constant 0 : i32
    return %c0_i32, %c0_i32_0, %c0_i32_1 : i32, i32, i32
  }
  func.func @transform_6(%arg0: i32) -> (i32, i32, i32) {
    %c0_i32 = arith.constant 0 : i32
    %c0_i32_0 = arith.constant 0 : i32
    %c0_i32_1 = arith.constant 0 : i32
    %c0_i32_2 = arith.constant 0 : i32
    return %c0_i32, %c0_i32_0, %c0_i32_1 : i32, i32, i32
  }
  func.func @transform_7(%arg0: i32) -> (i32, i32) {
    %c0_i32 = arith.constant 0 : i32
    %c0_i32_0 = arith.constant 0 : i32
    %c0_i32_1 = arith.constant 0 : i32
    return %c0_i32, %c0_i32_0 : i32, i32
  }
  func.func @transform_8(%arg0: i32) -> (i32, i32) {
    %c0_i32 = arith.constant 0 : i32
    %c0_i32_0 = arith.constant 0 : i32
    %c0_i32_1 = arith.constant 0 : i32
    return %c0_i32, %c0_i32_0 : i32, i32
  }
}

</mosaic_0001>

<llo_original>
// kernel: tpu_custom_call.1
$region0: #{tpu_custom_call.1}
  #allocation0 [shape = 'u32[]', space=smem, size = 0x4, offset = 0x4, fixed_abs, tag = 'smem constant byte address 0x4 - core index']
  #allocation1 [shape = 'u32[72,128]{1,0:T(1,128)}', space=vmem, size = 0x9000, scoped, tag = 'internal scratch']
  #allocation2 [shape = 'f32[64,384]{1,0:T(8,128)}', space=vmem, size = 0x18000, scoped, tag = 'scratch operand']
  #allocation3 [shape = 'f32[64,128]{1,0:T(8,128)}', space=vmem, size = 0x8000, scoped, tag = 'scratch operand']
  %s0 = inlined_call_operand.hbm [shape: f32[64,64], index: 0, kind: input, shape index: {}]
  %s1 = inlined_call_operand.hbm [shape: f32[8,8,128], index: 1, kind: input, shape index: {}]
  %s2 = inlined_call_operand.hbm [shape: f32[64,384], index: 2, kind: input, shape index: {}]
  %s3 = inlined_call_operand.hbm [shape: f32[1,128,384], index: 3, kind: input, shape index: {}]
  %s4 = inlined_call_operand.hbm [shape: f32[2,128,384], index: 4, kind: input, shape index: {}]
  %s5 = inlined_call_operand.hbm [shape: f32[2,1,384], index: 5, kind: input, shape index: {}]
  %s6 = inlined_call_operand.vmem [shape: f32[2,1,128], index: 6, kind: input, shape index: {}]
  %s7 = inlined_call_operand.hbm [shape: f32[64,128], index: 7, kind: output, shape index: {0}]
  %s8 = inlined_call_operand.hbm [shape: f32[8,128], index: 8, kind: output, shape index: {1}]
  %9 = xla_tuple %s7, %s8
  %s10 = sld [smem:[#allocation0]]
  $region70: #{tpu_custom_call.1} parent=0
    _
  %s12 = ssub.s32 1, %s10
  %s13 = scalar_select 0, %s12, %s10
  $region1: #{tpu_custom_call.1} parent=0
    #allocation4 [shape = 'u8[32768]{0}', space=vmem, size = 0x8000, scoped, tag = 'input window, operand 0, single buffered']
    #allocation5 [shape = 's32[1]{0}', space=sflag, size = 0x4, scoped, tag = 'scoped memory for tpu_custom_call.1']
    #allocation6 [shape = 's32[1]{0}', space=sflag, size = 0x4, scoped, tag = 'scoped memory for tpu_custom_call.1']
    #allocation7 [shape = 'u8[32768]{0}', space=vmem, size = 0x8000, scoped, tag = 'input window, operand 1, single buffered']
    #allocation8 [shape = 's32[1]{0}', space=sflag, size = 0x4, scoped, tag = 'scoped memory for tpu_custom_call.1']
    #allocation9 [shape = 'u8[98304]{0}', space=vmem, size = 0x18000, scoped, tag = 'input window, operand 2, single buffered']
    #allocation10 [shape = 'u8[196608]{0}', space=vmem, size = 0x30000, scoped, tag = 'input window, operand 3, single buffered']
    #allocation11 [shape = 's32[1]{0}', space=sflag, size = 0x4, scoped, tag = 'scoped memory for tpu_custom_call.1']
    #allocation12 [shape = 'u8[393216]{0}', space=vmem, size = 0x60000, scoped, tag = 'input window, operand 4, single buffered']
    #allocation13 [shape = 'u8[3072]{0}', space=vmem, size = 0xc00, scoped, tag = 'input window, operand 5, single buffered']
    #allocation14 [shape = 's32[1]{0}', space=sflag, size = 0x4, scoped, tag = 'scoped memory for tpu_custom_call.1']
    #allocation15 [shape = 'u8[32768]{0}', space=vmem, size = 0x8000, scoped, tag = 'output window, operand 0, single buffered']
    #allocation16 [shape = 'u8[4096]{0}', space=vmem, size = 0x1000, scoped, tag = 'output window, operand 1, single buffered']
    #allocation17 [shape = 's32[1]{0}', space=sflag, size = 0x4, scoped, tag = 'scoped memory for tpu_custom_call.1']
    %14 = vsyncpa [#allocation5], 0
    %15 = vsyncpa [#allocation8], 0
    %16 = vsyncpa [#allocation11], 0
    %17 = vsyncpa [#allocation14], 0
    %18 = vsyncpa [#allocation6], 0
    %19 = vsyncpa [#allocation17], 0
    // Predicated region
    $region2: #{tpu_custom_call.1} parent=1 // pred_check
      _
    $region3: #{tpu_custom_call.1} parent=1 // pred_check_branch
      %21 = sbr.rel (0) target = $region5
    $region4: #{tpu_custom_call.1} parent=1 // pred_region
      %23 = vsyncadd [#allocation5], 0
      %s24 = sshll.u32 %s0, 4
      %s25 = int_to_ptr.hbm [resolvable:$true] %s24
      %s26 = sshll.u32 [#allocation4], 4
      %s27 = int_to_ptr.vmem [resolvable:$true] %s26
      %32 = dma.hbm_to_vmem [thread:$0]  %s25, 1024, %s27, [#allocation5], 128, 128, 8
    $region5: #{tpu_custom_call.1} parent=1 // pred_fallthru
      _
    // Predicated region
    $region6: #{tpu_custom_call.1} parent=1 // pred_check
      _
    $region7: #{tpu_custom_call.1} parent=1 // pred_check_branch
      %34 = sbr.rel (0) target = $region9
    $region8: #{tpu_custom_call.1} parent=1 // pred_region
      %36 = vsyncadd [#allocation8], 0
      %s37 = sshll.u32 %s1, 4
      %s38 = int_to_ptr.hbm [resolvable:$true] %s37
      %s39 = sshll.u32 [#allocation7], 4
      %s40 = int_to_ptr.vmem [resolvable:$true] %s39
      %45 = dma.hbm_to_vmem [thread:$0]  %s38, 1024, %s40, [#allocation8], 128, 128, 8
    $region9: #{tpu_custom_call.1} parent=1 // pred_fallthru
      _
    // Predicated region
    $region10: #{tpu_custom_call.1} parent=1 // pred_check
      _
    $region11: #{tpu_custom_call.1} parent=1 // pred_check_branch
      %47 = sbr.rel (0) target = $region13
    $region12: #{tpu_custom_call.1} parent=1 // pred_region
      %49 = vsyncadd [#allocation8], 0
      %s50 = sshll.u32 %s2, 4
      %s51 = int_to_ptr.hbm [resolvable:$true] %s50
      %s52 = sshll.u32 [#allocation9], 4
      %s53 = int_to_ptr.vmem [resolvable:$true] %s52
      %58 = dma.hbm_to_vmem [thread:$0]  %s51, 3072, %s53, [#allocation8], 384, 384, 24
    $region13: #{tpu_custom_call.1} parent=1 // pred_fallthru
      _
    // Predicated region
    $region14: #{tpu_custom_call.1} parent=1 // pred_check
      _
    $region15: #{tpu_custom_call.1} parent=1 // pred_check_branch
      %60 = sbr.rel (0) target = $region17
    $region16: #{tpu_custom_call.1} parent=1 // pred_region
      %62 = vsyncadd [#allocation11], 0
      %s63 = sshll.u32 %s3, 4
      %s64 = int_to_ptr.hbm [resolvable:$true] %s63
      %s65 = sshll.u32 [#allocation10], 4
      %s66 = int_to_ptr.vmem [resolvable:$true] %s65
      %71 = dma.hbm_to_vmem [thread:$0]  %s64, 6144, %s66, [#allocation11], 384, 384, 24
    $region17: #{tpu_custom_call.1} parent=1 // pred_fallthru
      _
    // Predicated region
    $region18: #{tpu_custom_call.1} parent=1 // pred_check
      _
    $region19: #{tpu_custom_call.1} parent=1 // pred_check_branch
      %73 = sbr.rel (0) target = $region21
    $region20: #{tpu_custom_call.1} parent=1 // pred_region
      %75 = vsyncadd [#allocation11], 0
      %s76 = sshll.u32 %s4, 4
      %s77 = int_to_ptr.hbm [resolvable:$true] %s76
      %s78 = sshll.u32 [#allocation12], 4
      %s79 = int_to_ptr.vmem [resolvable:$true] %s78
      %84 = dma.hbm_to_vmem [thread:$0]  %s77, 12288, %s79, [#allocation11], 384, 384, 24
    $region21: #{tpu_custom_call.1} parent=1 // pred_fallthru
      _
    // Predicated region
    $region22: #{tpu_custom_call.1} parent=1 // pred_check
      _
    $region23: #{tpu_custom_call.1} parent=1 // pred_check_branch
      %86 = sbr.rel (0) target = $region25
    $region24: #{tpu_custom_call.1} parent=1 // pred_region
      %88 = vsyncadd [#allocation14], 0
      %s89 = sshll.u32 %s5, 4
      %s90 = int_to_ptr.hbm [resolvable:$true] %s89
      %s91 = sshll.u32 [#allocation13], 4
      %s92 = int_to_ptr.vmem [resolvable:$true] %s91
      %97 = dma.hbm_to_vmem [thread:$0]  %s90, 96, %s92, [#allocation14], 48, 48, 3
    $region25: #{tpu_custom_call.1} parent=1 // pred_fallthru
      _
    // Predicated region
    $region26: #{tpu_custom_call.1} parent=1 // pred_check
      _
    $region27: #{tpu_custom_call.1} parent=1 // pred_check_branch
      %99 = sbr.rel (0) target = $region29
    $region28: #{tpu_custom_call.1} parent=1 // pred_region
      _
    $region29: #{tpu_custom_call.1} parent=1 // pred_fallthru
      _
    // Predicated region
    $region30: #{tpu_custom_call.1} parent=1 // pred_check
      _
    $region31: #{tpu_custom_call.1} parent=1 // pred_check_branch
      %101 = sbr.rel (0) target = $region33
    $region32: #{tpu_custom_call.1} parent=1 // pred_region
      %103 = dma.done [#allocation5], 1024
    $region33: #{tpu_custom_call.1} parent=1 // pred_fallthru
      _
    // Predicated region
    $region34: #{tpu_custom_call.1} parent=1 // pred_check
      _
    $region35: #{tpu_custom_call.1} parent=1 // pred_check_branch
      %105 = sbr.rel (0) target = $region37
    $region36: #{tpu_custom_call.1} parent=1 // pred_region
      %107 = dma.done [#allocation8], 1024
    $region37: #{tpu_custom_call.1} parent=1 // pred_fallthru
      _
    // Predicated region
    $region38: #{tpu_custom_call.1} parent=1 // pred_check
      _
    $region39: #{tpu_custom_call.1} parent=1 // pred_check_branch
      %109 = sbr.rel (0) target = $region41
    $region40: #{tpu_custom_call.1} parent=1 // pred_region
      %111 = dma.done [#allocation8], 3072
    $region41: #{tpu_custom_call.1} parent=1 // pred_fallthru
      _
    // Predicated region
    $region42: #{tpu_custom_call.1} parent=1 // pred_check
      _
    $region43: #{tpu_custom_call.1} parent=1 // pred_check_branch
      %113 = sbr.rel (0) target = $region45
    $region44: #{tpu_custom_call.1} parent=1 // pred_region
      %115 = dma.done [#allocation11], 6144
    $region45: #{tpu_custom_call.1} parent=1 // pred_fallthru
      _
    // Predicated region
    $region46: #{tpu_custom_call.1} parent=1 // pred_check
      _
    $region47: #{tpu_custom_call.1} parent=1 // pred_check_branch
      %117 = sbr.rel (0) target = $region49
    $region48: #{tpu_custom_call.1} parent=1 // pred_region
      %119 = dma.done [#allocation11], 12288
    $region49: #{tpu_custom_call.1} parent=1 // pred_fallthru
      _
    // Predicated region
    $region50: #{tpu_custom_call.1} parent=1 // pred_check
      _
    $region51: #{tpu_custom_call.1} parent=1 // pred_check_branch
      %121 = sbr.rel (0) target = $region53
    $region52: #{tpu_custom_call.1} parent=1 // pred_region
      %123 = dma.done [#allocation14], 96
    $region53: #{tpu_custom_call.1} parent=1 // pred_fallthru
      _
    %v124 = vlaneseq
    %v125 = vand.u32 %v124, 127
    %v126 = vadd.s32 %v125, 128
    %v127 = vadd.s32 %v125, 256
    %vm128 = vcmp.lt.s32.totalorder %v125, 0
    %v129 = vsub.s32 0, %v125
    %v130 = vsel %vm128, %v129, %v125
    %v131 = vshrl.u32 %v130, 7
    %v132 = vand.u32 %v130, 127
    %v133 = vsub.s32 0, %v132
    %v134 = vsel %vm128, %v133, %v132
    %vm135 = vcmp.lt.s32.totalorder %v126, 0
    %v136 = vsub.s32 0, %v126
    %v137 = vsel %vm135, %v136, %v126
    %v138 = vshrl.u32 %v137, 7
    %v139 = vand.u32 %v137, 127
    %v140 = vsub.s32 0, %v139
    %v141 = vsel %vm135, %v140, %v139
    %vm142 = vcmp.lt.s32.totalorder %v127, 0
    %v143 = vsub.s32 0, %v127
    %v144 = vsel %vm142, %v143, %v127
    %v145 = vshrl.u32 %v144, 7
    %v146 = vand.u32 %v144, 127
    %v147 = vsub.s32 0, %v146
    %v148 = vsel %vm142, %v147, %v146
    %vm149 = vcmp.ne.s32.totalorder %v134, 0
    %vm150 = vcmp.ne.s32.totalorder %v141, 0
    %vm151 = vcmp.ne.s32.totalorder %v148, 0
    %vm152 = vcmp.lt.s32.totalorder %v134, 0
    %vm153 = vcmp.lt.s32.totalorder %v141, 0
    %vm154 = vcmp.lt.s32.totalorder %v148, 0
    %vm155 = vmand %vm152, %vm149
    %vm156 = vmand %vm153, %vm150
    %vm157 = vmand %vm154, %vm151
    %v158 = vadd.s32 %v134, 128
    %v159 = vadd.s32 %v141, 128
    %v160 = vadd.s32 %v148, 128
    %v161 = vsel %vm155, %v158, %v134
    %v162 = vsel %vm156, %v159, %v141
    %v163 = vsel %vm157, %v160, %v148
    %vm164 = vcmp.lt.s32.totalorder %v161, 64
    %vm165 = vcmp.lt.s32.totalorder %v162, 64
    %vm166 = vcmp.lt.s32.totalorder %v163, 64
    %v167 = vld [vmem:[#allocation4] sm:$0xff]
    %v168 = vld [vmem:[#allocation4 + $0x8] sm:$0xff]
    %v169 = vld [vmem:[#allocation4 + $0x10] sm:$0xff]
    %v170 = vld [vmem:[#allocation4 + $0x18] sm:$0xff]
    %v171 = vld [vmem:[#allocation4 + $0x20] sm:$0xff]
    %v172 = vld [vmem:[#allocation4 + $0x28] sm:$0xff]
    %v173 = vld [vmem:[#allocation4 + $0x30] sm:$0xff]
    %v174 = vld [vmem:[#allocation4 + $0x38] sm:$0xff]
    %v175 = vld [vmem:[#allocation9] sm:$0xff]
    %v176 = vld [vmem:[#allocation9 + $0x8] sm:$0xff]
    %v177 = vld [vmem:[#allocation9 + $0x10] sm:$0xff]
    %v178 = vld [vmem:[#allocation9 + $0x18] sm:$0xff]
    %v179 = vld [vmem:[#allocation9 + $0x20] sm:$0xff]
    %v180 = vld [vmem:[#allocation9 + $0x28] sm:$0xff]
    %v181 = vld [vmem:[#allocation9 + $0x30] sm:$0xff]
    %v182 = vld [vmem:[#allocation9 + $0x38] sm:$0xff]
    %v183 = vld [vmem:[#allocation9 + $0x40] sm:$0xff]
    %v184 = vld [vmem:[#allocation9 + $0x48] sm:$0xff]
    %v185 = vld [vmem:[#allocation9 + $0x50] sm:$0xff]
    %v186 = vld [vmem:[#allocation9 + $0x58] sm:$0xff]
    %v187 = vld [vmem:[#allocation9 + $0x60] sm:$0xff]
    %v188 = vld [vmem:[#allocation9 + $0x68] sm:$0xff]
    %v189 = vld [vmem:[#allocation9 + $0x70] sm:$0xff]
    %v190 = vld [vmem:[#allocation9 + $0x78] sm:$0xff]
    %v191 = vld [vmem:[#allocation9 + $0x80] sm:$0xff]
    %v192 = vld [vmem:[#allocation9 + $0x88] sm:$0xff]
    %v193 = vld [vmem:[#allocation9 + $0x90] sm:$0xff]
    %v194 = vld [vmem:[#allocation9 + $0x98] sm:$0xff]
    %v195 = vld [vmem:[#allocation9 + $0xa0] sm:$0xff]
    %v196 = vld [vmem:[#allocation9 + $0xa8] sm:$0xff]
    %v197 = vld [vmem:[#allocation9 + $0xb0] sm:$0xff]
    %v198 = vld [vmem:[#allocation9 + $0xb8] sm:$0xff]
    %v199 = vld [vmem:[#allocation13] sm:$0x7]
    %v201 = vperm.slane %v199, 0
    %v202 = vperm.slane %v199, 1
    %v203 = vperm.slane %v199, 2
    %vm207 = vcmask 523264
    %v209 = vsel %vm207, %v167, 0
    %v212 = vsel %vm207, %v168, 0
    %v215 = vsel %vm207, %v169, 0
    %v218 = vsel %vm207, %v170, 0
    %v221 = vsel %vm207, %v171, 0
    %v224 = vsel %vm207, %v172, 0
    %v227 = vsel %vm207, %v173, 0
    %v230 = vsel %vm207, %v174, 0
    %232 = vmatpush.msra.mxu0 0.0
    %233 = vmatpush.msra.mxu0 0.0
    %234 = vmatpush.msra.mxu0 0.0
    %235 = vmatpush.msra.mxu0 0.0
    %236 = vmatpush.msra.mxu0 0.0
    %237 = vmatpush.msra.mxu0 0.0
    %238 = vmatpush.msra.mxu0 0.0
    %239 = vmatpush.msra.mxu0 0.0
    %240 = vmatpush.msra.mxu0 %v196
    %241 = vmatpush.msra.mxu0 %v193
    %242 = vmatpush.msra.mxu0 %v190
    %243 = vmatpush.msra.mxu0 %v187
    %244 = vmatpush.msra.mxu0 %v184
    %245 = vmatpush.msra.mxu0 %v181
    %246 = vmatpush.msra.mxu0 %v178
    %247 = vmatpush.msra.mxu0 %v175
    %248 = vmatmul.f32.gmra.mxu0 %v209
    %v249 = vpop.f32.mrf.mxu0
    %v250 = vadd.f32 %v201, %v249
    %251 = vmatmul.f32.gmra.mxu0 %v212
    %v252 = vpop.f32.mrf.mxu0
    %v253 = vadd.f32 %v201, %v252
    %254 = vmatmul.f32.gmra.mxu0 %v215
    %v255 = vpop.f32.mrf.mxu0
    %v256 = vadd.f32 %v201, %v255
    %257 = vmatmul.f32.gmra.mxu0 %v218
    %v258 = vpop.f32.mrf.mxu0
    %v259 = vadd.f32 %v201, %v258
    %260 = vmatmul.f32.gmra.mxu0 %v221
    %v261 = vpop.f32.mrf.mxu0
    %v262 = vadd.f32 %v201, %v261
    %263 = vmatmul.f32.gmra.mxu0 %v224
    %v264 = vpop.f32.mrf.mxu0
    %v265 = vadd.f32 %v201, %v264
    %266 = vmatmul.f32.gmra.mxu0 %v227
    %v267 = vpop.f32.mrf.mxu0
    %v268 = vadd.f32 %v201, %v267
    %269 = vmatmul.f32.gmra.mxu0 %v230
    %v270 = vpop.f32.mrf.mxu0
    %v271 = vadd.f32 %v201, %v270
    %272 = vdwg.mxu0
    %273 = vmatpush.msra.mxu0 0.0
    %274 = vmatpush.msra.mxu0 0.0
    %275 = vmatpush.msra.mxu0 0.0
    %276 = vmatpush.msra.mxu0 0.0
    %277 = vmatpush.msra.mxu0 0.0
    %278 = vmatpush.msra.mxu0 0.0
    %279 = vmatpush.msra.mxu0 0.0
    %280 = vmatpush.msra.mxu0 0.0
    %281 = vmatpush.msra.mxu0 %v197
    %282 = vmatpush.msra.mxu0 %v194
    %283 = vmatpush.msra.mxu0 %v191
    %284 = vmatpush.msra.mxu0 %v188
    %285 = vmatpush.msra.mxu0 %v185
    %286 = vmatpush.msra.mxu0 %v182
    %287 = vmatpush.msra.mxu0 %v179
    %288 = vmatpush.msra.mxu0 %v176
    %289 = vmatmul.f32.gmra.mxu0 %v209
    %v290 = vpop.f32.mrf.mxu0
    %v291 = vadd.f32 %v202, %v290
    %292 = vmatmul.f32.gmra.mxu0 %v212
    %v293 = vpop.f32.mrf.mxu0
    %v294 = vadd.f32 %v202, %v293
    %295 = vmatmul.f32.gmra.mxu0 %v215
    %v296 = vpop.f32.mrf.mxu0
    %v297 = vadd.f32 %v202, %v296
    %298 = vmatmul.f32.gmra.mxu0 %v218
    %v299 = vpop.f32.mrf.mxu0
    %v300 = vadd.f32 %v202, %v299
    %301 = vmatmul.f32.gmra.mxu0 %v221
    %v302 = vpop.f32.mrf.mxu0
    %v303 = vadd.f32 %v202, %v302
    %304 = vmatmul.f32.gmra.mxu0 %v224
    %v305 = vpop.f32.mrf.mxu0
    %v306 = vadd.f32 %v202, %v305
    %307 = vmatmul.f32.gmra.mxu0 %v227
    %v308 = vpop.f32.mrf.mxu0
    %v309 = vadd.f32 %v202, %v308
    %310 = vmatmul.f32.gmra.mxu0 %v230
    %v311 = vpop.f32.mrf.mxu0
    %v312 = vadd.f32 %v202, %v311
    %313 = vdwg.mxu0
    %314 = vmatpush.msra.mxu0 0.0
    %315 = vmatpush.msra.mxu0 0.0
    %316 = vmatpush.msra.mxu0 0.0
    %317 = vmatpush.msra.mxu0 0.0
    %318 = vmatpush.msra.mxu0 0.0
    %319 = vmatpush.msra.mxu0 0.0
    %320 = vmatpush.msra.mxu0 0.0
    %321 = vmatpush.msra.mxu0 0.0
    %322 = vmatpush.msra.mxu0 %v198
    %323 = vmatpush.msra.mxu0 %v195
    %324 = vmatpush.msra.mxu0 %v192
    %325 = vmatpush.msra.mxu0 %v189
    %326 = vmatpush.msra.mxu0 %v186
    %327 = vmatpush.msra.mxu0 %v183
    %328 = vmatpush.msra.mxu0 %v180
    %329 = vmatpush.msra.mxu0 %v177
    %330 = vmatmul.f32.gmra.mxu0 %v209
    %v331 = vpop.f32.mrf.mxu0
    %v332 = vadd.f32 %v203, %v331
    %333 = vmatmul.f32.gmra.mxu0 %v212
    %v334 = vpop.f32.mrf.mxu0
    %v335 = vadd.f32 %v203, %v334
    %336 = vmatmul.f32.gmra.mxu0 %v215
    %v337 = vpop.f32.mrf.mxu0
    %v338 = vadd.f32 %v203, %v337
    %339 = vmatmul.f32.gmra.mxu0 %v218
    %v340 = vpop.f32.mrf.mxu0
    %v341 = vadd.f32 %v203, %v340
    %342 = vmatmul.f32.gmra.mxu0 %v221
    %v343 = vpop.f32.mrf.mxu0
    %v344 = vadd.f32 %v203, %v343
    %345 = vmatmul.f32.gmra.mxu0 %v224
    %v346 = vpop.f32.mrf.mxu0
    %v347 = vadd.f32 %v203, %v346
    %348 = vmatmul.f32.gmra.mxu0 %v227
    %v349 = vpop.f32.mrf.mxu0
    %v350 = vadd.f32 %v203, %v349
    %351 = vmatmul.f32.gmra.mxu0 %v230
    %v352 = vpop.f32.mrf.mxu0
    %v353 = vadd.f32 %v203, %v352
    %354 = vdwg.mxu0
    %355 = vst [vmem:[#allocation2] sm:$0xff] %v250
    %356 = vst [vmem:[#allocation2 + $0x8] sm:$0xff] %v291
    %357 = vst [vmem:[#allocation2 + $0x10] sm:$0xff] %v332
    %358 = vst [vmem:[#allocation2 + $0x18] sm:$0xff] %v253
    %359 = vst [vmem:[#allocation2 + $0x20] sm:$0xff] %v294
    %360 = vst [vmem:[#allocation2 + $0x28] sm:$0xff] %v335
    %361 = vst [vmem:[#allocation2 + $0x30] sm:$0xff] %v256
    %362 = vst [vmem:[#allocation2 + $0x38] sm:$0xff] %v297
    %363 = vst [vmem:[#allocation2 + $0x40] sm:$0xff] %v338
    %364 = vst [vmem:[#allocation2 + $0x48] sm:$0xff] %v259
    %365 = vst [vmem:[#allocation2 + $0x50] sm:$0xff] %v300
    %366 = vst [vmem:[#allocation2 + $0x58] sm:$0xff] %v341
    %367 = vst [vmem:[#allocation2 + $0x60] sm:$0xff] %v262
    %368 = vst [vmem:[#allocation2 + $0x68] sm:$0xff] %v303
    %369 = vst [vmem:[#allocation2 + $0x70] sm:$0xff] %v344
    %370 = vst [vmem:[#allocation2 + $0x78] sm:$0xff] %v265
    %371 = vst [vmem:[#allocation2 + $0x80] sm:$0xff] %v306
    %372 = vst [vmem:[#allocation2 + $0x88] sm:$0xff] %v347
    %373 = vst [vmem:[#allocation2 + $0x90] sm:$0xff] %v268
    %374 = vst [vmem:[#allocation2 + $0x98] sm:$0xff] %v309
    %375 = vst [vmem:[#allocation2 + $0xa0] sm:$0xff] %v350
    %376 = vst [vmem:[#allocation2 + $0xa8] sm:$0xff] %v271
    %377 = vst [vmem:[#allocation2 + $0xb0] sm:$0xff] %v312
    %378 = vst [vmem:[#allocation2 + $0xb8] sm:$0xff] %v353
    %v379 = vld [vmem:[#allocation12] sm:$0xff]
    %v380 = vld [vmem:[#allocation12 + $0x8] sm:$0xff]
    %v381 = vld [vmem:[#allocation12 + $0x10] sm:$0xff]
    %v382 = vld [vmem:[#allocation12 + $0x18] sm:$0xff]
    %v383 = vld [vmem:[#allocation12 + $0x20] sm:$0xff]
    %v384 = vld [vmem:[#allocation12 + $0x28] sm:$0xff]
    %v385 = vld [vmem:[#allocation12 + $0x30] sm:$0xff]
    %v386 = vld [vmem:[#allocation12 + $0x38] sm:$0xff]
    %v387 = vld [vmem:[#allocation12 + $0x40] sm:$0xff]
    %v388 = vld [vmem:[#allocation12 + $0x48] sm:$0xff]
    %v389 = vld [vmem:[#allocation12 + $0x50] sm:$0xff]
    %v390 = vld [vmem:[#allocation12 + $0x58] sm:$0xff]
    %v391 = vld [vmem:[#allocation12 + $0x60] sm:$0xff]
    %v392 = vld [vmem:[#allocation12 + $0x68] sm:$0xff]
    %v393 = vld [vmem:[#allocation12 + $0x70] sm:$0xff]
    %v394 = vld [vmem:[#allocation12 + $0x78] sm:$0xff]
    %v395 = vld [vmem:[#allocation12 + $0x80] sm:$0xff]
    %v396 = vld [vmem:[#allocation12 + $0x88] sm:$0xff]
    %v397 = vld [vmem:[#allocation12 + $0x90] sm:$0xff]
    %v398 = vld [vmem:[#allocation12 + $0x98] sm:$0xff]
    %v399 = vld [vmem:[#allocation12 + $0xa0] sm:$0xff]
    %v400 = vld [vmem:[#allocation12 + $0xa8] sm:$0xff]
    %v401 = vld [vmem:[#allocation12 + $0xb0] sm:$0xff]
    %v402 = vld [vmem:[#allocation12 + $0xb8] sm:$0xff]
    %v403 = vld [vmem:[#allocation12 + $0xc0] sm:$0xff]
    %v404 = vld [vmem:[#allocation12 + $0xc8] sm:$0xff]
    %v405 = vld [vmem:[#allocation12 + $0xd0] sm:$0xff]
    %v406 = vld [vmem:[#allocation12 + $0xd8] sm:$0xff]
    %v407 = vld [vmem:[#allocation12 + $0xe0] sm:$0xff]
    %v408 = vld [vmem:[#allocation12 + $0xe8] sm:$0xff]
    %v409 = vld [vmem:[#allocation12 + $0xf0] sm:$0xff]
    %v410 = vld [vmem:[#allocation12 + $0xf8] sm:$0xff]
    %v411 = vld [vmem:[#allocation12 + $0x100] sm:$0xff]
    %v412 = vld [vmem:[#allocation12 + $0x108] sm:$0xff]
    %v413 = vld [vmem:[#allocation12 + $0x110] sm:$0xff]
    %v414 = vld [vmem:[#allocation12 + $0x118] sm:$0xff]
    %v415 = vld [vmem:[#allocation12 + $0x120] sm:$0xff]
    %v416 = vld [vmem:[#allocation12 + $0x128] sm:$0xff]
    %v417 = vld [vmem:[#allocation12 + $0x130] sm:$0xff]
    %v418 = vld [vmem:[#allocation12 + $0x138] sm:$0xff]
    %v419 = vld [vmem:[#allocation12 + $0x140] sm:$0xff]
    %v420 = vld [vmem:[#allocation12 + $0x148] sm:$0xff]
    %v421 = vld [vmem:[#allocation12 + $0x150] sm:$0xff]
    %v422 = vld [vmem:[#allocation12 + $0x158] sm:$0xff]
    %v423 = vld [vmem:[#allocation12 + $0x160] sm:$0xff]
    %v424 = vld [vmem:[#allocation12 + $0x168] sm:$0xff]
    %v425 = vld [vmem:[#allocation12 + $0x170] sm:$0xff]
    %v426 = vld [vmem:[#allocation12 + $0x178] sm:$0xff]
    %v427 = vld [vmem:[%s6] sm:$0x1]
    %v428 = vld [vmem:[#allocation2] sm:$0xff]
    %v429 = vld [vmem:[#allocation2 + $0x8] sm:$0xff]
    %v430 = vld [vmem:[#allocation2 + $0x10] sm:$0xff]
    %v431 = vld [vmem:[#allocation2 + $0xa8] sm:$0xff]
    %v432 = vld [vmem:[#allocation2 + $0xb0] sm:$0xff]
    %v433 = vld [vmem:[#allocation2 + $0xb8] sm:$0xff]
    %v434 = vsel %vm164, %v428, %v431
    %v435 = vsel %vm165, %v429, %v432
    %v436 = vsel %vm166, %v430, %v433
    %437 = vmatpush.msra.mxu0 %v424
    %438 = vmatpush.msra.mxu0 %v421
    %439 = vmatpush.msra.mxu0 %v418
    %440 = vmatpush.msra.mxu0 %v415
    %441 = vmatpush.msra.mxu0 %v412
    %442 = vmatpush.msra.mxu0 %v409
    %443 = vmatpush.msra.mxu0 %v406
    %444 = vmatpush.msra.mxu0 %v403
    %445 = vmatpush.msra.mxu0 %v400
    %446 = vmatpush.msra.mxu0 %v397
    %447 = vmatpush.msra.mxu0 %v394
    %448 = vmatpush.msra.mxu0 %v391
    %449 = vmatpush.msra.mxu0 %v388
    %450 = vmatpush.msra.mxu0 %v385
    %451 = vmatpush.msra.mxu0 %v382
    %452 = vmatpush.msra.mxu0 %v379
    %453 = vmatmul.f32.gmra.mxu0 0.0
    %v454 = vpop.f32.mrf.mxu0
    %v455 = vadd.f32 0.0, %v454
    %456 = vdwg.mxu0
    %457 = vmatpush.msra.mxu0 %v425
    %458 = vmatpush.msra.mxu0 %v422
    %459 = vmatpush.msra.mxu0 %v419
    %460 = vmatpush.msra.mxu0 %v416
    %461 = vmatpush.msra.mxu0 %v413
    %462 = vmatpush.msra.mxu0 %v410
    %463 = vmatpush.msra.mxu0 %v407
    %464 = vmatpush.msra.mxu0 %v404
    %465 = vmatpush.msra.mxu0 %v401
    %466 = vmatpush.msra.mxu0 %v398
    %467 = vmatpush.msra.mxu0 %v395
    %468 = vmatpush.msra.mxu0 %v392
    %469 = vmatpush.msra.mxu0 %v389
    %470 = vmatpush.msra.mxu0 %v386
    %471 = vmatpush.msra.mxu0 %v383
    %472 = vmatpush.msra.mxu0 %v380
    %473 = vmatmul.f32.gmra.mxu0 0.0
    %v474 = vpop.f32.mrf.mxu0
    %v475 = vadd.f32 0.0, %v474
    %476 = vdwg.mxu0
    %477 = vmatpush.msra.mxu0 %v426
    %478 = vmatpush.msra.mxu0 %v423
    %479 = vmatpush.msra.mxu0 %v420
    %480 = vmatpush.msra.mxu0 %v417
    %481 = vmatpush.msra.mxu0 %v414
    %482 = vmatpush.msra.mxu0 %v411
    %483 = vmatpush.msra.mxu0 %v408
    %484 = vmatpush.msra.mxu0 %v405
    %485 = vmatpush.msra.mxu0 %v402
    %486 = vmatpush.msra.mxu0 %v399
    %487 = vmatpush.msra.mxu0 %v396
    %488 = vmatpush.msra.mxu0 %v393
    %489 = vmatpush.msra.mxu0 %v390
    %490 = vmatpush.msra.mxu0 %v387
    %491 = vmatpush.msra.mxu0 %v384
    %492 = vmatpush.msra.mxu0 %v381
    %493 = vmatmul.f32.gmra.mxu0 0.0
    %v494 = vpop.f32.mrf.mxu0
    %v495 = vadd.f32 0.0, %v494
    %496 = vdwg.mxu0
    %v497 = vadd.f32 %v434, %v455
    %v498 = vxor.u32 %v497, 2147483648
    %v499 = vmul.f32 %v498, 1.442695
    %v500 = vpow.pop %v499
    %v501 = vadd.f32 %v500, 1.0
    %v502 = vrcp.pop %v501
    %v503 = vmul.f32 %v501, %v502
    %v504 = vsub.f32 1.0, %v503
    %v505 = vmul.f32 %v502, %v504
    %v506 = vadd.f32 %v502, %v505
    %vm507 = vweird.f32 %v501
    %vm508 = vweird.f32 %v502
    %vm509 = vmor %vm507, %vm508
    %v510 = vsel %vm509, %v502, %v506
    %v511 = vand.u32 2147483647, %v501
    %vm512 = vcmp.eq.f32.partialorder %v511, 8.507059e+37
    %v513 = vand.u32 %v501, 2147483648
    %v514 = vor.u32 1.1754944e-38, %v513
    %v515 = vsel %vm512, %v514, %v510
    %v516 = vmul.f32 1.0, %v515
    %v517 = vadd.f32 %v435, %v475
    %v518 = vxor.u32 %v517, 2147483648
    %v519 = vmul.f32 %v518, 1.442695
    %v520 = vpow.pop %v519
    %v521 = vadd.f32 %v520, 1.0
    %v522 = vrcp.pop %v521
    %v523 = vmul.f32 %v521, %v522
    %v524 = vsub.f32 1.0, %v523
    %v525 = vmul.f32 %v522, %v524
    %v526 = vadd.f32 %v522, %v525
    %vm527 = vweird.f32 %v521
    %vm528 = vweird.f32 %v522
    %vm529 = vmor %vm527, %vm528
    %v530 = vsel %vm529, %v522, %v526
    %v531 = vand.u32 2147483647, %v521
    %vm532 = vcmp.eq.f32.partialorder %v531, 8.507059e+37
    %v533 = vand.u32 %v521, 2147483648
    %v534 = vor.u32 1.1754944e-38, %v533
    %v535 = vsel %vm532, %v534, %v530
    %v536 = vmul.f32 1.0, %v535
    %v538 = vperm.slane %v427, 0
    %v540 = vadd.f32 %v495, %v538
    %v541 = vmul.f32 %v516, %v540
    %v542 = vadd.f32 %v436, %v541
    %v543 = vtanh.pop %v542
    %v544 = vsub.f32 1.0, %v536
    %v545 = vmul.f32 %v544, %v543
    %v546 = vmul.f32 %v536, 0.0
    %v547 = vadd.f32 %v545, %v546
    %v548 = vld [vmem:[#allocation7] sm:$0xff]
    %v549 = vmul.f32 %v548, %v547
    %550 = vst.msk [vmem:[#allocation3] sm:$0xff] %vm207, %v549
    %vm551 = vcmask 1048064
    %552 = vst.msk [vmem:[#allocation3 + $0x38] sm:$0xff] %vm551, %v549
    %v553 = vadd.f32 %v549, 0.0
    %v554 = vld [vmem:[#allocation2 + $0x18] sm:$0xff]
    %v555 = vld [vmem:[#allocation2 + $0x20] sm:$0xff]
    %v556 = vld [vmem:[#allocation2 + $0x28] sm:$0xff]
    %v557 = vld [vmem:[#allocation2 + $0x90] sm:$0xff]
    %v558 = vld [vmem:[#allocation2 + $0x98] sm:$0xff]
    %v559 = vld [vmem:[#allocation2 + $0xa0] sm:$0xff]
    %v560 = vsel %vm164, %v554, %v557
    %v561 = vsel %vm165, %v555, %v558
    %v562 = vsel %vm166, %v556, %v559
    %563 = vmatpush.msra.mxu0 %v424
    %564 = vmatpush.msra.mxu0 %v421
    %565 = vmatpush.msra.mxu0 %v418
    %566 = vmatpush.msra.mxu0 %v415
    %567 = vmatpush.msra.mxu0 %v412
    %568 = vmatpush.msra.mxu0 %v409
    %569 = vmatpush.msra.mxu0 %v406
    %570 = vmatpush.msra.mxu0 %v403
    %571 = vmatpush.msra.mxu0 %v400
    %572 = vmatpush.msra.mxu0 %v397
    %573 = vmatpush.msra.mxu0 %v394
    %574 = vmatpush.msra.mxu0 %v391
    %575 = vmatpush.msra.mxu0 %v388
    %576 = vmatpush.msra.mxu0 %v385
    %577 = vmatpush.msra.mxu0 %v382
    %578 = vmatpush.msra.mxu0 %v379
    %579 = vmatmul.f32.gmra.mxu0 %v553
    %v580 = vpop.f32.mrf.mxu0
    %v581 = vadd.f32 0.0, %v580
    %582 = vdwg.mxu0
    %583 = vmatpush.msra.mxu0 %v425
    %584 = vmatpush.msra.mxu0 %v422
    %585 = vmatpush.msra.mxu0 %v419
    %586 = vmatpush.msra.mxu0 %v416
    %587 = vmatpush.msra.mxu0 %v413
    %588 = vmatpush.msra.mxu0 %v410
    %589 = vmatpush.msra.mxu0 %v407
    %590 = vmatpush.msra.mxu0 %v404
    %591 = vmatpush.msra.mxu0 %v401
    %592 = vmatpush.msra.mxu0 %v398
    %593 = vmatpush.msra.mxu0 %v395
    %594 = vmatpush.msra.mxu0 %v392
    %595 = vmatpush.msra.mxu0 %v389
    %596 = vmatpush.msra.mxu0 %v386
    %597 = vmatpush.msra.mxu0 %v383
    %598 = vmatpush.msra.mxu0 %v380
    %599 = vmatmul.f32.gmra.mxu0 %v553
    %v600 = vpop.f32.mrf.mxu0
    %v601 = vadd.f32 0.0, %v600
    %602 = vdwg.mxu0
    %603 = vmatpush.msra.mxu0 %v426
    %604 = vmatpush.msra.mxu0 %v423
    %605 = vmatpush.msra.mxu0 %v420
    %606 = vmatpush.msra.mxu0 %v417
    %607 = vmatpush.msra.mxu0 %v414
    %608 = vmatpush.msra.mxu0 %v411
    %609 = vmatpush.msra.mxu0 %v408
    %610 = vmatpush.msra.mxu0 %v405
    %611 = vmatpush.msra.mxu0 %v402
    %612 = vmatpush.msra.mxu0 %v399
    %613 = vmatpush.msra.mxu0 %v396
    %614 = vmatpush.msra.mxu0 %v393
    %615 = vmatpush.msra.mxu0 %v390
    %616 = vmatpush.msra.mxu0 %v387
    %617 = vmatpush.msra.mxu0 %v384
    %618 = vmatpush.msra.mxu0 %v381
    %619 = vmatmul.f32.gmra.mxu0 %v553
    %v620 = vpop.f32.mrf.mxu0
    %v621 = vadd.f32 0.0, %v620
    %622 = vdwg.mxu0
    %v623 = vadd.f32 %v560, %v581
    %v624 = vxor.u32 %v623, 2147483648
    %v625 = vmul.f32 %v624, 1.442695
    %v626 = vpow.pop %v625
    %v627 = vadd.f32 %v626, 1.0
    %v628 = vrcp.pop %v627
    %v629 = vmul.f32 %v627, %v628
    %v630 = vsub.f32 1.0, %v629
    %v631 = vmul.f32 %v628, %v630
    %v632 = vadd.f32 %v628, %v631
    %vm633 = vweird.f32 %v627
    %vm634 = vweird.f32 %v628
    %vm635 = vmor %vm633, %vm634
    %v636 = vsel %vm635, %v628, %v632
    %v637 = vand.u32 2147483647, %v627
    %vm638 = vcmp.eq.f32.partialorder %v637, 8.507059e+37
    %v639 = vand.u32 %v627, 2147483648
    %v640 = vor.u32 1.1754944e-38, %v639
    %v641 = vsel %vm638, %v640, %v636
    %v642 = vmul.f32 1.0, %v641
    %v643 = vadd.f32 %v561, %v601
    %v644 = vxor.u32 %v643, 2147483648
    %v645 = vmul.f32 %v644, 1.442695
    %v646 = vpow.pop %v645
    %v647 = vadd.f32 %v646, 1.0
    %v648 = vrcp.pop %v647
    %v649 = vmul.f32 %v647, %v648
    %v650 = vsub.f32 1.0, %v649
    %v651 = vmul.f32 %v648, %v650
    %v652 = vadd.f32 %v648, %v651
    %vm653 = vweird.f32 %v647
    %vm654 = vweird.f32 %v648
    %vm655 = vmor %vm653, %vm654
    %v656 = vsel %vm655, %v648, %v652
    %v657 = vand.u32 2147483647, %v647
    %vm658 = vcmp.eq.f32.partialorder %v657, 8.507059e+37
    %v659 = vand.u32 %v647, 2147483648
    %v660 = vor.u32 1.1754944e-38, %v659
    %v661 = vsel %vm658, %v660, %v656
    %v662 = vmul.f32 1.0, %v661
    %v663 = vadd.f32 %v621, %v538
    %v664 = vmul.f32 %v642, %v663
    %v665 = vadd.f32 %v562, %v664
    %v666 = vtanh.pop %v665
    %v667 = vsub.f32 1.0, %v662
    %v668 = vmul.f32 %v667, %v666
    %v669 = vmul.f32 %v662, %v553
    %v670 = vadd.f32 %v668, %v669
    %s671 = scalar_lea.vmem [#allocation7], 8
    %v672 = vld [vmem:[%s671] sm:$0xff]
    %v673 = vmul.f32 %v672, %v670
    %674 = vst.msk [vmem:[#allocation3 + $0x8] sm:$0xff] %vm207, %v673
    %675 = vst.msk [vmem:[#allocation3 + $0x30] sm:$0xff] %vm551, %v673
    %v676 = vsub.f32 %v670, %v553
    %v677 = vmul.f32 %v672, %v676
    %v678 = vadd.f32 %v553, %v677
    %v679 = vld [vmem:[#allocation2 + $0x30] sm:$0xff]
    %v680 = vld [vmem:[#allocation2 + $0x38] sm:$0xff]
    %v681 = vld [vmem:[#allocation2 + $0x40] sm:$0xff]
    %v682 = vld [vmem:[#allocation2 + $0x78] sm:$0xff]
    %v683 = vld [vmem:[#allocation2 + $0x80] sm:$0xff]
    %v684 = vld [vmem:[#allocation2 + $0x88] sm:$0xff]
    %v685 = vsel %vm164, %v679, %v682
    %v686 = vsel %vm165, %v680, %v683
    %v687 = vsel %vm166, %v681, %v684
    %688 = vmatpush.msra.mxu0 %v424
    %689 = vmatpush.msra.mxu0 %v421
    %690 = vmatpush.msra.mxu0 %v418
    %691 = vmatpush.msra.mxu0 %v415
    %692 = vmatpush.msra.mxu0 %v412
    %693 = vmatpush.msra.mxu0 %v409
    %694 = vmatpush.msra.mxu0 %v406
    %695 = vmatpush.msra.mxu0 %v403
    %696 = vmatpush.msra.mxu0 %v400
    %697 = vmatpush.msra.mxu0 %v397
    %698 = vmatpush.msra.mxu0 %v394
    %699 = vmatpush.msra.mxu0 %v391
    %700 = vmatpush.msra.mxu0 %v388
    %701 = vmatpush.msra.mxu0 %v385
    %702 = vmatpush.msra.mxu0 %v382
    %703 = vmatpush.msra.mxu0 %v379
    %704 = vmatmul.f32.gmra.mxu0 %v678
    %v705 = vpop.f32.mrf.mxu0
    %v706 = vadd.f32 0.0, %v705
    %707 = vdwg.mxu0
    %708 = vmatpush.msra.mxu0 %v425
    %709 = vmatpush.msra.mxu0 %v422
    %710 = vmatpush.msra.mxu0 %v419
    %711 = vmatpush.msra.mxu0 %v416
    %712 = vmatpush.msra.mxu0 %v413
    %713 = vmatpush.msra.mxu0 %v410
    %714 = vmatpush.msra.mxu0 %v407
    %715 = vmatpush.msra.mxu0 %v404
    %716 = vmatpush.msra.mxu0 %v401
    %717 = vmatpush.msra.mxu0 %v398
    %718 = vmatpush.msra.mxu0 %v395
    %719 = vmatpush.msra.mxu0 %v392
    %720 = vmatpush.msra.mxu0 %v389
    %721 = vmatpush.msra.mxu0 %v386
    %722 = vmatpush.msra.mxu0 %v383
    %723 = vmatpush.msra.mxu0 %v380
    %724 = vmatmul.f32.gmra.mxu0 %v678
    %v725 = vpop.f32.mrf.mxu0
    %v726 = vadd.f32 0.0, %v725
    %727 = vdwg.mxu0
    %728 = vmatpush.msra.mxu0 %v426
    %729 = vmatpush.msra.mxu0 %v423
    %730 = vmatpush.msra.mxu0 %v420
    %731 = vmatpush.msra.mxu0 %v417
    %732 = vmatpush.msra.mxu0 %v414
    %733 = vmatpush.msra.mxu0 %v411
    %734 = vmatpush.msra.mxu0 %v408
    %735 = vmatpush.msra.mxu0 %v405
    %736 = vmatpush.msra.mxu0 %v402
    %737 = vmatpush.msra.mxu0 %v399
    %738 = vmatpush.msra.mxu0 %v396
    %739 = vmatpush.msra.mxu0 %v393
    %740 = vmatpush.msra.mxu0 %v390
    %741 = vmatpush.msra.mxu0 %v387
    %742 = vmatpush.msra.mxu0 %v384
    %743 = vmatpush.msra.mxu0 %v381
    %744 = vmatmul.f32.gmra.mxu0 %v678
    %v745 = vpop.f32.mrf.mxu0
    %v746 = vadd.f32 0.0, %v745
    %747 = vdwg.mxu0
    %v748 = vadd.f32 %v685, %v706
    %v749 = vxor.u32 %v748, 2147483648
    %v750 = vmul.f32 %v749, 1.442695
    %v751 = vpow.pop %v750
    %v752 = vadd.f32 %v751, 1.0
    %v753 = vrcp.pop %v752
    %v754 = vmul.f32 %v752, %v753
    %v755 = vsub.f32 1.0, %v754
    %v756 = vmul.f32 %v753, %v755
    %v757 = vadd.f32 %v753, %v756
    %vm758 = vweird.f32 %v752
    %vm759 = vweird.f32 %v753
    %vm760 = vmor %vm758, %vm759
    %v761 = vsel %vm760, %v753, %v757
    %v762 = vand.u32 2147483647, %v752
    %vm763 = vcmp.eq.f32.partialorder %v762, 8.507059e+37
    %v764 = vand.u32 %v752, 2147483648
    %v765 = vor.u32 1.1754944e-38, %v764
    %v766 = vsel %vm763, %v765, %v761
    %v767 = vmul.f32 1.0, %v766
    %v768 = vadd.f32 %v686, %v726
    %v769 = vxor.u32 %v768, 2147483648
    %v770 = vmul.f32 %v769, 1.442695
    %v771 = vpow.pop %v770
    %v772 = vadd.f32 %v771, 1.0
    %v773 = vrcp.pop %v772
    %v774 = vmul.f32 %v772, %v773
    %v775 = vsub.f32 1.0, %v774
    %v776 = vmul.f32 %v773, %v775
    %v777 = vadd.f32 %v773, %v776
    %vm778 = vweird.f32 %v772
    %vm779 = vweird.f32 %v773
    %vm780 = vmor %vm778, %vm779
    %v781 = vsel %vm780, %v773, %v777
    %v782 = vand.u32 2147483647, %v772
    %vm783 = vcmp.eq.f32.partialorder %v782, 8.507059e+37
    %v784 = vand.u32 %v772, 2147483648
    %v785 = vor.u32 1.1754944e-38, %v784
    %v786 = vsel %vm783, %v785, %v781
    %v787 = vmul.f32 1.0, %v786
    %v788 = vadd.f32 %v746, %v538
    %v789 = vmul.f32 %v767, %v788
    %v790 = vadd.f32 %v687, %v789
    %v791 = vtanh.pop %v790
    %v792 = vsub.f32 1.0, %v787
    %v793 = vmul.f32 %v792, %v791
    %v794 = vmul.f32 %v787, %v678
    %v795 = vadd.f32 %v793, %v794
    %s796 = scalar_lea.vmem [#allocation7], 16
    %v797 = vld [vmem:[%s796] sm:$0xff]
    %v798 = vmul.f32 %v797, %v795
    %799 = vst.msk [vmem:[#allocation3 + $0x10] sm:$0xff] %vm207, %v798
    %800 = vst.msk [vmem:[#allocation3 + $0x28] sm:$0xff] %vm551, %v798
    %v801 = vsub.f32 %v795, %v678
    %v802 = vmul.f32 %v797, %v801
    %v803 = vadd.f32 %v678, %v802
    %v804 = vld [vmem:[#allocation2 + $0x48] sm:$0xff]
    %v805 = vld [vmem:[#allocation2 + $0x50] sm:$0xff]
    %v806 = vld [vmem:[#allocation2 + $0x58] sm:$0xff]
    %v807 = vld [vmem:[#allocation2 + $0x60] sm:$0xff]
    %v808 = vld [vmem:[#allocation2 + $0x68] sm:$0xff]
    %v809 = vld [vmem:[#allocation2 + $0x70] sm:$0xff]
    %v810 = vsel %vm164, %v804, %v807
    %v811 = vsel %vm165, %v805, %v808
    %v812 = vsel %vm166, %v806, %v809
    %813 = vmatpush.msra.mxu0 %v424
    %814 = vmatpush.msra.mxu0 %v421
    %815 = vmatpush.msra.mxu0 %v418
    %816 = vmatpush.msra.mxu0 %v415
    %817 = vmatpush.msra.mxu0 %v412
    %818 = vmatpush.msra.mxu0 %v409
    %819 = vmatpush.msra.mxu0 %v406
    %820 = vmatpush.msra.mxu0 %v403
    %821 = vmatpush.msra.mxu0 %v400
    %822 = vmatpush.msra.mxu0 %v397
    %823 = vmatpush.msra.mxu0 %v394
    %824 = vmatpush.msra.mxu0 %v391
    %825 = vmatpush.msra.mxu0 %v388
    %826 = vmatpush.msra.mxu0 %v385
    %827 = vmatpush.msra.mxu0 %v382
    %828 = vmatpush.msra.mxu0 %v379
    %829 = vmatmul.f32.gmra.mxu0 %v803
    %v830 = vpop.f32.mrf.mxu0
    %v831 = vadd.f32 0.0, %v830
    %832 = vdwg.mxu0
    %833 = vmatpush.msra.mxu0 %v425
    %834 = vmatpush.msra.mxu0 %v422
    %835 = vmatpush.msra.mxu0 %v419
    %836 = vmatpush.msra.mxu0 %v416
    %837 = vmatpush.msra.mxu0 %v413
    %838 = vmatpush.msra.mxu0 %v410
    %839 = vmatpush.msra.mxu0 %v407
    %840 = vmatpush.msra.mxu0 %v404
    %841 = vmatpush.msra.mxu0 %v401
    %842 = vmatpush.msra.mxu0 %v398
    %843 = vmatpush.msra.mxu0 %v395
    %844 = vmatpush.msra.mxu0 %v392
    %845 = vmatpush.msra.mxu0 %v389
    %846 = vmatpush.msra.mxu0 %v386
    %847 = vmatpush.msra.mxu0 %v383
    %848 = vmatpush.msra.mxu0 %v380
    %849 = vmatmul.f32.gmra.mxu0 %v803
    %v850 = vpop.f32.mrf.mxu0
    %v851 = vadd.f32 0.0, %v850
    %852 = vdwg.mxu0
    %853 = vmatpush.msra.mxu0 %v426
    %854 = vmatpush.msra.mxu0 %v423
    %855 = vmatpush.msra.mxu0 %v420
    %856 = vmatpush.msra.mxu0 %v417
    %857 = vmatpush.msra.mxu0 %v414
    %858 = vmatpush.msra.mxu0 %v411
    %859 = vmatpush.msra.mxu0 %v408
    %860 = vmatpush.msra.mxu0 %v405
    %861 = vmatpush.msra.mxu0 %v402
    %862 = vmatpush.msra.mxu0 %v399
    %863 = vmatpush.msra.mxu0 %v396
    %864 = vmatpush.msra.mxu0 %v393
    %865 = vmatpush.msra.mxu0 %v390
    %866 = vmatpush.msra.mxu0 %v387
    %867 = vmatpush.msra.mxu0 %v384
    %868 = vmatpush.msra.mxu0 %v381
    %869 = vmatmul.f32.gmra.mxu0 %v803
    %v870 = vpop.f32.mrf.mxu0
    %v871 = vadd.f32 0.0, %v870
    %872 = vdwg.mxu0
    %v873 = vadd.f32 %v810, %v831
    %v874 = vxor.u32 %v873, 2147483648
    %v875 = vmul.f32 %v874, 1.442695
    %v876 = vpow.pop %v875
    %v877 = vadd.f32 %v876, 1.0
    %v878 = vrcp.pop %v877
    %v879 = vmul.f32 %v877, %v878
    %v880 = vsub.f32 1.0, %v879
    %v881 = vmul.f32 %v878, %v880
    %v882 = vadd.f32 %v878, %v881
    %vm883 = vweird.f32 %v877
    %vm884 = vweird.f32 %v878
    %vm885 = vmor %vm883, %vm884
    %v886 = vsel %vm885, %v878, %v882
    %v887 = vand.u32 2147483647, %v877
    %vm888 = vcmp.eq.f32.partialorder %v887, 8.507059e+37
    %v889 = vand.u32 %v877, 2147483648
    %v890 = vor.u32 1.1754944e-38, %v889
    %v891 = vsel %vm888, %v890, %v886
    %v892 = vmul.f32 1.0, %v891
    %v893 = vadd.f32 %v811, %v851
    %v894 = vxor.u32 %v893, 2147483648
    %v895 = vmul.f32 %v894, 1.442695
    %v896 = vpow.pop %v895
    %v897 = vadd.f32 %v896, 1.0
    %v898 = vrcp.pop %v897
    %v899 = vmul.f32 %v897, %v898
    %v900 = vsub.f32 1.0, %v899
    %v901 = vmul.f32 %v898, %v900
    %v902 = vadd.f32 %v898, %v901
    %vm903 = vweird.f32 %v897
    %vm904 = vweird.f32 %v898
    %vm905 = vmor %vm903, %vm904
    %v906 = vsel %vm905, %v898, %v902
    %v907 = vand.u32 2147483647, %v897
    %vm908 = vcmp.eq.f32.partialorder %v907, 8.507059e+37
    %v909 = vand.u32 %v897, 2147483648
    %v910 = vor.u32 1.1754944e-38, %v909
    %v911 = vsel %vm908, %v910, %v906
    %v912 = vmul.f32 1.0, %v911
    %v913 = vadd.f32 %v871, %v538
    %v914 = vmul.f32 %v892, %v913
    %v915 = vadd.f32 %v812, %v914
    %v916 = vtanh.pop %v915
    %v917 = vsub.f32 1.0, %v912
    %v918 = vmul.f32 %v917, %v916
    %v919 = vmul.f32 %v912, %v803
    %v920 = vadd.f32 %v918, %v919
    %s921 = scalar_lea.vmem [#allocation7], 24
    %v922 = vld [vmem:[%s921] sm:$0xff]
    %v923 = vmul.f32 %v922, %v920
    %924 = vst.msk [vmem:[#allocation3 + $0x18] sm:$0xff] %vm207, %v923
    %925 = vst.msk [vmem:[#allocation3 + $0x20] sm:$0xff] %vm551, %v923
    %v926 = vsub.f32 %v920, %v803
    %v927 = vmul.f32 %v922, %v926
    %v928 = vadd.f32 %v803, %v927
    %v929 = vld [vmem:[#allocation2 + $0x60] sm:$0xff]
    %v930 = vld [vmem:[#allocation2 + $0x68] sm:$0xff]
    %v931 = vld [vmem:[#allocation2 + $0x70] sm:$0xff]
    %v932 = vld [vmem:[#allocation2 + $0x48] sm:$0xff]
    %v933 = vld [vmem:[#allocation2 + $0x50] sm:$0xff]
    %v934 = vld [vmem:[#allocation2 + $0x58] sm:$0xff]
    %v935 = vsel %vm164, %v929, %v932
    %v936 = vsel %vm165, %v930, %v933
    %v937 = vsel %vm166, %v931, %v934
    %938 = vmatpush.msra.mxu0 %v424
    %939 = vmatpush.msra.mxu0 %v421
    %940 = vmatpush.msra.mxu0 %v418
    %941 = vmatpush.msra.mxu0 %v415
    %942 = vmatpush.msra.mxu0 %v412
    %943 = vmatpush.msra.mxu0 %v409
    %944 = vmatpush.msra.mxu0 %v406
    %945 = vmatpush.msra.mxu0 %v403
    %946 = vmatpush.msra.mxu0 %v400
    %947 = vmatpush.msra.mxu0 %v397
    %948 = vmatpush.msra.mxu0 %v394
    %949 = vmatpush.msra.mxu0 %v391
    %950 = vmatpush.msra.mxu0 %v388
    %951 = vmatpush.msra.mxu0 %v385
    %952 = vmatpush.msra.mxu0 %v382
    %953 = vmatpush.msra.mxu0 %v379
    %954 = vmatmul.f32.gmra.mxu0 %v928
    %v955 = vpop.f32.mrf.mxu0
    %v956 = vadd.f32 0.0, %v955
    %957 = vdwg.mxu0
    %958 = vmatpush.msra.mxu0 %v425
    %959 = vmatpush.msra.mxu0 %v422
    %960 = vmatpush.msra.mxu0 %v419
    %961 = vmatpush.msra.mxu0 %v416
    %962 = vmatpush.msra.mxu0 %v413
    %963 = vmatpush.msra.mxu0 %v410
    %964 = vmatpush.msra.mxu0 %v407
    %965 = vmatpush.msra.mxu0 %v404
    %966 = vmatpush.msra.mxu0 %v401
    %967 = vmatpush.msra.mxu0 %v398
    %968 = vmatpush.msra.mxu0 %v395
    %969 = vmatpush.msra.mxu0 %v392
    %970 = vmatpush.msra.mxu0 %v389
    %971 = vmatpush.msra.mxu0 %v386
    %972 = vmatpush.msra.mxu0 %v383
    %973 = vmatpush.msra.mxu0 %v380
    %974 = vmatmul.f32.gmra.mxu0 %v928
    %v975 = vpop.f32.mrf.mxu0
    %v976 = vadd.f32 0.0, %v975
    %977 = vdwg.mxu0
    %978 = vmatpush.msra.mxu0 %v426
    %979 = vmatpush.msra.mxu0 %v423
    %980 = vmatpush.msra.mxu0 %v420
    %981 = vmatpush.msra.mxu0 %v417
    %982 = vmatpush.msra.mxu0 %v414
    %983 = vmatpush.msra.mxu0 %v411
    %984 = vmatpush.msra.mxu0 %v408
    %985 = vmatpush.msra.mxu0 %v405
    %986 = vmatpush.msra.mxu0 %v402
    %987 = vmatpush.msra.mxu0 %v399
    %988 = vmatpush.msra.mxu0 %v396
    %989 = vmatpush.msra.mxu0 %v393
    %990 = vmatpush.msra.mxu0 %v390
    %991 = vmatpush.msra.mxu0 %v387
    %992 = vmatpush.msra.mxu0 %v384
    %993 = vmatpush.msra.mxu0 %v381
    %994 = vmatmul.f32.gmra.mxu0 %v928
    %v995 = vpop.f32.mrf.mxu0
    %v996 = vadd.f32 0.0, %v995
    %997 = vdwg.mxu0
    %v998 = vadd.f32 %v935, %v956
    %v999 = vxor.u32 %v998, 2147483648
    %v1000 = vmul.f32 %v999, 1.442695
    %v1001 = vpow.pop %v1000
    %v1002 = vadd.f32 %v1001, 1.0
    %v1003 = vrcp.pop %v1002
    %v1004 = vmul.f32 %v1002, %v1003
    %v1005 = vsub.f32 1.0, %v1004
    %v1006 = vmul.f32 %v1003, %v1005
    %v1007 = vadd.f32 %v1003, %v1006
    %vm1008 = vweird.f32 %v1002
    %vm1009 = vweird.f32 %v1003
    %vm1010 = vmor %vm1008, %vm1009
    %v1011 = vsel %vm1010, %v1003, %v1007
    %v1012 = vand.u32 2147483647, %v1002
    %vm1013 = vcmp.eq.f32.partialorder %v1012, 8.507059e+37
    %v1014 = vand.u32 %v1002, 2147483648
    %v1015 = vor.u32 1.1754944e-38, %v1014
    %v1016 = vsel %vm1013, %v1015, %v1011
    %v1017 = vmul.f32 1.0, %v1016
    %v1018 = vadd.f32 %v936, %v976
    %v1019 = vxor.u32 %v1018, 2147483648
    %v1020 = vmul.f32 %v1019, 1.442695
    %v1021 = vpow.pop %v1020
    %v1022 = vadd.f32 %v1021, 1.0
    %v1023 = vrcp.pop %v1022
    %v1024 = vmul.f32 %v1022, %v1023
    %v1025 = vsub.f32 1.0, %v1024
    %v1026 = vmul.f32 %v1023, %v1025
    %v1027 = vadd.f32 %v1023, %v1026
    %vm1028 = vweird.f32 %v1022
    %vm1029 = vweird.f32 %v1023
    %vm1030 = vmor %vm1028, %vm1029
    %v1031 = vsel %vm1030, %v1023, %v1027
    %v1032 = vand.u32 2147483647, %v1022
    %vm1033 = vcmp.eq.f32.partialorder %v1032, 8.507059e+37
    %v1034 = vand.u32 %v1022, 2147483648
    %v1035 = vor.u32 1.1754944e-38, %v1034
    %v1036 = vsel %vm1033, %v1035, %v1031
    %v1037 = vmul.f32 1.0, %v1036
    %v1038 = vadd.f32 %v996, %v538
    %v1039 = vmul.f32 %v1017, %v1038
    %v1040 = vadd.f32 %v937, %v1039
    %v1041 = vtanh.pop %v1040
    %v1042 = vsub.f32 1.0, %v1037
    %v1043 = vmul.f32 %v1042, %v1041
    %v1044 = vmul.f32 %v1037, %v928
    %v1045 = vadd.f32 %v1043, %v1044
    %s1046 = scalar_lea.vmem [#allocation7], 32
    %v1047 = vld [vmem:[%s1046] sm:$0xff]
    %v1048 = vmul.f32 %v1047, %v1045
    %1049 = vst.msk [vmem:[#allocation3 + $0x20] sm:$0xff] %vm207, %v1048
    %1050 = vst.msk [vmem:[#allocation3 + $0x18] sm:$0xff] %vm551, %v1048
    %v1051 = vsub.f32 %v1045, %v928
    %v1052 = vmul.f32 %v1047, %v1051
    %v1053 = vadd.f32 %v928, %v1052
    %v1054 = vld [vmem:[#allocation2 + $0x78] sm:$0xff]
    %v1055 = vld [vmem:[#allocation2 + $0x80] sm:$0xff]
    %v1056 = vld [vmem:[#allocation2 + $0x88] sm:$0xff]
    %v1057 = vld [vmem:[#allocation2 + $0x30] sm:$0xff]
    %v1058 = vld [vmem:[#allocation2 + $0x38] sm:$0xff]
    %v1059 = vld [vmem:[#allocation2 + $0x40] sm:$0xff]
    %v1060 = vsel %vm164, %v1054, %v1057
    %v1061 = vsel %vm165, %v1055, %v1058
    %v1062 = vsel %vm166, %v1056, %v1059
    %1063 = vmatpush.msra.mxu0 %v424
    %1064 = vmatpush.msra.mxu0 %v421
    %1065 = vmatpush.msra.mxu0 %v418
    %1066 = vmatpush.msra.mxu0 %v415
    %1067 = vmatpush.msra.mxu0 %v412
    %1068 = vmatpush.msra.mxu0 %v409
    %1069 = vmatpush.msra.mxu0 %v406
    %1070 = vmatpush.msra.mxu0 %v403
    %1071 = vmatpush.msra.mxu0 %v400
    %1072 = vmatpush.msra.mxu0 %v397
    %1073 = vmatpush.msra.mxu0 %v394
    %1074 = vmatpush.msra.mxu0 %v391
    %1075 = vmatpush.msra.mxu0 %v388
    %1076 = vmatpush.msra.mxu0 %v385
    %1077 = vmatpush.msra.mxu0 %v382
    %1078 = vmatpush.msra.mxu0 %v379
    %1079 = vmatmul.f32.gmra.mxu0 %v1053
    %v1080 = vpop.f32.mrf.mxu0
    %v1081 = vadd.f32 0.0, %v1080
    %1082 = vdwg.mxu0
    %1083 = vmatpush.msra.mxu0 %v425
    %1084 = vmatpush.msra.mxu0 %v422
    %1085 = vmatpush.msra.mxu0 %v419
    %1086 = vmatpush.msra.mxu0 %v416
    %1087 = vmatpush.msra.mxu0 %v413
    %1088 = vmatpush.msra.mxu0 %v410
    %1089 = vmatpush.msra.mxu0 %v407
    %1090 = vmatpush.msra.mxu0 %v404
    %1091 = vmatpush.msra.mxu0 %v401
    %1092 = vmatpush.msra.mxu0 %v398
    %1093 = vmatpush.msra.mxu0 %v395
    %1094 = vmatpush.msra.mxu0 %v392
    %1095 = vmatpush.msra.mxu0 %v389
    %1096 = vmatpush.msra.mxu0 %v386
    %1097 = vmatpush.msra.mxu0 %v383
    %1098 = vmatpush.msra.mxu0 %v380
    %1099 = vmatmul.f32.gmra.mxu0 %v1053
    %v1100 = vpop.f32.mrf.mxu0
    %v1101 = vadd.f32 0.0, %v1100
    %1102 = vdwg.mxu0
    %1103 = vmatpush.msra.mxu0 %v426
    %1104 = vmatpush.msra.mxu0 %v423
    %1105 = vmatpush.msra.mxu0 %v420
    %1106 = vmatpush.msra.mxu0 %v417
    %1107 = vmatpush.msra.mxu0 %v414
    %1108 = vmatpush.msra.mxu0 %v411
    %1109 = vmatpush.msra.mxu0 %v408
    %1110 = vmatpush.msra.mxu0 %v405
    %1111 = vmatpush.msra.mxu0 %v402
    %1112 = vmatpush.msra.mxu0 %v399
    %1113 = vmatpush.msra.mxu0 %v396
    %1114 = vmatpush.msra.mxu0 %v393
    %1115 = vmatpush.msra.mxu0 %v390
    %1116 = vmatpush.msra.mxu0 %v387
    %1117 = vmatpush.msra.mxu0 %v384
    %1118 = vmatpush.msra.mxu0 %v381
    %1119 = vmatmul.f32.gmra.mxu0 %v1053
    %v1120 = vpop.f32.mrf.mxu0
    %v1121 = vadd.f32 0.0, %v1120
    %1122 = vdwg.mxu0
    %v1123 = vadd.f32 %v1060, %v1081
    %v1124 = vxor.u32 %v1123, 2147483648
    %v1125 = vmul.f32 %v1124, 1.442695
    %v1126 = vpow.pop %v1125
    %v1127 = vadd.f32 %v1126, 1.0
    %v1128 = vrcp.pop %v1127
    %v1129 = vmul.f32 %v1127, %v1128
    %v1130 = vsub.f32 1.0, %v1129
    %v1131 = vmul.f32 %v1128, %v1130
    %v1132 = vadd.f32 %v1128, %v1131
    %vm1133 = vweird.f32 %v1127
    %vm1134 = vweird.f32 %v1128
    %vm1135 = vmor %vm1133, %vm1134
    %v1136 = vsel %vm1135, %v1128, %v1132
    %v1137 = vand.u32 2147483647, %v1127
    %vm1138 = vcmp.eq.f32.partialorder %v1137, 8.507059e+37
    %v1139 = vand.u32 %v1127, 2147483648
    %v1140 = vor.u32 1.1754944e-38, %v1139
    %v1141 = vsel %vm1138, %v1140, %v1136
    %v1142 = vmul.f32 1.0, %v1141
    %v1143 = vadd.f32 %v1061, %v1101
    %v1144 = vxor.u32 %v1143, 2147483648
    %v1145 = vmul.f32 %v1144, 1.442695
    %v1146 = vpow.pop %v1145
    %v1147 = vadd.f32 %v1146, 1.0
    %v1148 = vrcp.pop %v1147
    %v1149 = vmul.f32 %v1147, %v1148
    %v1150 = vsub.f32 1.0, %v1149
    %v1151 = vmul.f32 %v1148, %v1150
    %v1152 = vadd.f32 %v1148, %v1151
    %vm1153 = vweird.f32 %v1147
    %vm1154 = vweird.f32 %v1148
    %vm1155 = vmor %vm1153, %vm1154
    %v1156 = vsel %vm1155, %v1148, %v1152
    %v1157 = vand.u32 2147483647, %v1147
    %vm1158 = vcmp.eq.f32.partialorder %v1157, 8.507059e+37
    %v1159 = vand.u32 %v1147, 2147483648
    %v1160 = vor.u32 1.1754944e-38, %v1159
    %v1161 = vsel %vm1158, %v1160, %v1156
    %v1162 = vmul.f32 1.0, %v1161
    %v1163 = vadd.f32 %v1121, %v538
    %v1164 = vmul.f32 %v1142, %v1163
    %v1165 = vadd.f32 %v1062, %v1164
    %v1166 = vtanh.pop %v1165
    %v1167 = vsub.f32 1.0, %v1162
    %v1168 = vmul.f32 %v1167, %v1166
    %v1169 = vmul.f32 %v1162, %v1053
    %v1170 = vadd.f32 %v1168, %v1169
    %s1171 = scalar_lea.vmem [#allocation7], 40
    %v1172 = vld [vmem:[%s1171] sm:$0xff]
    %v1173 = vmul.f32 %v1172, %v1170
    %1174 = vst.msk [vmem:[#allocation3 + $0x28] sm:$0xff] %vm207, %v1173
    %1175 = vst.msk [vmem:[#allocation3 + $0x10] sm:$0xff] %vm551, %v1173
    %v1176 = vsub.f32 %v1170, %v1053
    %v1177 = vmul.f32 %v1172, %v1176
    %v1178 = vadd.f32 %v1053, %v1177
    %v1179 = vld [vmem:[#allocation2 + $0x90] sm:$0xff]
    %v1180 = vld [vmem:[#allocation2 + $0x98] sm:$0xff]
    %v1181 = vld [vmem:[#allocation2 + $0xa0] sm:$0xff]
    %v1182 = vld [vmem:[#allocation2 + $0x18] sm:$0xff]
    %v1183 = vld [vmem:[#allocation2 + $0x20] sm:$0xff]
    %v1184 = vld [vmem:[#allocation2 + $0x28] sm:$0xff]
    %v1185 = vsel %vm164, %v1179, %v1182
    %v1186 = vsel %vm165, %v1180, %v1183
    %v1187 = vsel %vm166, %v1181, %v1184
    %1188 = vmatpush.msra.mxu0 %v424
    %1189 = vmatpush.msra.mxu0 %v421
    %1190 = vmatpush.msra.mxu0 %v418
    %1191 = vmatpush.msra.mxu0 %v415
    %1192 = vmatpush.msra.mxu0 %v412
    %1193 = vmatpush.msra.mxu0 %v409
    %1194 = vmatpush.msra.mxu0 %v406
    %1195 = vmatpush.msra.mxu0 %v403
    %1196 = vmatpush.msra.mxu0 %v400
    %1197 = vmatpush.msra.mxu0 %v397
    %1198 = vmatpush.msra.mxu0 %v394
    %1199 = vmatpush.msra.mxu0 %v391
    %1200 = vmatpush.msra.mxu0 %v388
    %1201 = vmatpush.msra.mxu0 %v385
    %1202 = vmatpush.msra.mxu0 %v382
    %1203 = vmatpush.msra.mxu0 %v379
    %1204 = vmatmul.f32.gmra.mxu0 %v1178
    %v1205 = vpop.f32.mrf.mxu0
    %v1206 = vadd.f32 0.0, %v1205
    %1207 = vdwg.mxu0
    %1208 = vmatpush.msra.mxu0 %v425
    %1209 = vmatpush.msra.mxu0 %v422
    %1210 = vmatpush.msra.mxu0 %v419
    %1211 = vmatpush.msra.mxu0 %v416
    %1212 = vmatpush.msra.mxu0 %v413
    %1213 = vmatpush.msra.mxu0 %v410
    %1214 = vmatpush.msra.mxu0 %v407
    %1215 = vmatpush.msra.mxu0 %v404
    %1216 = vmatpush.msra.mxu0 %v401
    %1217 = vmatpush.msra.mxu0 %v398
    %1218 = vmatpush.msra.mxu0 %v395
    %1219 = vmatpush.msra.mxu0 %v392
    %1220 = vmatpush.msra.mxu0 %v389
    %1221 = vmatpush.msra.mxu0 %v386
    %1222 = vmatpush.msra.mxu0 %v383
    %1223 = vmatpush.msra.mxu0 %v380
    %1224 = vmatmul.f32.gmra.mxu0 %v1178
    %v1225 = vpop.f32.mrf.mxu0
    %v1226 = vadd.f32 0.0, %v1225
    %1227 = vdwg.mxu0
    %1228 = vmatpush.msra.mxu0 %v426
    %1229 = vmatpush.msra.mxu0 %v423
    %1230 = vmatpush.msra.mxu0 %v420
    %1231 = vmatpush.msra.mxu0 %v417
    %1232 = vmatpush.msra.mxu0 %v414
    %1233 = vmatpush.msra.mxu0 %v411
    %1234 = vmatpush.msra.mxu0 %v408
    %1235 = vmatpush.msra.mxu0 %v405
    %1236 = vmatpush.msra.mxu0 %v402
    %1237 = vmatpush.msra.mxu0 %v399
    %1238 = vmatpush.msra.mxu0 %v396
    %1239 = vmatpush.msra.mxu0 %v393
    %1240 = vmatpush.msra.mxu0 %v390
    %1241 = vmatpush.msra.mxu0 %v387
    %1242 = vmatpush.msra.mxu0 %v384
    %1243 = vmatpush.msra.mxu0 %v381
    %1244 = vmatmul.f32.gmra.mxu0 %v1178
    %v1245 = vpop.f32.mrf.mxu0
    %v1246 = vadd.f32 0.0, %v1245
    %1247 = vdwg.mxu0
    %v1248 = vadd.f32 %v1185, %v1206
    %v1249 = vxor.u32 %v1248, 2147483648
    %v1250 = vmul.f32 %v1249, 1.442695
    %v1251 = vpow.pop %v1250
    %v1252 = vadd.f32 %v1251, 1.0
    %v1253 = vrcp.pop %v1252
    %v1254 = vmul.f32 %v1252, %v1253
    %v1255 = vsub.f32 1.0, %v1254
    %v1256 = vmul.f32 %v1253, %v1255
    %v1257 = vadd.f32 %v1253, %v1256
    %vm1258 = vweird.f32 %v1252
    %vm1259 = vweird.f32 %v1253
    %vm1260 = vmor %vm1258, %vm1259
    %v1261 = vsel %vm1260, %v1253, %v1257
    %v1262 = vand.u32 2147483647, %v1252
    %vm1263 = vcmp.eq.f32.partialorder %v1262, 8.507059e+37
    %v1264 = vand.u32 %v1252, 2147483648
    %v1265 = vor.u32 1.1754944e-38, %v1264
    %v1266 = vsel %vm1263, %v1265, %v1261
    %v1267 = vmul.f32 1.0, %v1266
    %v1268 = vadd.f32 %v1186, %v1226
    %v1269 = vxor.u32 %v1268, 2147483648
    %v1270 = vmul.f32 %v1269, 1.442695
    %v1271 = vpow.pop %v1270
    %v1272 = vadd.f32 %v1271, 1.0
    %v1273 = vrcp.pop %v1272
    %v1274 = vmul.f32 %v1272, %v1273
    %v1275 = vsub.f32 1.0, %v1274
    %v1276 = vmul.f32 %v1273, %v1275
    %v1277 = vadd.f32 %v1273, %v1276
    %vm1278 = vweird.f32 %v1272
    %vm1279 = vweird.f32 %v1273
    %vm1280 = vmor %vm1278, %vm1279
    %v1281 = vsel %vm1280, %v1273, %v1277
    %v1282 = vand.u32 2147483647, %v1272
    %vm1283 = vcmp.eq.f32.partialorder %v1282, 8.507059e+37
    %v1284 = vand.u32 %v1272, 2147483648
    %v1285 = vor.u32 1.1754944e-38, %v1284
    %v1286 = vsel %vm1283, %v1285, %v1281
    %v1287 = vmul.f32 1.0, %v1286
    %v1288 = vadd.f32 %v1246, %v538
    %v1289 = vmul.f32 %v1267, %v1288
    %v1290 = vadd.f32 %v1187, %v1289
    %v1291 = vtanh.pop %v1290
    %v1292 = vsub.f32 1.0, %v1287
    %v1293 = vmul.f32 %v1292, %v1291
    %v1294 = vmul.f32 %v1287, %v1178
    %v1295 = vadd.f32 %v1293, %v1294
    %s1296 = scalar_lea.vmem [#allocation7], 48
    %v1297 = vld [vmem:[%s1296] sm:$0xff]
    %v1298 = vmul.f32 %v1297, %v1295
    %1299 = vst.msk [vmem:[#allocation3 + $0x30] sm:$0xff] %vm207, %v1298
    %1300 = vst.msk [vmem:[#allocation3 + $0x8] sm:$0xff] %vm551, %v1298
    %v1301 = vsub.f32 %v1295, %v1178
    %v1302 = vmul.f32 %v1297, %v1301
    %v1303 = vadd.f32 %v1178, %v1302
    %v1304 = vld [vmem:[#allocation2 + $0xa8] sm:$0xff]
    %v1305 = vld [vmem:[#allocation2 + $0xb0] sm:$0xff]
    %v1306 = vld [vmem:[#allocation2 + $0xb8] sm:$0xff]
    %v1307 = vld [vmem:[#allocation2] sm:$0xff]
    %v1308 = vld [vmem:[#allocation2 + $0x8] sm:$0xff]
    %v1309 = vld [vmem:[#allocation2 + $0x10] sm:$0xff]
    %v1310 = vsel %vm164, %v1304, %v1307
    %v1311 = vsel %vm165, %v1305, %v1308
    %v1312 = vsel %vm166, %v1306, %v1309
    %1313 = vmatpush.msra.mxu0 %v424
    %1314 = vmatpush.msra.mxu0 %v421
    %1315 = vmatpush.msra.mxu0 %v418
    %1316 = vmatpush.msra.mxu0 %v415
    %1317 = vmatpush.msra.mxu0 %v412
    %1318 = vmatpush.msra.mxu0 %v409
    %1319 = vmatpush.msra.mxu0 %v406
    %1320 = vmatpush.msra.mxu0 %v403
    %1321 = vmatpush.msra.mxu0 %v400
    %1322 = vmatpush.msra.mxu0 %v397
    %1323 = vmatpush.msra.mxu0 %v394
    %1324 = vmatpush.msra.mxu0 %v391
    %1325 = vmatpush.msra.mxu0 %v388
    %1326 = vmatpush.msra.mxu0 %v385
    %1327 = vmatpush.msra.mxu0 %v382
    %1328 = vmatpush.msra.mxu0 %v379
    %1329 = vmatmul.f32.gmra.mxu0 %v1303
    %v1330 = vpop.f32.mrf.mxu0
    %v1331 = vadd.f32 0.0, %v1330
    %1332 = vdwg.mxu0
    %1333 = vmatpush.msra.mxu0 %v425
    %1334 = vmatpush.msra.mxu0 %v422
    %1335 = vmatpush.msra.mxu0 %v419
    %1336 = vmatpush.msra.mxu0 %v416
    %1337 = vmatpush.msra.mxu0 %v413
    %1338 = vmatpush.msra.mxu0 %v410
    %1339 = vmatpush.msra.mxu0 %v407
    %1340 = vmatpush.msra.mxu0 %v404
    %1341 = vmatpush.msra.mxu0 %v401
    %1342 = vmatpush.msra.mxu0 %v398
    %1343 = vmatpush.msra.mxu0 %v395
    %1344 = vmatpush.msra.mxu0 %v392
    %1345 = vmatpush.msra.mxu0 %v389
    %1346 = vmatpush.msra.mxu0 %v386
    %1347 = vmatpush.msra.mxu0 %v383
    %1348 = vmatpush.msra.mxu0 %v380
    %1349 = vmatmul.f32.gmra.mxu0 %v1303
    %v1350 = vpop.f32.mrf.mxu0
    %v1351 = vadd.f32 0.0, %v1350
    %1352 = vdwg.mxu0
    %1353 = vmatpush.msra.mxu0 %v426
    %1354 = vmatpush.msra.mxu0 %v423
    %1355 = vmatpush.msra.mxu0 %v420
    %1356 = vmatpush.msra.mxu0 %v417
    %1357 = vmatpush.msra.mxu0 %v414
    %1358 = vmatpush.msra.mxu0 %v411
    %1359 = vmatpush.msra.mxu0 %v408
    %1360 = vmatpush.msra.mxu0 %v405
    %1361 = vmatpush.msra.mxu0 %v402
    %1362 = vmatpush.msra.mxu0 %v399
    %1363 = vmatpush.msra.mxu0 %v396
    %1364 = vmatpush.msra.mxu0 %v393
    %1365 = vmatpush.msra.mxu0 %v390
    %1366 = vmatpush.msra.mxu0 %v387
    %1367 = vmatpush.msra.mxu0 %v384
    %1368 = vmatpush.msra.mxu0 %v381
    %1369 = vmatmul.f32.gmra.mxu0 %v1303
    %v1370 = vpop.f32.mrf.mxu0
    %v1371 = vadd.f32 0.0, %v1370
    %1372 = vdwg.mxu0
    %v1373 = vadd.f32 %v1310, %v1331
    %v1374 = vxor.u32 %v1373, 2147483648
    %v1375 = vmul.f32 %v1374, 1.442695
    %v1376 = vpow.pop %v1375
    %v1377 = vadd.f32 %v1376, 1.0
    %v1378 = vrcp.pop %v1377
    %v1379 = vmul.f32 %v1377, %v1378
    %v1380 = vsub.f32 1.0, %v1379
    %v1381 = vmul.f32 %v1378, %v1380
    %v1382 = vadd.f32 %v1378, %v1381
    %vm1383 = vweird.f32 %v1377
    %vm1384 = vweird.f32 %v1378
    %vm1385 = vmor %vm1383, %vm1384
    %v1386 = vsel %vm1385, %v1378, %v1382
    %v1387 = vand.u32 2147483647, %v1377
    %vm1388 = vcmp.eq.f32.partialorder %v1387, 8.507059e+37
    %v1389 = vand.u32 %v1377, 2147483648
    %v1390 = vor.u32 1.1754944e-38, %v1389
    %v1391 = vsel %vm1388, %v1390, %v1386
    %v1392 = vmul.f32 1.0, %v1391
    %v1393 = vadd.f32 %v1311, %v1351
    %v1394 = vxor.u32 %v1393, 2147483648
    %v1395 = vmul.f32 %v1394, 1.442695
    %v1396 = vpow.pop %v1395
    %v1397 = vadd.f32 %v1396, 1.0
    %v1398 = vrcp.pop %v1397
    %v1399 = vmul.f32 %v1397, %v1398
    %v1400 = vsub.f32 1.0, %v1399
    %v1401 = vmul.f32 %v1398, %v1400
    %v1402 = vadd.f32 %v1398, %v1401
    %vm1403 = vweird.f32 %v1397
    %vm1404 = vweird.f32 %v1398
    %vm1405 = vmor %vm1403, %vm1404
    %v1406 = vsel %vm1405, %v1398, %v1402
    %v1407 = vand.u32 2147483647, %v1397
    %vm1408 = vcmp.eq.f32.partialorder %v1407, 8.507059e+37
    %v1409 = vand.u32 %v1397, 2147483648
    %v1410 = vor.u32 1.1754944e-38, %v1409
    %v1411 = vsel %vm1408, %v1410, %v1406
    %v1412 = vmul.f32 1.0, %v1411
    %v1413 = vadd.f32 %v1371, %v538
    %v1414 = vmul.f32 %v1392, %v1413
    %v1415 = vadd.f32 %v1312, %v1414
    %v1416 = vtanh.pop %v1415
    %v1417 = vsub.f32 1.0, %v1412
    %v1418 = vmul.f32 %v1417, %v1416
    %v1419 = vmul.f32 %v1412, %v1303
    %v1420 = vadd.f32 %v1418, %v1419
    %s1421 = scalar_lea.vmem [#allocation7], 56
    %v1422 = vld [vmem:[%s1421] sm:$0xff]
    %v1423 = vmul.f32 %v1422, %v1420
    %1424 = vst.msk [vmem:[#allocation3 + $0x38] sm:$0xff] %vm207, %v1423
    %1425 = vst.msk [vmem:[#allocation3] sm:$0xff] %vm551, %v1423
    %v1426 = vld [vmem:[#allocation3] sm:$0xff]
    %v1427 = vld [vmem:[#allocation3 + $0x8] sm:$0xff]
    %v1428 = vld [vmem:[#allocation3 + $0x10] sm:$0xff]
    %v1429 = vld [vmem:[#allocation3 + $0x18] sm:$0xff]
    %v1430 = vld [vmem:[#allocation3 + $0x20] sm:$0xff]
    %v1431 = vld [vmem:[#allocation3 + $0x28] sm:$0xff]
    %v1432 = vld [vmem:[#allocation3 + $0x30] sm:$0xff]
    %v1433 = vld [vmem:[#allocation3 + $0x38] sm:$0xff]
    %v1434 = vld [vmem:[#allocation10] sm:$0xff]
    %v1435 = vld [vmem:[#allocation10 + $0x8] sm:$0xff]
    %v1436 = vld [vmem:[#allocation10 + $0x10] sm:$0xff]
    %v1437 = vld [vmem:[#allocation10 + $0x18] sm:$0xff]
    %v1438 = vld [vmem:[#allocation10 + $0x20] sm:$0xff]
    %v1439 = vld [vmem:[#allocation10 + $0x28] sm:$0xff]
    %v1440 = vld [vmem:[#allocation10 + $0x30] sm:$0xff]
    %v1441 = vld [vmem:[#allocation10 + $0x38] sm:$0xff]
    %v1442 = vld [vmem:[#allocation10 + $0x40] sm:$0xff]
    %v1443 = vld [vmem:[#allocation10 + $0x48] sm:$0xff]
    %v1444 = vld [vmem:[#allocation10 + $0x50] sm:$0xff]
    %v1445 = vld [vmem:[#allocation10 + $0x58] sm:$0xff]
    %v1446 = vld [vmem:[#allocation10 + $0x60] sm:$0xff]
    %v1447 = vld [vmem:[#allocation10 + $0x68] sm:$0xff]
    %v1448 = vld [vmem:[#allocation10 + $0x70] sm:$0xff]
    %v1449 = vld [vmem:[#allocation10 + $0x78] sm:$0xff]
    %v1450 = vld [vmem:[#allocation10 + $0x80] sm:$0xff]
    %v1451 = vld [vmem:[#allocation10 + $0x88] sm:$0xff]
    %v1452 = vld [vmem:[#allocation10 + $0x90] sm:$0xff]
    %v1453 = vld [vmem:[#allocation10 + $0x98] sm:$0xff]
    %v1454 = vld [vmem:[#allocation10 + $0xa0] sm:$0xff]
    %v1455 = vld [vmem:[#allocation10 + $0xa8] sm:$0xff]
    %v1456 = vld [vmem:[#allocation10 + $0xb0] sm:$0xff]
    %v1457 = vld [vmem:[#allocation10 + $0xb8] sm:$0xff]
    %v1458 = vld [vmem:[#allocation10 + $0xc0] sm:$0xff]
    %v1459 = vld [vmem:[#allocation10 + $0xc8] sm:$0xff]
    %v1460 = vld [vmem:[#allocation10 + $0xd0] sm:$0xff]
    %v1461 = vld [vmem:[#allocation10 + $0xd8] sm:$0xff]
    %v1462 = vld [vmem:[#allocation10 + $0xe0] sm:$0xff]
    %v1463 = vld [vmem:[#allocation10 + $0xe8] sm:$0xff]
    %v1464 = vld [vmem:[#allocation10 + $0xf0] sm:$0xff]
    %v1465 = vld [vmem:[#allocation10 + $0xf8] sm:$0xff]
    %v1466 = vld [vmem:[#allocation10 + $0x100] sm:$0xff]
    %v1467 = vld [vmem:[#allocation10 + $0x108] sm:$0xff]
    %v1468 = vld [vmem:[#allocation10 + $0x110] sm:$0xff]
    %v1469 = vld [vmem:[#allocation10 + $0x118] sm:$0xff]
    %v1470 = vld [vmem:[#allocation10 + $0x120] sm:$0xff]
    %v1471 = vld [vmem:[#allocation10 + $0x128] sm:$0xff]
    %v1472 = vld [vmem:[#allocation10 + $0x130] sm:$0xff]
    %v1473 = vld [vmem:[#allocation10 + $0x138] sm:$0xff]
    %v1474 = vld [vmem:[#allocation10 + $0x140] sm:$0xff]
    %v1475 = vld [vmem:[#allocation10 + $0x148] sm:$0xff]
    %v1476 = vld [vmem:[#allocation10 + $0x150] sm:$0xff]
    %v1477 = vld [vmem:[#allocation10 + $0x158] sm:$0xff]
    %v1478 = vld [vmem:[#allocation10 + $0x160] sm:$0xff]
    %v1479 = vld [vmem:[#allocation10 + $0x168] sm:$0xff]
    %v1480 = vld [vmem:[#allocation10 + $0x170] sm:$0xff]
    %v1481 = vld [vmem:[#allocation10 + $0x178] sm:$0xff]
    %s1482 = scalar_lea.vmem [#allocation13], 3
    %v1483 = vld [vmem:[%s1482] sm:$0x7]
    %v1485 = vperm.slane %v1483, 0
    %v1486 = vperm.slane %v1483, 1
    %v1487 = vperm.slane %v1483, 2
    %1491 = vmatpush.msra.mxu0 %v1479
    %1492 = vmatpush.msra.mxu0 %v1476
    %1493 = vmatpush.msra.mxu0 %v1473
    %1494 = vmatpush.msra.mxu0 %v1470
    %1495 = vmatpush.msra.mxu0 %v1467
    %1496 = vmatpush.msra.mxu0 %v1464
    %1497 = vmatpush.msra.mxu0 %v1461
    %1498 = vmatpush.msra.mxu0 %v1458
    %1499 = vmatpush.msra.mxu0 %v1455
    %1500 = vmatpush.msra.mxu0 %v1452
    %1501 = vmatpush.msra.mxu0 %v1449
    %1502 = vmatpush.msra.mxu0 %v1446
    %1503 = vmatpush.msra.mxu0 %v1443
    %1504 = vmatpush.msra.mxu0 %v1440
    %1505 = vmatpush.msra.mxu0 %v1437
    %1506 = vmatpush.msra.mxu0 %v1434
    %1507 = vmatmul.f32.gmra.mxu0 %v1426
    %v1508 = vpop.f32.mrf.mxu0
    %v1509 = vadd.f32 %v1485, %v1508
    %1510 = vmatmul.f32.gmra.mxu0 %v1427
    %v1511 = vpop.f32.mrf.mxu0
    %v1512 = vadd.f32 %v1485, %v1511
    %1513 = vmatmul.f32.gmra.mxu0 %v1428
    %v1514 = vpop.f32.mrf.mxu0
    %v1515 = vadd.f32 %v1485, %v1514
    %1516 = vmatmul.f32.gmra.mxu0 %v1429
    %v1517 = vpop.f32.mrf.mxu0
    %v1518 = vadd.f32 %v1485, %v1517
    %1519 = vmatmul.f32.gmra.mxu0 %v1430
    %v1520 = vpop.f32.mrf.mxu0
    %v1521 = vadd.f32 %v1485, %v1520
    %1522 = vmatmul.f32.gmra.mxu0 %v1431
    %v1523 = vpop.f32.mrf.mxu0
    %v1524 = vadd.f32 %v1485, %v1523
    %1525 = vmatmul.f32.gmra.mxu0 %v1432
    %v1526 = vpop.f32.mrf.mxu0
    %v1527 = vadd.f32 %v1485, %v1526
    %1528 = vmatmul.f32.gmra.mxu0 %v1433
    %v1529 = vpop.f32.mrf.mxu0
    %v1530 = vadd.f32 %v1485, %v1529
    %1531 = vdwg.mxu0
    %1532 = vmatpush.msra.mxu0 %v1480
    %1533 = vmatpush.msra.mxu0 %v1477
    %1534 = vmatpush.msra.mxu0 %v1474
    %1535 = vmatpush.msra.mxu0 %v1471
    %1536 = vmatpush.msra.mxu0 %v1468
    %1537 = vmatpush.msra.mxu0 %v1465
    %1538 = vmatpush.msra.mxu0 %v1462
    %1539 = vmatpush.msra.mxu0 %v1459
    %1540 = vmatpush.msra.mxu0 %v1456
    %1541 = vmatpush.msra.mxu0 %v1453
    %1542 = vmatpush.msra.mxu0 %v1450
    %1543 = vmatpush.msra.mxu0 %v1447
    %1544 = vmatpush.msra.mxu0 %v1444
    %1545 = vmatpush.msra.mxu0 %v1441
    %1546 = vmatpush.msra.mxu0 %v1438
    %1547 = vmatpush.msra.mxu0 %v1435
    %1548 = vmatmul.f32.gmra.mxu0 %v1426
    %v1549 = vpop.f32.mrf.mxu0
    %v1550 = vadd.f32 %v1486, %v1549
    %1551 = vmatmul.f32.gmra.mxu0 %v1427
    %v1552 = vpop.f32.mrf.mxu0
    %v1553 = vadd.f32 %v1486, %v1552
    %1554 = vmatmul.f32.gmra.mxu0 %v1428
    %v1555 = vpop.f32.mrf.mxu0
    %v1556 = vadd.f32 %v1486, %v1555
    %1557 = vmatmul.f32.gmra.mxu0 %v1429
    %v1558 = vpop.f32.mrf.mxu0
    %v1559 = vadd.f32 %v1486, %v1558
    %1560 = vmatmul.f32.gmra.mxu0 %v1430
    %v1561 = vpop.f32.mrf.mxu0
    %v1562 = vadd.f32 %v1486, %v1561
    %1563 = vmatmul.f32.gmra.mxu0 %v1431
    %v1564 = vpop.f32.mrf.mxu0
    %v1565 = vadd.f32 %v1486, %v1564
    %1566 = vmatmul.f32.gmra.mxu0 %v1432
    %v1567 = vpop.f32.mrf.mxu0
    %v1568 = vadd.f32 %v1486, %v1567
    %1569 = vmatmul.f32.gmra.mxu0 %v1433
    %v1570 = vpop.f32.mrf.mxu0
    %v1571 = vadd.f32 %v1486, %v1570
    %1572 = vdwg.mxu0
    %1573 = vmatpush.msra.mxu0 %v1481
    %1574 = vmatpush.msra.mxu0 %v1478
    %1575 = vmatpush.msra.mxu0 %v1475
    %1576 = vmatpush.msra.mxu0 %v1472
    %1577 = vmatpush.msra.mxu0 %v1469
    %1578 = vmatpush.msra.mxu0 %v1466
    %1579 = vmatpush.msra.mxu0 %v1463
    %1580 = vmatpush.msra.mxu0 %v1460
    %1581 = vmatpush.msra.mxu0 %v1457
    %1582 = vmatpush.msra.mxu0 %v1454
    %1583 = vmatpush.msra.mxu0 %v1451
    %1584 = vmatpush.msra.mxu0 %v1448
    %1585 = vmatpush.msra.mxu0 %v1445
    %1586 = vmatpush.msra.mxu0 %v1442
    %1587 = vmatpush.msra.mxu0 %v1439
    %1588 = vmatpush.msra.mxu0 %v1436
    %1589 = vmatmul.f32.gmra.mxu0 %v1426
    %v1590 = vpop.f32.mrf.mxu0
    %v1591 = vadd.f32 %v1487, %v1590
    %1592 = vmatmul.f32.gmra.mxu0 %v1427
    %v1593 = vpop.f32.mrf.mxu0
    %v1594 = vadd.f32 %v1487, %v1593
    %1595 = vmatmul.f32.gmra.mxu0 %v1428
    %v1596 = vpop.f32.mrf.mxu0
    %v1597 = vadd.f32 %v1487, %v1596
    %1598 = vmatmul.f32.gmra.mxu0 %v1429
    %v1599 = vpop.f32.mrf.mxu0
    %v1600 = vadd.f32 %v1487, %v1599
    %1601 = vmatmul.f32.gmra.mxu0 %v1430
    %v1602 = vpop.f32.mrf.mxu0
    %v1603 = vadd.f32 %v1487, %v1602
    %1604 = vmatmul.f32.gmra.mxu0 %v1431
    %v1605 = vpop.f32.mrf.mxu0
    %v1606 = vadd.f32 %v1487, %v1605
    %1607 = vmatmul.f32.gmra.mxu0 %v1432
    %v1608 = vpop.f32.mrf.mxu0
    %v1609 = vadd.f32 %v1487, %v1608
    %1610 = vmatmul.f32.gmra.mxu0 %v1433
    %v1611 = vpop.f32.mrf.mxu0
    %v1612 = vadd.f32 %v1487, %v1611
    %1613 = vdwg.mxu0
    %1614 = vst [vmem:[#allocation2] sm:$0xff] %v1509
    %1615 = vst [vmem:[#allocation2 + $0x8] sm:$0xff] %v1550
    %1616 = vst [vmem:[#allocation2 + $0x10] sm:$0xff] %v1591
    %1617 = vst [vmem:[#allocation2 + $0x18] sm:$0xff] %v1512
    %1618 = vst [vmem:[#allocation2 + $0x20] sm:$0xff] %v1553
    %1619 = vst [vmem:[#allocation2 + $0x28] sm:$0xff] %v1594
    %1620 = vst [vmem:[#allocation2 + $0x30] sm:$0xff] %v1515
    %1621 = vst [vmem:[#allocation2 + $0x38] sm:$0xff] %v1556
    %1622 = vst [vmem:[#allocation2 + $0x40] sm:$0xff] %v1597
    %1623 = vst [vmem:[#allocation2 + $0x48] sm:$0xff] %v1518
    %1624 = vst [vmem:[#allocation2 + $0x50] sm:$0xff] %v1559
    %1625 = vst [vmem:[#allocation2 + $0x58] sm:$0xff] %v1600
    %1626 = vst [vmem:[#allocation2 + $0x60] sm:$0xff] %v1521
    %1627 = vst [vmem:[#allocation2 + $0x68] sm:$0xff] %v1562
    %1628 = vst [vmem:[#allocation2 + $0x70] sm:$0xff] %v1603
    %1629 = vst [vmem:[#allocation2 + $0x78] sm:$0xff] %v1524
    %1630 = vst [vmem:[#allocation2 + $0x80] sm:$0xff] %v1565
    %1631 = vst [vmem:[#allocation2 + $0x88] sm:$0xff] %v1606
    %1632 = vst [vmem:[#allocation2 + $0x90] sm:$0xff] %v1527
    %1633 = vst [vmem:[#allocation2 + $0x98] sm:$0xff] %v1568
    %1634 = vst [vmem:[#allocation2 + $0xa0] sm:$0xff] %v1609
    %1635 = vst [vmem:[#allocation2 + $0xa8] sm:$0xff] %v1530
    %1636 = vst [vmem:[#allocation2 + $0xb0] sm:$0xff] %v1571
    %1637 = vst [vmem:[#allocation2 + $0xb8] sm:$0xff] %v1612
    %s1638 = scalar_lea.vmem [#allocation12], 384
    %v1639 = vld [vmem:[%s1638] sm:$0xff]
    %v1640 = vld [vmem:[%s1638 + $0x8] sm:$0xff]
    %v1641 = vld [vmem:[%s1638 + $0x10] sm:$0xff]
    %v1642 = vld [vmem:[%s1638 + $0x18] sm:$0xff]
    %v1643 = vld [vmem:[%s1638 + $0x20] sm:$0xff]
    %v1644 = vld [vmem:[%s1638 + $0x28] sm:$0xff]
    %v1645 = vld [vmem:[%s1638 + $0x30] sm:$0xff]
    %v1646 = vld [vmem:[%s1638 + $0x38] sm:$0xff]
    %v1647 = vld [vmem:[%s1638 + $0x40] sm:$0xff]
    %v1648 = vld [vmem:[%s1638 + $0x48] sm:$0xff]
    %v1649 = vld [vmem:[%s1638 + $0x50] sm:$0xff]
    %v1650 = vld [vmem:[%s1638 + $0x58] sm:$0xff]
    %v1651 = vld [vmem:[%s1638 + $0x60] sm:$0xff]
    %v1652 = vld [vmem:[%s1638 + $0x68] sm:$0xff]
    %v1653 = vld [vmem:[%s1638 + $0x70] sm:$0xff]
    %v1654 = vld [vmem:[%s1638 + $0x78] sm:$0xff]
    %v1655 = vld [vmem:[%s1638 + $0x80] sm:$0xff]
    %v1656 = vld [vmem:[%s1638 + $0x88] sm:$0xff]
    %v1657 = vld [vmem:[%s1638 + $0x90] sm:$0xff]
    %v1658 = vld [vmem:[%s1638 + $0x98] sm:$0xff]
    %v1659 = vld [vmem:[%s1638 + $0xa0] sm:$0xff]
    %v1660 = vld [vmem:[%s1638 + $0xa8] sm:$0xff]
    %v1661 = vld [vmem:[%s1638 + $0xb0] sm:$0xff]
    %v1662 = vld [vmem:[%s1638 + $0xb8] sm:$0xff]
    %v1663 = vld [vmem:[%s1638 + $0xc0] sm:$0xff]
    %v1664 = vld [vmem:[%s1638 + $0xc8] sm:$0xff]
    %v1665 = vld [vmem:[%s1638 + $0xd0] sm:$0xff]
    %v1666 = vld [vmem:[%s1638 + $0xd8] sm:$0xff]
    %v1667 = vld [vmem:[%s1638 + $0xe0] sm:$0xff]
    %v1668 = vld [vmem:[%s1638 + $0xe8] sm:$0xff]
    %v1669 = vld [vmem:[%s1638 + $0xf0] sm:$0xff]
    %v1670 = vld [vmem:[%s1638 + $0xf8] sm:$0xff]
    %v1671 = vld [vmem:[%s1638 + $0x100] sm:$0xff]
    %v1672 = vld [vmem:[%s1638 + $0x108] sm:$0xff]
    %v1673 = vld [vmem:[%s1638 + $0x110] sm:$0xff]
    %v1674 = vld [vmem:[%s1638 + $0x118] sm:$0xff]
    %v1675 = vld [vmem:[%s1638 + $0x120] sm:$0xff]
    %v1676 = vld [vmem:[%s1638 + $0x128] sm:$0xff]
    %v1677 = vld [vmem:[%s1638 + $0x130] sm:$0xff]
    %v1678 = vld [vmem:[%s1638 + $0x138] sm:$0xff]
    %v1679 = vld [vmem:[%s1638 + $0x140] sm:$0xff]
    %v1680 = vld [vmem:[%s1638 + $0x148] sm:$0xff]
    %v1681 = vld [vmem:[%s1638 + $0x150] sm:$0xff]
    %v1682 = vld [vmem:[%s1638 + $0x158] sm:$0xff]
    %v1683 = vld [vmem:[%s1638 + $0x160] sm:$0xff]
    %v1684 = vld [vmem:[%s1638 + $0x168] sm:$0xff]
    %v1685 = vld [vmem:[%s1638 + $0x170] sm:$0xff]
    %v1686 = vld [vmem:[%s1638 + $0x178] sm:$0xff]
    %s1687 = scalar_lea.vmem %s6, 1
    %v1688 = vld [vmem:[%s1687] sm:$0x1]
    %v1689 = vld [vmem:[#allocation2] sm:$0xff]
    %v1690 = vld [vmem:[#allocation2 + $0x8] sm:$0xff]
    %v1691 = vld [vmem:[#allocation2 + $0x10] sm:$0xff]
    %v1692 = vld [vmem:[#allocation2 + $0xa8] sm:$0xff]
    %v1693 = vld [vmem:[#allocation2 + $0xb0] sm:$0xff]
    %v1694 = vld [vmem:[#allocation2 + $0xb8] sm:$0xff]
    %v1695 = vsel %vm164, %v1689, %v1692
    %v1696 = vsel %vm165, %v1690, %v1693
    %v1697 = vsel %vm166, %v1691, %v1694
    %1698 = vmatpush.msra.mxu0 %v1684
    %1699 = vmatpush.msra.mxu0 %v1681
    %1700 = vmatpush.msra.mxu0 %v1678
    %1701 = vmatpush.msra.mxu0 %v1675
    %1702 = vmatpush.msra.mxu0 %v1672
    %1703 = vmatpush.msra.mxu0 %v1669
    %1704 = vmatpush.msra.mxu0 %v1666
    %1705 = vmatpush.msra.mxu0 %v1663
    %1706 = vmatpush.msra.mxu0 %v1660
    %1707 = vmatpush.msra.mxu0 %v1657
    %1708 = vmatpush.msra.mxu0 %v1654
    %1709 = vmatpush.msra.mxu0 %v1651
    %1710 = vmatpush.msra.mxu0 %v1648
    %1711 = vmatpush.msra.mxu0 %v1645
    %1712 = vmatpush.msra.mxu0 %v1642
    %1713 = vmatpush.msra.mxu0 %v1639
    %1714 = vmatmul.f32.gmra.mxu0 0.0
    %v1715 = vpop.f32.mrf.mxu0
    %v1716 = vadd.f32 0.0, %v1715
    %1717 = vdwg.mxu0
    %1718 = vmatpush.msra.mxu0 %v1685
    %1719 = vmatpush.msra.mxu0 %v1682
    %1720 = vmatpush.msra.mxu0 %v1679
    %1721 = vmatpush.msra.mxu0 %v1676
    %1722 = vmatpush.msra.mxu0 %v1673
    %1723 = vmatpush.msra.mxu0 %v1670
    %1724 = vmatpush.msra.mxu0 %v1667
    %1725 = vmatpush.msra.mxu0 %v1664
    %1726 = vmatpush.msra.mxu0 %v1661
    %1727 = vmatpush.msra.mxu0 %v1658
    %1728 = vmatpush.msra.mxu0 %v1655
    %1729 = vmatpush.msra.mxu0 %v1652
    %1730 = vmatpush.msra.mxu0 %v1649
    %1731 = vmatpush.msra.mxu0 %v1646
    %1732 = vmatpush.msra.mxu0 %v1643
    %1733 = vmatpush.msra.mxu0 %v1640
    %1734 = vmatmul.f32.gmra.mxu0 0.0
    %v1735 = vpop.f32.mrf.mxu0
    %v1736 = vadd.f32 0.0, %v1735
    %1737 = vdwg.mxu0
    %1738 = vmatpush.msra.mxu0 %v1686
    %1739 = vmatpush.msra.mxu0 %v1683
    %1740 = vmatpush.msra.mxu0 %v1680
    %1741 = vmatpush.msra.mxu0 %v1677
    %1742 = vmatpush.msra.mxu0 %v1674
    %1743 = vmatpush.msra.mxu0 %v1671
    %1744 = vmatpush.msra.mxu0 %v1668
    %1745 = vmatpush.msra.mxu0 %v1665
    %1746 = vmatpush.msra.mxu0 %v1662
    %1747 = vmatpush.msra.mxu0 %v1659
    %1748 = vmatpush.msra.mxu0 %v1656
    %1749 = vmatpush.msra.mxu0 %v1653
    %1750 = vmatpush.msra.mxu0 %v1650
    %1751 = vmatpush.msra.mxu0 %v1647
    %1752 = vmatpush.msra.mxu0 %v1644
    %1753 = vmatpush.msra.mxu0 %v1641
    %1754 = vmatmul.f32.gmra.mxu0 0.0
    %v1755 = vpop.f32.mrf.mxu0
    %v1756 = vadd.f32 0.0, %v1755
    %1757 = vdwg.mxu0
    %v1758 = vadd.f32 %v1695, %v1716
    %v1759 = vxor.u32 %v1758, 2147483648
    %v1760 = vmul.f32 %v1759, 1.442695
    %v1761 = vpow.pop %v1760
    %v1762 = vadd.f32 %v1761, 1.0
    %v1763 = vrcp.pop %v1762
    %v1764 = vmul.f32 %v1762, %v1763
    %v1765 = vsub.f32 1.0, %v1764
    %v1766 = vmul.f32 %v1763, %v1765
    %v1767 = vadd.f32 %v1763, %v1766
    %vm1768 = vweird.f32 %v1762
    %vm1769 = vweird.f32 %v1763
    %vm1770 = vmor %vm1768, %vm1769
    %v1771 = vsel %vm1770, %v1763, %v1767
    %v1772 = vand.u32 2147483647, %v1762
    %vm1773 = vcmp.eq.f32.partialorder %v1772, 8.507059e+37
    %v1774 = vand.u32 %v1762, 2147483648
    %v1775 = vor.u32 1.1754944e-38, %v1774
    %v1776 = vsel %vm1773, %v1775, %v1771
    %v1777 = vmul.f32 1.0, %v1776
    %v1778 = vadd.f32 %v1696, %v1736
    %v1779 = vxor.u32 %v1778, 2147483648
    %v1780 = vmul.f32 %v1779, 1.442695
    %v1781 = vpow.pop %v1780
    %v1782 = vadd.f32 %v1781, 1.0
    %v1783 = vrcp.pop %v1782
    %v1784 = vmul.f32 %v1782, %v1783
    %v1785 = vsub.f32 1.0, %v1784
    %v1786 = vmul.f32 %v1783, %v1785
    %v1787 = vadd.f32 %v1783, %v1786
    %vm1788 = vweird.f32 %v1782
    %vm1789 = vweird.f32 %v1783
    %vm1790 = vmor %vm1788, %vm1789
    %v1791 = vsel %vm1790, %v1783, %v1787
    %v1792 = vand.u32 2147483647, %v1782
    %vm1793 = vcmp.eq.f32.partialorder %v1792, 8.507059e+37
    %v1794 = vand.u32 %v1782, 2147483648
    %v1795 = vor.u32 1.1754944e-38, %v1794
    %v1796 = vsel %vm1793, %v1795, %v1791
    %v1797 = vmul.f32 1.0, %v1796
    %v1799 = vperm.slane %v1688, 0
    %v1801 = vadd.f32 %v1756, %v1799
    %v1802 = vmul.f32 %v1777, %v1801
    %v1803 = vadd.f32 %v1697, %v1802
    %v1804 = vtanh.pop %v1803
    %v1805 = vsub.f32 1.0, %v1797
    %v1806 = vmul.f32 %v1805, %v1804
    %v1807 = vmul.f32 %v1797, 0.0
    %v1808 = vadd.f32 %v1806, %v1807
    %v1809 = vld [vmem:[#allocation7] sm:$0xff]
    %v1810 = vmul.f32 %v1809, %v1808
    %1811 = vst.msk [vmem:[#allocation15] sm:$0xff] %vm207, %v1810
    %1812 = vst.msk [vmem:[#allocation15 + $0x38] sm:$0xff] %vm551, %v1810
    %v1813 = vadd.f32 %v1810, 0.0
    %v1814 = vld [vmem:[#allocation2 + $0x18] sm:$0xff]
    %v1815 = vld [vmem:[#allocation2 + $0x20] sm:$0xff]
    %v1816 = vld [vmem:[#allocation2 + $0x28] sm:$0xff]
    %v1817 = vld [vmem:[#allocation2 + $0x90] sm:$0xff]
    %v1818 = vld [vmem:[#allocation2 + $0x98] sm:$0xff]
    %v1819 = vld [vmem:[#allocation2 + $0xa0] sm:$0xff]
    %v1820 = vsel %vm164, %v1814, %v1817
    %v1821 = vsel %vm165, %v1815, %v1818
    %v1822 = vsel %vm166, %v1816, %v1819
    %1823 = vmatpush.msra.mxu0 %v1684
    %1824 = vmatpush.msra.mxu0 %v1681
    %1825 = vmatpush.msra.mxu0 %v1678
    %1826 = vmatpush.msra.mxu0 %v1675
    %1827 = vmatpush.msra.mxu0 %v1672
    %1828 = vmatpush.msra.mxu0 %v1669
    %1829 = vmatpush.msra.mxu0 %v1666
    %1830 = vmatpush.msra.mxu0 %v1663
    %1831 = vmatpush.msra.mxu0 %v1660
    %1832 = vmatpush.msra.mxu0 %v1657
    %1833 = vmatpush.msra.mxu0 %v1654
    %1834 = vmatpush.msra.mxu0 %v1651
    %1835 = vmatpush.msra.mxu0 %v1648
    %1836 = vmatpush.msra.mxu0 %v1645
    %1837 = vmatpush.msra.mxu0 %v1642
    %1838 = vmatpush.msra.mxu0 %v1639
    %1839 = vmatmul.f32.gmra.mxu0 %v1813
    %v1840 = vpop.f32.mrf.mxu0
    %v1841 = vadd.f32 0.0, %v1840
    %1842 = vdwg.mxu0
    %1843 = vmatpush.msra.mxu0 %v1685
    %1844 = vmatpush.msra.mxu0 %v1682
    %1845 = vmatpush.msra.mxu0 %v1679
    %1846 = vmatpush.msra.mxu0 %v1676
    %1847 = vmatpush.msra.mxu0 %v1673
    %1848 = vmatpush.msra.mxu0 %v1670
    %1849 = vmatpush.msra.mxu0 %v1667
    %1850 = vmatpush.msra.mxu0 %v1664
    %1851 = vmatpush.msra.mxu0 %v1661
    %1852 = vmatpush.msra.mxu0 %v1658
    %1853 = vmatpush.msra.mxu0 %v1655
    %1854 = vmatpush.msra.mxu0 %v1652
    %1855 = vmatpush.msra.mxu0 %v1649
    %1856 = vmatpush.msra.mxu0 %v1646
    %1857 = vmatpush.msra.mxu0 %v1643
    %1858 = vmatpush.msra.mxu0 %v1640
    %1859 = vmatmul.f32.gmra.mxu0 %v1813
    %v1860 = vpop.f32.mrf.mxu0
    %v1861 = vadd.f32 0.0, %v1860
    %1862 = vdwg.mxu0
    %1863 = vmatpush.msra.mxu0 %v1686
    %1864 = vmatpush.msra.mxu0 %v1683
    %1865 = vmatpush.msra.mxu0 %v1680
    %1866 = vmatpush.msra.mxu0 %v1677
    %1867 = vmatpush.msra.mxu0 %v1674
    %1868 = vmatpush.msra.mxu0 %v1671
    %1869 = vmatpush.msra.mxu0 %v1668
    %1870 = vmatpush.msra.mxu0 %v1665
    %1871 = vmatpush.msra.mxu0 %v1662
    %1872 = vmatpush.msra.mxu0 %v1659
    %1873 = vmatpush.msra.mxu0 %v1656
    %1874 = vmatpush.msra.mxu0 %v1653
    %1875 = vmatpush.msra.mxu0 %v1650
    %1876 = vmatpush.msra.mxu0 %v1647
    %1877 = vmatpush.msra.mxu0 %v1644
    %1878 = vmatpush.msra.mxu0 %v1641
    %1879 = vmatmul.f32.gmra.mxu0 %v1813
    %v1880 = vpop.f32.mrf.mxu0
    %v1881 = vadd.f32 0.0, %v1880
    %1882 = vdwg.mxu0
    %v1883 = vadd.f32 %v1820, %v1841
    %v1884 = vxor.u32 %v1883, 2147483648
    %v1885 = vmul.f32 %v1884, 1.442695
    %v1886 = vpow.pop %v1885
    %v1887 = vadd.f32 %v1886, 1.0
    %v1888 = vrcp.pop %v1887
    %v1889 = vmul.f32 %v1887, %v1888
    %v1890 = vsub.f32 1.0, %v1889
    %v1891 = vmul.f32 %v1888, %v1890
    %v1892 = vadd.f32 %v1888, %v1891
    %vm1893 = vweird.f32 %v1887
    %vm1894 = vweird.f32 %v1888
    %vm1895 = vmor %vm1893, %vm1894
    %v1896 = vsel %vm1895, %v1888, %v1892
    %v1897 = vand.u32 2147483647, %v1887
    %vm1898 = vcmp.eq.f32.partialorder %v1897, 8.507059e+37
    %v1899 = vand.u32 %v1887, 2147483648
    %v1900 = vor.u32 1.1754944e-38, %v1899
    %v1901 = vsel %vm1898, %v1900, %v1896
    %v1902 = vmul.f32 1.0, %v1901
    %v1903 = vadd.f32 %v1821, %v1861
    %v1904 = vxor.u32 %v1903, 2147483648
    %v1905 = vmul.f32 %v1904, 1.442695
    %v1906 = vpow.pop %v1905
    %v1907 = vadd.f32 %v1906, 1.0
    %v1908 = vrcp.pop %v1907
    %v1909 = vmul.f32 %v1907, %v1908
    %v1910 = vsub.f32 1.0, %v1909
    %v1911 = vmul.f32 %v1908, %v1910
    %v1912 = vadd.f32 %v1908, %v1911
    %vm1913 = vweird.f32 %v1907
    %vm1914 = vweird.f32 %v1908
    %vm1915 = vmor %vm1913, %vm1914
    %v1916 = vsel %vm1915, %v1908, %v1912
    %v1917 = vand.u32 2147483647, %v1907
    %vm1918 = vcmp.eq.f32.partialorder %v1917, 8.507059e+37
    %v1919 = vand.u32 %v1907, 2147483648
    %v1920 = vor.u32 1.1754944e-38, %v1919
    %v1921 = vsel %vm1918, %v1920, %v1916
    %v1922 = vmul.f32 1.0, %v1921
    %v1923 = vadd.f32 %v1881, %v1799
    %v1924 = vmul.f32 %v1902, %v1923
    %v1925 = vadd.f32 %v1822, %v1924
    %v1926 = vtanh.pop %v1925
    %v1927 = vsub.f32 1.0, %v1922
    %v1928 = vmul.f32 %v1927, %v1926
    %v1929 = vmul.f32 %v1922, %v1813
    %v1930 = vadd.f32 %v1928, %v1929
    %v1931 = vld [vmem:[%s671] sm:$0xff]
    %v1932 = vmul.f32 %v1931, %v1930
    %1933 = vst.msk [vmem:[#allocation15 + $0x8] sm:$0xff] %vm207, %v1932
    %1934 = vst.msk [vmem:[#allocation15 + $0x30] sm:$0xff] %vm551, %v1932
    %v1935 = vsub.f32 %v1930, %v1813
    %v1936 = vmul.f32 %v1931, %v1935
    %v1937 = vadd.f32 %v1813, %v1936
    %v1938 = vld [vmem:[#allocation2 + $0x30] sm:$0xff]
    %v1939 = vld [vmem:[#allocation2 + $0x38] sm:$0xff]
    %v1940 = vld [vmem:[#allocation2 + $0x40] sm:$0xff]
    %v1941 = vld [vmem:[#allocation2 + $0x78] sm:$0xff]
    %v1942 = vld [vmem:[#allocation2 + $0x80] sm:$0xff]
    %v1943 = vld [vmem:[#allocation2 + $0x88] sm:$0xff]
    %v1944 = vsel %vm164, %v1938, %v1941
    %v1945 = vsel %vm165, %v1939, %v1942
    %v1946 = vsel %vm166, %v1940, %v1943
    %1947 = vmatpush.msra.mxu0 %v1684
    %1948 = vmatpush.msra.mxu0 %v1681
    %1949 = vmatpush.msra.mxu0 %v1678
    %1950 = vmatpush.msra.mxu0 %v1675
    %1951 = vmatpush.msra.mxu0 %v1672
    %1952 = vmatpush.msra.mxu0 %v1669
    %1953 = vmatpush.msra.mxu0 %v1666
    %1954 = vmatpush.msra.mxu0 %v1663
    %1955 = vmatpush.msra.mxu0 %v1660
    %1956 = vmatpush.msra.mxu0 %v1657
    %1957 = vmatpush.msra.mxu0 %v1654
    %1958 = vmatpush.msra.mxu0 %v1651
    %1959 = vmatpush.msra.mxu0 %v1648
    %1960 = vmatpush.msra.mxu0 %v1645
    %1961 = vmatpush.msra.mxu0 %v1642
    %1962 = vmatpush.msra.mxu0 %v1639
    %1963 = vmatmul.f32.gmra.mxu0 %v1937
    %v1964 = vpop.f32.mrf.mxu0
    %v1965 = vadd.f32 0.0, %v1964
    %1966 = vdwg.mxu0
    %1967 = vmatpush.msra.mxu0 %v1685
    %1968 = vmatpush.msra.mxu0 %v1682
    %1969 = vmatpush.msra.mxu0 %v1679
    %1970 = vmatpush.msra.mxu0 %v1676
    %1971 = vmatpush.msra.mxu0 %v1673
    %1972 = vmatpush.msra.mxu0 %v1670
    %1973 = vmatpush.msra.mxu0 %v1667
    %1974 = vmatpush.msra.mxu0 %v1664
    %1975 = vmatpush.msra.mxu0 %v1661
    %1976 = vmatpush.msra.mxu0 %v1658
    %1977 = vmatpush.msra.mxu0 %v1655
    %1978 = vmatpush.msra.mxu0 %v1652
    %1979 = vmatpush.msra.mxu0 %v1649
    %1980 = vmatpush.msra.mxu0 %v1646
    %1981 = vmatpush.msra.mxu0 %v1643
    %1982 = vmatpush.msra.mxu0 %v1640
    %1983 = vmatmul.f32.gmra.mxu0 %v1937
    %v1984 = vpop.f32.mrf.mxu0
    %v1985 = vadd.f32 0.0, %v1984
    %1986 = vdwg.mxu0
    %1987 = vmatpush.msra.mxu0 %v1686
    %1988 = vmatpush.msra.mxu0 %v1683
    %1989 = vmatpush.msra.mxu0 %v1680
    %1990 = vmatpush.msra.mxu0 %v1677
    %1991 = vmatpush.msra.mxu0 %v1674
    %1992 = vmatpush.msra.mxu0 %v1671
    %1993 = vmatpush.msra.mxu0 %v1668
    %1994 = vmatpush.msra.mxu0 %v1665
    %1995 = vmatpush.msra.mxu0 %v1662
    %1996 = vmatpush.msra.mxu0 %v1659
    %1997 = vmatpush.msra.mxu0 %v1656
    %1998 = vmatpush.msra.mxu0 %v1653
    %1999 = vmatpush.msra.mxu0 %v1650
    %2000 = vmatpush.msra.mxu0 %v1647
    %2001 = vmatpush.msra.mxu0 %v1644
    %2002 = vmatpush.msra.mxu0 %v1641
    %2003 = vmatmul.f32.gmra.mxu0 %v1937
    %v2004 = vpop.f32.mrf.mxu0
    %v2005 = vadd.f32 0.0, %v2004
    %2006 = vdwg.mxu0
    %v2007 = vadd.f32 %v1944, %v1965
    %v2008 = vxor.u32 %v2007, 2147483648
    %v2009 = vmul.f32 %v2008, 1.442695
    %v2010 = vpow.pop %v2009
    %v2011 = vadd.f32 %v2010, 1.0
    %v2012 = vrcp.pop %v2011
    %v2013 = vmul.f32 %v2011, %v2012
    %v2014 = vsub.f32 1.0, %v2013
    %v2015 = vmul.f32 %v2012, %v2014
    %v2016 = vadd.f32 %v2012, %v2015
    %vm2017 = vweird.f32 %v2011
    %vm2018 = vweird.f32 %v2012
    %vm2019 = vmor %vm2017, %vm2018
    %v2020 = vsel %vm2019, %v2012, %v2016
    %v2021 = vand.u32 2147483647, %v2011
    %vm2022 = vcmp.eq.f32.partialorder %v2021, 8.507059e+37
    %v2023 = vand.u32 %v2011, 2147483648
    %v2024 = vor.u32 1.1754944e-38, %v2023
    %v2025 = vsel %vm2022, %v2024, %v2020
    %v2026 = vmul.f32 1.0, %v2025
    %v2027 = vadd.f32 %v1945, %v1985
    %v2028 = vxor.u32 %v2027, 2147483648
    %v2029 = vmul.f32 %v2028, 1.442695
    %v2030 = vpow.pop %v2029
    %v2031 = vadd.f32 %v2030, 1.0
    %v2032 = vrcp.pop %v2031
    %v2033 = vmul.f32 %v2031, %v2032
    %v2034 = vsub.f32 1.0, %v2033
    %v2035 = vmul.f32 %v2032, %v2034
    %v2036 = vadd.f32 %v2032, %v2035
    %vm2037 = vweird.f32 %v2031
    %vm2038 = vweird.f32 %v2032
    %vm2039 = vmor %vm2037, %vm2038
    %v2040 = vsel %vm2039, %v2032, %v2036
    %v2041 = vand.u32 2147483647, %v2031
    %vm2042 = vcmp.eq.f32.partialorder %v2041, 8.507059e+37
    %v2043 = vand.u32 %v2031, 2147483648
    %v2044 = vor.u32 1.1754944e-38, %v2043
    %v2045 = vsel %vm2042, %v2044, %v2040
    %v2046 = vmul.f32 1.0, %v2045
    %v2047 = vadd.f32 %v2005, %v1799
    %v2048 = vmul.f32 %v2026, %v2047
    %v2049 = vadd.f32 %v1946, %v2048
    %v2050 = vtanh.pop %v2049
    %v2051 = vsub.f32 1.0, %v2046
    %v2052 = vmul.f32 %v2051, %v2050
    %v2053 = vmul.f32 %v2046, %v1937
    %v2054 = vadd.f32 %v2052, %v2053
    %v2055 = vld [vmem:[%s796] sm:$0xff]
    %v2056 = vmul.f32 %v2055, %v2054
    %2057 = vst.msk [vmem:[#allocation15 + $0x10] sm:$0xff] %vm207, %v2056
    %2058 = vst.msk [vmem:[#allocation15 + $0x28] sm:$0xff] %vm551, %v2056
    %v2059 = vsub.f32 %v2054, %v1937
    %v2060 = vmul.f32 %v2055, %v2059
    %v2061 = vadd.f32 %v1937, %v2060
    %v2062 = vld [vmem:[#allocation2 + $0x48] sm:$0xff]
    %v2063 = vld [vmem:[#allocation2 + $0x50] sm:$0xff]
    %v2064 = vld [vmem:[#allocation2 + $0x58] sm:$0xff]
    %v2065 = vld [vmem:[#allocation2 + $0x60] sm:$0xff]
    %v2066 = vld [vmem:[#allocation2 + $0x68] sm:$0xff]
    %v2067 = vld [vmem:[#allocation2 + $0x70] sm:$0xff]
    %v2068 = vsel %vm164, %v2062, %v2065
    %v2069 = vsel %vm165, %v2063, %v2066
    %v2070 = vsel %vm166, %v2064, %v2067
    %2071 = vmatpush.msra.mxu0 %v1684
    %2072 = vmatpush.msra.mxu0 %v1681
    %2073 = vmatpush.msra.mxu0 %v1678
    %2074 = vmatpush.msra.mxu0 %v1675
    %2075 = vmatpush.msra.mxu0 %v1672
    %2076 = vmatpush.msra.mxu0 %v1669
    %2077 = vmatpush.msra.mxu0 %v1666
    %2078 = vmatpush.msra.mxu0 %v1663
    %2079 = vmatpush.msra.mxu0 %v1660
    %2080 = vmatpush.msra.mxu0 %v1657
    %2081 = vmatpush.msra.mxu0 %v1654
    %2082 = vmatpush.msra.mxu0 %v1651
    %2083 = vmatpush.msra.mxu0 %v1648
    %2084 = vmatpush.msra.mxu0 %v1645
    %2085 = vmatpush.msra.mxu0 %v1642
    %2086 = vmatpush.msra.mxu0 %v1639
    %2087 = vmatmul.f32.gmra.mxu0 %v2061
    %v2088 = vpop.f32.mrf.mxu0
    %v2089 = vadd.f32 0.0, %v2088
    %2090 = vdwg.mxu0
    %2091 = vmatpush.msra.mxu0 %v1685
    %2092 = vmatpush.msra.mxu0 %v1682
    %2093 = vmatpush.msra.mxu0 %v1679
    %2094 = vmatpush.msra.mxu0 %v1676
    %2095 = vmatpush.msra.mxu0 %v1673
    %2096 = vmatpush.msra.mxu0 %v1670
    %2097 = vmatpush.msra.mxu0 %v1667
    %2098 = vmatpush.msra.mxu0 %v1664
    %2099 = vmatpush.msra.mxu0 %v1661
    %2100 = vmatpush.msra.mxu0 %v1658
    %2101 = vmatpush.msra.mxu0 %v1655
    %2102 = vmatpush.msra.mxu0 %v1652
    %2103 = vmatpush.msra.mxu0 %v1649
    %2104 = vmatpush.msra.mxu0 %v1646
    %2105 = vmatpush.msra.mxu0 %v1643
    %2106 = vmatpush.msra.mxu0 %v1640
    %2107 = vmatmul.f32.gmra.mxu0 %v2061
    %v2108 = vpop.f32.mrf.mxu0
    %v2109 = vadd.f32 0.0, %v2108
    %2110 = vdwg.mxu0
    %2111 = vmatpush.msra.mxu0 %v1686
    %2112 = vmatpush.msra.mxu0 %v1683
    %2113 = vmatpush.msra.mxu0 %v1680
    %2114 = vmatpush.msra.mxu0 %v1677
    %2115 = vmatpush.msra.mxu0 %v1674
    %2116 = vmatpush.msra.mxu0 %v1671
    %2117 = vmatpush.msra.mxu0 %v1668
    %2118 = vmatpush.msra.mxu0 %v1665
    %2119 = vmatpush.msra.mxu0 %v1662
    %2120 = vmatpush.msra.mxu0 %v1659
    %2121 = vmatpush.msra.mxu0 %v1656
    %2122 = vmatpush.msra.mxu0 %v1653
    %2123 = vmatpush.msra.mxu0 %v1650
    %2124 = vmatpush.msra.mxu0 %v1647
    %2125 = vmatpush.msra.mxu0 %v1644
    %2126 = vmatpush.msra.mxu0 %v1641
    %2127 = vmatmul.f32.gmra.mxu0 %v2061
    %v2128 = vpop.f32.mrf.mxu0
    %v2129 = vadd.f32 0.0, %v2128
    %2130 = vdwg.mxu0
    %v2131 = vadd.f32 %v2068, %v2089
    %v2132 = vxor.u32 %v2131, 2147483648
    %v2133 = vmul.f32 %v2132, 1.442695
    %v2134 = vpow.pop %v2133
    %v2135 = vadd.f32 %v2134, 1.0
    %v2136 = vrcp.pop %v2135
    %v2137 = vmul.f32 %v2135, %v2136
    %v2138 = vsub.f32 1.0, %v2137
    %v2139 = vmul.f32 %v2136, %v2138
    %v2140 = vadd.f32 %v2136, %v2139
    %vm2141 = vweird.f32 %v2135
    %vm2142 = vweird.f32 %v2136
    %vm2143 = vmor %vm2141, %vm2142
    %v2144 = vsel %vm2143, %v2136, %v2140
    %v2145 = vand.u32 2147483647, %v2135
    %vm2146 = vcmp.eq.f32.partialorder %v2145, 8.507059e+37
    %v2147 = vand.u32 %v2135, 2147483648
    %v2148 = vor.u32 1.1754944e-38, %v2147
    %v2149 = vsel %vm2146, %v2148, %v2144
    %v2150 = vmul.f32 1.0, %v2149
    %v2151 = vadd.f32 %v2069, %v2109
    %v2152 = vxor.u32 %v2151, 2147483648
    %v2153 = vmul.f32 %v2152, 1.442695
    %v2154 = vpow.pop %v2153
    %v2155 = vadd.f32 %v2154, 1.0
    %v2156 = vrcp.pop %v2155
    %v2157 = vmul.f32 %v2155, %v2156
    %v2158 = vsub.f32 1.0, %v2157
    %v2159 = vmul.f32 %v2156, %v2158
    %v2160 = vadd.f32 %v2156, %v2159
    %vm2161 = vweird.f32 %v2155
    %vm2162 = vweird.f32 %v2156
    %vm2163 = vmor %vm2161, %vm2162
    %v2164 = vsel %vm2163, %v2156, %v2160
    %v2165 = vand.u32 2147483647, %v2155
    %vm2166 = vcmp.eq.f32.partialorder %v2165, 8.507059e+37
    %v2167 = vand.u32 %v2155, 2147483648
    %v2168 = vor.u32 1.1754944e-38, %v2167
    %v2169 = vsel %vm2166, %v2168, %v2164
    %v2170 = vmul.f32 1.0, %v2169
    %v2171 = vadd.f32 %v2129, %v1799
    %v2172 = vmul.f32 %v2150, %v2171
    %v2173 = vadd.f32 %v2070, %v2172
    %v2174 = vtanh.pop %v2173
    %v2175 = vsub.f32 1.0, %v2170
    %v2176 = vmul.f32 %v2175, %v2174
    %v2177 = vmul.f32 %v2170, %v2061
    %v2178 = vadd.f32 %v2176, %v2177
    %v2179 = vld [vmem:[%s921] sm:$0xff]
    %v2180 = vmul.f32 %v2179, %v2178
    %2181 = vst.msk [vmem:[#allocation15 + $0x18] sm:$0xff] %vm207, %v2180
    %2182 = vst.msk [vmem:[#allocation15 + $0x20] sm:$0xff] %vm551, %v2180
    %v2183 = vsub.f32 %v2178, %v2061
    %v2184 = vmul.f32 %v2179, %v2183
    %v2185 = vadd.f32 %v2061, %v2184
    %v2186 = vld [vmem:[#allocation2 + $0x60] sm:$0xff]
    %v2187 = vld [vmem:[#allocation2 + $0x68] sm:$0xff]
    %v2188 = vld [vmem:[#allocation2 + $0x70] sm:$0xff]
    %v2189 = vld [vmem:[#allocation2 + $0x48] sm:$0xff]
    %v2190 = vld [vmem:[#allocation2 + $0x50] sm:$0xff]
    %v2191 = vld [vmem:[#allocation2 + $0x58] sm:$0xff]
    %v2192 = vsel %vm164, %v2186, %v2189
    %v2193 = vsel %vm165, %v2187, %v2190
    %v2194 = vsel %vm166, %v2188, %v2191
    %2195 = vmatpush.msra.mxu0 %v1684
    %2196 = vmatpush.msra.mxu0 %v1681
    %2197 = vmatpush.msra.mxu0 %v1678
    %2198 = vmatpush.msra.mxu0 %v1675
    %2199 = vmatpush.msra.mxu0 %v1672
    %2200 = vmatpush.msra.mxu0 %v1669
    %2201 = vmatpush.msra.mxu0 %v1666
    %2202 = vmatpush.msra.mxu0 %v1663
    %2203 = vmatpush.msra.mxu0 %v1660
    %2204 = vmatpush.msra.mxu0 %v1657
    %2205 = vmatpush.msra.mxu0 %v1654
    %2206 = vmatpush.msra.mxu0 %v1651
    %2207 = vmatpush.msra.mxu0 %v1648
    %2208 = vmatpush.msra.mxu0 %v1645
    %2209 = vmatpush.msra.mxu0 %v1642
    %2210 = vmatpush.msra.mxu0 %v1639
    %2211 = vmatmul.f32.gmra.mxu0 %v2185
    %v2212 = vpop.f32.mrf.mxu0
    %v2213 = vadd.f32 0.0, %v2212
    %2214 = vdwg.mxu0
    %2215 = vmatpush.msra.mxu0 %v1685
    %2216 = vmatpush.msra.mxu0 %v1682
    %2217 = vmatpush.msra.mxu0 %v1679
    %2218 = vmatpush.msra.mxu0 %v1676
    %2219 = vmatpush.msra.mxu0 %v1673
    %2220 = vmatpush.msra.mxu0 %v1670
    %2221 = vmatpush.msra.mxu0 %v1667
    %2222 = vmatpush.msra.mxu0 %v1664
    %2223 = vmatpush.msra.mxu0 %v1661
    %2224 = vmatpush.msra.mxu0 %v1658
    %2225 = vmatpush.msra.mxu0 %v1655
    %2226 = vmatpush.msra.mxu0 %v1652
    %2227 = vmatpush.msra.mxu0 %v1649
    %2228 = vmatpush.msra.mxu0 %v1646
    %2229 = vmatpush.msra.mxu0 %v1643
    %2230 = vmatpush.msra.mxu0 %v1640
    %2231 = vmatmul.f32.gmra.mxu0 %v2185
    %v2232 = vpop.f32.mrf.mxu0
    %v2233 = vadd.f32 0.0, %v2232
    %2234 = vdwg.mxu0
    %2235 = vmatpush.msra.mxu0 %v1686
    %2236 = vmatpush.msra.mxu0 %v1683
    %2237 = vmatpush.msra.mxu0 %v1680
    %2238 = vmatpush.msra.mxu0 %v1677
    %2239 = vmatpush.msra.mxu0 %v1674
    %2240 = vmatpush.msra.mxu0 %v1671
    %2241 = vmatpush.msra.mxu0 %v1668
    %2242 = vmatpush.msra.mxu0 %v1665
    %2243 = vmatpush.msra.mxu0 %v1662
    %2244 = vmatpush.msra.mxu0 %v1659
    %2245 = vmatpush.msra.mxu0 %v1656
    %2246 = vmatpush.msra.mxu0 %v1653
    %2247 = vmatpush.msra.mxu0 %v1650
    %2248 = vmatpush.msra.mxu0 %v1647
    %2249 = vmatpush.msra.mxu0 %v1644
    %2250 = vmatpush.msra.mxu0 %v1641
    %2251 = vmatmul.f32.gmra.mxu0 %v2185
    %v2252 = vpop.f32.mrf.mxu0
    %v2253 = vadd.f32 0.0, %v2252
    %2254 = vdwg.mxu0
    %v2255 = vadd.f32 %v2192, %v2213
    %v2256 = vxor.u32 %v2255, 2147483648
    %v2257 = vmul.f32 %v2256, 1.442695
    %v2258 = vpow.pop %v2257
    %v2259 = vadd.f32 %v2258, 1.0
    %v2260 = vrcp.pop %v2259
    %v2261 = vmul.f32 %v2259, %v2260
    %v2262 = vsub.f32 1.0, %v2261
    %v2263 = vmul.f32 %v2260, %v2262
    %v2264 = vadd.f32 %v2260, %v2263
    %vm2265 = vweird.f32 %v2259
    %vm2266 = vweird.f32 %v2260
    %vm2267 = vmor %vm2265, %vm2266
    %v2268 = vsel %vm2267, %v2260, %v2264
    %v2269 = vand.u32 2147483647, %v2259
    %vm2270 = vcmp.eq.f32.partialorder %v2269, 8.507059e+37
    %v2271 = vand.u32 %v2259, 2147483648
    %v2272 = vor.u32 1.1754944e-38, %v2271
    %v2273 = vsel %vm2270, %v2272, %v2268
    %v2274 = vmul.f32 1.0, %v2273
    %v2275 = vadd.f32 %v2193, %v2233
    %v2276 = vxor.u32 %v2275, 2147483648
    %v2277 = vmul.f32 %v2276, 1.442695
    %v2278 = vpow.pop %v2277
    %v2279 = vadd.f32 %v2278, 1.0
    %v2280 = vrcp.pop %v2279
    %v2281 = vmul.f32 %v2279, %v2280
    %v2282 = vsub.f32 1.0, %v2281
    %v2283 = vmul.f32 %v2280, %v2282
    %v2284 = vadd.f32 %v2280, %v2283
    %vm2285 = vweird.f32 %v2279
    %vm2286 = vweird.f32 %v2280
    %vm2287 = vmor %vm2285, %vm2286
    %v2288 = vsel %vm2287, %v2280, %v2284
    %v2289 = vand.u32 2147483647, %v2279
    %vm2290 = vcmp.eq.f32.partialorder %v2289, 8.507059e+37
    %v2291 = vand.u32 %v2279, 2147483648
    %v2292 = vor.u32 1.1754944e-38, %v2291
    %v2293 = vsel %vm2290, %v2292, %v2288
    %v2294 = vmul.f32 1.0, %v2293
    %v2295 = vadd.f32 %v2253, %v1799
    %v2296 = vmul.f32 %v2274, %v2295
    %v2297 = vadd.f32 %v2194, %v2296
    %v2298 = vtanh.pop %v2297
    %v2299 = vsub.f32 1.0, %v2294
    %v2300 = vmul.f32 %v2299, %v2298
    %v2301 = vmul.f32 %v2294, %v2185
    %v2302 = vadd.f32 %v2300, %v2301
    %v2303 = vld [vmem:[%s1046] sm:$0xff]
    %v2304 = vmul.f32 %v2303, %v2302
    %2305 = vst.msk [vmem:[#allocation15 + $0x20] sm:$0xff] %vm207, %v2304
    %2306 = vst.msk [vmem:[#allocation15 + $0x18] sm:$0xff] %vm551, %v2304
    %v2307 = vsub.f32 %v2302, %v2185
    %v2308 = vmul.f32 %v2303, %v2307
    %v2309 = vadd.f32 %v2185, %v2308
    %v2310 = vld [vmem:[#allocation2 + $0x78] sm:$0xff]
    %v2311 = vld [vmem:[#allocation2 + $0x80] sm:$0xff]
    %v2312 = vld [vmem:[#allocation2 + $0x88] sm:$0xff]
    %v2313 = vld [vmem:[#allocation2 + $0x30] sm:$0xff]
    %v2314 = vld [vmem:[#allocation2 + $0x38] sm:$0xff]
    %v2315 = vld [vmem:[#allocation2 + $0x40] sm:$0xff]
    %v2316 = vsel %vm164, %v2310, %v2313
    %v2317 = vsel %vm165, %v2311, %v2314
    %v2318 = vsel %vm166, %v2312, %v2315
    %2319 = vmatpush.msra.mxu0 %v1684
    %2320 = vmatpush.msra.mxu0 %v1681
    %2321 = vmatpush.msra.mxu0 %v1678
    %2322 = vmatpush.msra.mxu0 %v1675
    %2323 = vmatpush.msra.mxu0 %v1672
    %2324 = vmatpush.msra.mxu0 %v1669
    %2325 = vmatpush.msra.mxu0 %v1666
    %2326 = vmatpush.msra.mxu0 %v1663
    %2327 = vmatpush.msra.mxu0 %v1660
    %2328 = vmatpush.msra.mxu0 %v1657
    %2329 = vmatpush.msra.mxu0 %v1654
    %2330 = vmatpush.msra.mxu0 %v1651
    %2331 = vmatpush.msra.mxu0 %v1648
    %2332 = vmatpush.msra.mxu0 %v1645
    %2333 = vmatpush.msra.mxu0 %v1642
    %2334 = vmatpush.msra.mxu0 %v1639
    %2335 = vmatmul.f32.gmra.mxu0 %v2309
    %v2336 = vpop.f32.mrf.mxu0
    %v2337 = vadd.f32 0.0, %v2336
    %2338 = vdwg.mxu0
    %2339 = vmatpush.msra.mxu0 %v1685
    %2340 = vmatpush.msra.mxu0 %v1682
    %2341 = vmatpush.msra.mxu0 %v1679
    %2342 = vmatpush.msra.mxu0 %v1676
    %2343 = vmatpush.msra.mxu0 %v1673
    %2344 = vmatpush.msra.mxu0 %v1670
    %2345 = vmatpush.msra.mxu0 %v1667
    %2346 = vmatpush.msra.mxu0 %v1664
    %2347 = vmatpush.msra.mxu0 %v1661
    %2348 = vmatpush.msra.mxu0 %v1658
    %2349 = vmatpush.msra.mxu0 %v1655
    %2350 = vmatpush.msra.mxu0 %v1652
    %2351 = vmatpush.msra.mxu0 %v1649
    %2352 = vmatpush.msra.mxu0 %v1646
    %2353 = vmatpush.msra.mxu0 %v1643
    %2354 = vmatpush.msra.mxu0 %v1640
    %2355 = vmatmul.f32.gmra.mxu0 %v2309
    %v2356 = vpop.f32.mrf.mxu0
    %v2357 = vadd.f32 0.0, %v2356
    %2358 = vdwg.mxu0
    %2359 = vmatpush.msra.mxu0 %v1686
    %2360 = vmatpush.msra.mxu0 %v1683
    %2361 = vmatpush.msra.mxu0 %v1680
    %2362 = vmatpush.msra.mxu0 %v1677
    %2363 = vmatpush.msra.mxu0 %v1674
    %2364 = vmatpush.msra.mxu0 %v1671
    %2365 = vmatpush.msra.mxu0 %v1668
    %2366 = vmatpush.msra.mxu0 %v1665
    %2367 = vmatpush.msra.mxu0 %v1662
    %2368 = vmatpush.msra.mxu0 %v1659
    %2369 = vmatpush.msra.mxu0 %v1656
    %2370 = vmatpush.msra.mxu0 %v1653
    %2371 = vmatpush.msra.mxu0 %v1650
    %2372 = vmatpush.msra.mxu0 %v1647
    %2373 = vmatpush.msra.mxu0 %v1644
    %2374 = vmatpush.msra.mxu0 %v1641
    %2375 = vmatmul.f32.gmra.mxu0 %v2309
    %v2376 = vpop.f32.mrf.mxu0
    %v2377 = vadd.f32 0.0, %v2376
    %2378 = vdwg.mxu0
    %v2379 = vadd.f32 %v2316, %v2337
    %v2380 = vxor.u32 %v2379, 2147483648
    %v2381 = vmul.f32 %v2380, 1.442695
    %v2382 = vpow.pop %v2381
    %v2383 = vadd.f32 %v2382, 1.0
    %v2384 = vrcp.pop %v2383
    %v2385 = vmul.f32 %v2383, %v2384
    %v2386 = vsub.f32 1.0, %v2385
    %v2387 = vmul.f32 %v2384, %v2386
    %v2388 = vadd.f32 %v2384, %v2387
    %vm2389 = vweird.f32 %v2383
    %vm2390 = vweird.f32 %v2384
    %vm2391 = vmor %vm2389, %vm2390
    %v2392 = vsel %vm2391, %v2384, %v2388
    %v2393 = vand.u32 2147483647, %v2383
    %vm2394 = vcmp.eq.f32.partialorder %v2393, 8.507059e+37
    %v2395 = vand.u32 %v2383, 2147483648
    %v2396 = vor.u32 1.1754944e-38, %v2395
    %v2397 = vsel %vm2394, %v2396, %v2392
    %v2398 = vmul.f32 1.0, %v2397
    %v2399 = vadd.f32 %v2317, %v2357
    %v2400 = vxor.u32 %v2399, 2147483648
    %v2401 = vmul.f32 %v2400, 1.442695
    %v2402 = vpow.pop %v2401
    %v2403 = vadd.f32 %v2402, 1.0
    %v2404 = vrcp.pop %v2403
    %v2405 = vmul.f32 %v2403, %v2404
    %v2406 = vsub.f32 1.0, %v2405
    %v2407 = vmul.f32 %v2404, %v2406
    %v2408 = vadd.f32 %v2404, %v2407
    %vm2409 = vweird.f32 %v2403
    %vm2410 = vweird.f32 %v2404
    %vm2411 = vmor %vm2409, %vm2410
    %v2412 = vsel %vm2411, %v2404, %v2408
    %v2413 = vand.u32 2147483647, %v2403
    %vm2414 = vcmp.eq.f32.partialorder %v2413, 8.507059e+37
    %v2415 = vand.u32 %v2403, 2147483648
    %v2416 = vor.u32 1.1754944e-38, %v2415
    %v2417 = vsel %vm2414, %v2416, %v2412
    %v2418 = vmul.f32 1.0, %v2417
    %v2419 = vadd.f32 %v2377, %v1799
    %v2420 = vmul.f32 %v2398, %v2419
    %v2421 = vadd.f32 %v2318, %v2420
    %v2422 = vtanh.pop %v2421
    %v2423 = vsub.f32 1.0, %v2418
    %v2424 = vmul.f32 %v2423, %v2422
    %v2425 = vmul.f32 %v2418, %v2309
    %v2426 = vadd.f32 %v2424, %v2425
    %v2427 = vld [vmem:[%s1171] sm:$0xff]
    %v2428 = vmul.f32 %v2427, %v2426
    %2429 = vst.msk [vmem:[#allocation15 + $0x28] sm:$0xff] %vm207, %v2428
    %2430 = vst.msk [vmem:[#allocation15 + $0x10] sm:$0xff] %vm551, %v2428
    %v2431 = vsub.f32 %v2426, %v2309
    %v2432 = vmul.f32 %v2427, %v2431
    %v2433 = vadd.f32 %v2309, %v2432
    %v2434 = vld [vmem:[#allocation2 + $0x90] sm:$0xff]
    %v2435 = vld [vmem:[#allocation2 + $0x98] sm:$0xff]
    %v2436 = vld [vmem:[#allocation2 + $0xa0] sm:$0xff]
    %v2437 = vld [vmem:[#allocation2 + $0x18] sm:$0xff]
    %v2438 = vld [vmem:[#allocation2 + $0x20] sm:$0xff]
    %v2439 = vld [vmem:[#allocation2 + $0x28] sm:$0xff]
    %v2440 = vsel %vm164, %v2434, %v2437
    %v2441 = vsel %vm165, %v2435, %v2438
    %v2442 = vsel %vm166, %v2436, %v2439
    %2443 = vmatpush.msra.mxu0 %v1684
    %2444 = vmatpush.msra.mxu0 %v1681
    %2445 = vmatpush.msra.mxu0 %v1678
    %2446 = vmatpush.msra.mxu0 %v1675
    %2447 = vmatpush.msra.mxu0 %v1672
    %2448 = vmatpush.msra.mxu0 %v1669
    %2449 = vmatpush.msra.mxu0 %v1666
    %2450 = vmatpush.msra.mxu0 %v1663
    %2451 = vmatpush.msra.mxu0 %v1660
    %2452 = vmatpush.msra.mxu0 %v1657
    %2453 = vmatpush.msra.mxu0 %v1654
    %2454 = vmatpush.msra.mxu0 %v1651
    %2455 = vmatpush.msra.mxu0 %v1648
    %2456 = vmatpush.msra.mxu0 %v1645
    %2457 = vmatpush.msra.mxu0 %v1642
    %2458 = vmatpush.msra.mxu0 %v1639
    %2459 = vmatmul.f32.gmra.mxu0 %v2433
    %v2460 = vpop.f32.mrf.mxu0
    %v2461 = vadd.f32 0.0, %v2460
    %2462 = vdwg.mxu0
    %2463 = vmatpush.msra.mxu0 %v1685
    %2464 = vmatpush.msra.mxu0 %v1682
    %2465 = vmatpush.msra.mxu0 %v1679
    %2466 = vmatpush.msra.mxu0 %v1676
    %2467 = vmatpush.msra.mxu0 %v1673
    %2468 = vmatpush.msra.mxu0 %v1670
    %2469 = vmatpush.msra.mxu0 %v1667
    %2470 = vmatpush.msra.mxu0 %v1664
    %2471 = vmatpush.msra.mxu0 %v1661
    %2472 = vmatpush.msra.mxu0 %v1658
    %2473 = vmatpush.msra.mxu0 %v1655
    %2474 = vmatpush.msra.mxu0 %v1652
    %2475 = vmatpush.msra.mxu0 %v1649
    %2476 = vmatpush.msra.mxu0 %v1646
    %2477 = vmatpush.msra.mxu0 %v1643
    %2478 = vmatpush.msra.mxu0 %v1640
    %2479 = vmatmul.f32.gmra.mxu0 %v2433
    %v2480 = vpop.f32.mrf.mxu0
    %v2481 = vadd.f32 0.0, %v2480
    %2482 = vdwg.mxu0
    %2483 = vmatpush.msra.mxu0 %v1686
    %2484 = vmatpush.msra.mxu0 %v1683
    %2485 = vmatpush.msra.mxu0 %v1680
    %2486 = vmatpush.msra.mxu0 %v1677
    %2487 = vmatpush.msra.mxu0 %v1674
    %2488 = vmatpush.msra.mxu0 %v1671
    %2489 = vmatpush.msra.mxu0 %v1668
    %2490 = vmatpush.msra.mxu0 %v1665
    %2491 = vmatpush.msra.mxu0 %v1662
    %2492 = vmatpush.msra.mxu0 %v1659
    %2493 = vmatpush.msra.mxu0 %v1656
    %2494 = vmatpush.msra.mxu0 %v1653
    %2495 = vmatpush.msra.mxu0 %v1650
    %2496 = vmatpush.msra.mxu0 %v1647
    %2497 = vmatpush.msra.mxu0 %v1644
    %2498 = vmatpush.msra.mxu0 %v1641
    %2499 = vmatmul.f32.gmra.mxu0 %v2433
    %v2500 = vpop.f32.mrf.mxu0
    %v2501 = vadd.f32 0.0, %v2500
    %2502 = vdwg.mxu0
    %v2503 = vadd.f32 %v2440, %v2461
    %v2504 = vxor.u32 %v2503, 2147483648
    %v2505 = vmul.f32 %v2504, 1.442695
    %v2506 = vpow.pop %v2505
    %v2507 = vadd.f32 %v2506, 1.0
    %v2508 = vrcp.pop %v2507
    %v2509 = vmul.f32 %v2507, %v2508
    %v2510 = vsub.f32 1.0, %v2509
    %v2511 = vmul.f32 %v2508, %v2510
    %v2512 = vadd.f32 %v2508, %v2511
    %vm2513 = vweird.f32 %v2507
    %vm2514 = vweird.f32 %v2508
    %vm2515 = vmor %vm2513, %vm2514
    %v2516 = vsel %vm2515, %v2508, %v2512
    %v2517 = vand.u32 2147483647, %v2507
    %vm2518 = vcmp.eq.f32.partialorder %v2517, 8.507059e+37
    %v2519 = vand.u32 %v2507, 2147483648
    %v2520 = vor.u32 1.1754944e-38, %v2519
    %v2521 = vsel %vm2518, %v2520, %v2516
    %v2522 = vmul.f32 1.0, %v2521
    %v2523 = vadd.f32 %v2441, %v2481
    %v2524 = vxor.u32 %v2523, 2147483648
    %v2525 = vmul.f32 %v2524, 1.442695
    %v2526 = vpow.pop %v2525
    %v2527 = vadd.f32 %v2526, 1.0
    %v2528 = vrcp.pop %v2527
    %v2529 = vmul.f32 %v2527, %v2528
    %v2530 = vsub.f32 1.0, %v2529
    %v2531 = vmul.f32 %v2528, %v2530
    %v2532 = vadd.f32 %v2528, %v2531
    %vm2533 = vweird.f32 %v2527
    %vm2534 = vweird.f32 %v2528
    %vm2535 = vmor %vm2533, %vm2534
    %v2536 = vsel %vm2535, %v2528, %v2532
    %v2537 = vand.u32 2147483647, %v2527
    %vm2538 = vcmp.eq.f32.partialorder %v2537, 8.507059e+37
    %v2539 = vand.u32 %v2527, 2147483648
    %v2540 = vor.u32 1.1754944e-38, %v2539
    %v2541 = vsel %vm2538, %v2540, %v2536
    %v2542 = vmul.f32 1.0, %v2541
    %v2543 = vadd.f32 %v2501, %v1799
    %v2544 = vmul.f32 %v2522, %v2543
    %v2545 = vadd.f32 %v2442, %v2544
    %v2546 = vtanh.pop %v2545
    %v2547 = vsub.f32 1.0, %v2542
    %v2548 = vmul.f32 %v2547, %v2546
    %v2549 = vmul.f32 %v2542, %v2433
    %v2550 = vadd.f32 %v2548, %v2549
    %v2551 = vld [vmem:[%s1296] sm:$0xff]
    %v2552 = vmul.f32 %v2551, %v2550
    %2553 = vst.msk [vmem:[#allocation15 + $0x30] sm:$0xff] %vm207, %v2552
    %2554 = vst.msk [vmem:[#allocation15 + $0x8] sm:$0xff] %vm551, %v2552
    %v2555 = vsub.f32 %v2550, %v2433
    %v2556 = vmul.f32 %v2551, %v2555
    %v2557 = vadd.f32 %v2433, %v2556
    %v2558 = vld [vmem:[#allocation2 + $0xa8] sm:$0xff]
    %v2559 = vld [vmem:[#allocation2 + $0xb0] sm:$0xff]
    %v2560 = vld [vmem:[#allocation2 + $0xb8] sm:$0xff]
    %v2561 = vld [vmem:[#allocation2] sm:$0xff]
    %v2562 = vld [vmem:[#allocation2 + $0x8] sm:$0xff]
    %v2563 = vld [vmem:[#allocation2 + $0x10] sm:$0xff]
    %v2564 = vsel %vm164, %v2558, %v2561
    %v2565 = vsel %vm165, %v2559, %v2562
    %v2566 = vsel %vm166, %v2560, %v2563
    %2567 = vmatpush.msra.mxu0 %v1684
    %2568 = vmatpush.msra.mxu0 %v1681
    %2569 = vmatpush.msra.mxu0 %v1678
    %2570 = vmatpush.msra.mxu0 %v1675
    %2571 = vmatpush.msra.mxu0 %v1672
    %2572 = vmatpush.msra.mxu0 %v1669
    %2573 = vmatpush.msra.mxu0 %v1666
    %2574 = vmatpush.msra.mxu0 %v1663
    %2575 = vmatpush.msra.mxu0 %v1660
    %2576 = vmatpush.msra.mxu0 %v1657
    %2577 = vmatpush.msra.mxu0 %v1654
    %2578 = vmatpush.msra.mxu0 %v1651
    %2579 = vmatpush.msra.mxu0 %v1648
    %2580 = vmatpush.msra.mxu0 %v1645
    %2581 = vmatpush.msra.mxu0 %v1642
    %2582 = vmatpush.msra.mxu0 %v1639
    %2583 = vmatmul.f32.gmra.mxu0 %v2557
    %v2584 = vpop.f32.mrf.mxu0
    %v2585 = vadd.f32 0.0, %v2584
    %2586 = vdwg.mxu0
    %2587 = vmatpush.msra.mxu0 %v1685
    %2588 = vmatpush.msra.mxu0 %v1682
    %2589 = vmatpush.msra.mxu0 %v1679
    %2590 = vmatpush.msra.mxu0 %v1676
    %2591 = vmatpush.msra.mxu0 %v1673
    %2592 = vmatpush.msra.mxu0 %v1670
    %2593 = vmatpush.msra.mxu0 %v1667
    %2594 = vmatpush.msra.mxu0 %v1664
    %2595 = vmatpush.msra.mxu0 %v1661
    %2596 = vmatpush.msra.mxu0 %v1658
    %2597 = vmatpush.msra.mxu0 %v1655
    %2598 = vmatpush.msra.mxu0 %v1652
    %2599 = vmatpush.msra.mxu0 %v1649
    %2600 = vmatpush.msra.mxu0 %v1646
    %2601 = vmatpush.msra.mxu0 %v1643
    %2602 = vmatpush.msra.mxu0 %v1640
    %2603 = vmatmul.f32.gmra.mxu0 %v2557
    %v2604 = vpop.f32.mrf.mxu0
    %v2605 = vadd.f32 0.0, %v2604
    %2606 = vdwg.mxu0
    %2607 = vmatpush.msra.mxu0 %v1686
    %2608 = vmatpush.msra.mxu0 %v1683
    %2609 = vmatpush.msra.mxu0 %v1680
    %2610 = vmatpush.msra.mxu0 %v1677
    %2611 = vmatpush.msra.mxu0 %v1674
    %2612 = vmatpush.msra.mxu0 %v1671
    %2613 = vmatpush.msra.mxu0 %v1668
    %2614 = vmatpush.msra.mxu0 %v1665
    %2615 = vmatpush.msra.mxu0 %v1662
    %2616 = vmatpush.msra.mxu0 %v1659
    %2617 = vmatpush.msra.mxu0 %v1656
    %2618 = vmatpush.msra.mxu0 %v1653
    %2619 = vmatpush.msra.mxu0 %v1650
    %2620 = vmatpush.msra.mxu0 %v1647
    %2621 = vmatpush.msra.mxu0 %v1644
    %2622 = vmatpush.msra.mxu0 %v1641
    %2623 = vmatmul.f32.gmra.mxu0 %v2557
    %v2624 = vpop.f32.mrf.mxu0
    %v2625 = vadd.f32 0.0, %v2624
    %2626 = vdwg.mxu0
    %v2627 = vadd.f32 %v2564, %v2585
    %v2628 = vxor.u32 %v2627, 2147483648
    %v2629 = vmul.f32 %v2628, 1.442695
    %v2630 = vpow.pop %v2629
    %v2631 = vadd.f32 %v2630, 1.0
    %v2632 = vrcp.pop %v2631
    %v2633 = vmul.f32 %v2631, %v2632
    %v2634 = vsub.f32 1.0, %v2633
    %v2635 = vmul.f32 %v2632, %v2634
    %v2636 = vadd.f32 %v2632, %v2635
    %vm2637 = vweird.f32 %v2631
    %vm2638 = vweird.f32 %v2632
    %vm2639 = vmor %vm2637, %vm2638
    %v2640 = vsel %vm2639, %v2632, %v2636
    %v2641 = vand.u32 2147483647, %v2631
    %vm2642 = vcmp.eq.f32.partialorder %v2641, 8.507059e+37
    %v2643 = vand.u32 %v2631, 2147483648
    %v2644 = vor.u32 1.1754944e-38, %v2643
    %v2645 = vsel %vm2642, %v2644, %v2640
    %v2646 = vmul.f32 1.0, %v2645
    %v2647 = vadd.f32 %v2565, %v2605
    %v2648 = vxor.u32 %v2647, 2147483648
    %v2649 = vmul.f32 %v2648, 1.442695
    %v2650 = vpow.pop %v2649
    %v2651 = vadd.f32 %v2650, 1.0
    %v2652 = vrcp.pop %v2651
    %v2653 = vmul.f32 %v2651, %v2652
    %v2654 = vsub.f32 1.0, %v2653
    %v2655 = vmul.f32 %v2652, %v2654
    %v2656 = vadd.f32 %v2652, %v2655
    %vm2657 = vweird.f32 %v2651
    %vm2658 = vweird.f32 %v2652
    %vm2659 = vmor %vm2657, %vm2658
    %v2660 = vsel %vm2659, %v2652, %v2656
    %v2661 = vand.u32 2147483647, %v2651
    %vm2662 = vcmp.eq.f32.partialorder %v2661, 8.507059e+37
    %v2663 = vand.u32 %v2651, 2147483648
    %v2664 = vor.u32 1.1754944e-38, %v2663
    %v2665 = vsel %vm2662, %v2664, %v2660
    %v2666 = vmul.f32 1.0, %v2665
    %v2667 = vadd.f32 %v2625, %v1799
    %v2668 = vmul.f32 %v2646, %v2667
    %v2669 = vadd.f32 %v2566, %v2668
    %v2670 = vtanh.pop %v2669
    %v2671 = vsub.f32 1.0, %v2666
    %v2672 = vmul.f32 %v2671, %v2670
    %v2673 = vmul.f32 %v2666, %v2557
    %v2674 = vadd.f32 %v2672, %v2673
    %v2675 = vld [vmem:[%s1421] sm:$0xff]
    %v2676 = vmul.f32 %v2675, %v2674
    %2677 = vst.msk [vmem:[#allocation15 + $0x38] sm:$0xff] %vm207, %v2676
    %2678 = vst.msk [vmem:[#allocation15] sm:$0xff] %vm551, %v2676
    %v2679 = vsub.f32 %v2674, %v2557
    %v2680 = vmul.f32 %v2675, %v2679
    %v2681 = vadd.f32 %v2557, %v2680
    %2682 = vst [vmem:[#allocation16] sm:$0xff] %v2681
    // Predicated region
    $region54: #{tpu_custom_call.1} parent=1 // pred_check
      _
    $region55: #{tpu_custom_call.1} parent=1 // pred_check_branch
      %2684 = sbr.rel (0) target = $region57
    $region56: #{tpu_custom_call.1} parent=1 // pred_region
      %2686 = vsyncadd [#allocation6], 0
      %s2687 = sshll.u32 [#allocation15], 4
      %s2688 = int_to_ptr.vmem [resolvable:$true] %s2687
      %s2689 = sshll.u32 %s7, 4
      %s2690 = int_to_ptr.hbm [resolvable:$true] %s2689
      %2695 = dma.vmem_to_hbm [thread:$0]  %s2688, 1024, %s2690, [#allocation6], 128, 128, 8
    $region57: #{tpu_custom_call.1} parent=1 // pred_fallthru
      _
    // Predicated region
    $region58: #{tpu_custom_call.1} parent=1 // pred_check
      _
    $region59: #{tpu_custom_call.1} parent=1 // pred_check_branch
      %2697 = sbr.rel (0) target = $region61
    $region60: #{tpu_custom_call.1} parent=1 // pred_region
      %2699 = vsyncadd [#allocation17], 0
      %s2701 = sshll.u32 [#allocation16], 4
      %s2702 = int_to_ptr.vmem [resolvable:$true] %s2701
      %s2703 = sshll.u32 %s8, 4
      %s2704 = int_to_ptr.hbm [resolvable:$true] %s2703
      %2706 = dma.vmem_to_hbm [thread:$0]  %s2702, 128, %s2704, [#allocation17]
    $region61: #{tpu_custom_call.1} parent=1 // pred_fallthru
      _
    // Predicated region
    $region62: #{tpu_custom_call.1} parent=1 // pred_check
      _
    $region63: #{tpu_custom_call.1} parent=1 // pred_check_branch
      %2708 = sbr.rel (0) target = $region65
    $region64: #{tpu_custom_call.1} parent=1 // pred_region
      %2710 = dma.done [#allocation6], 1024
    $region65: #{tpu_custom_call.1} parent=1 // pred_fallthru
      _
    // Predicated region
    $region66: #{tpu_custom_call.1} parent=1 // pred_check
      _
    $region67: #{tpu_custom_call.1} parent=1 // pred_check_branch
      %2712 = sbr.rel (0) target = $region69
    $region68: #{tpu_custom_call.1} parent=1 // pred_region
      %2714 = dma.done [#allocation17], 128
    $region69: #{tpu_custom_call.1} parent=1 // pred_fallthru
      _
    %2715 = vsyncpa [#allocation5], 1
    %2716 = vsyncpa [#allocation8], 1
    %2717 = vsyncpa [#allocation11], 1
    %2718 = vsyncpa [#allocation14], 1
    %2719 = vsyncpa [#allocation6], 1
    %2720 = vsyncpa [#allocation17], 1

</llo_original>
